<compile_context>
chip_gen: v7x
topology: tpu7x:2x2x1
jax: 0.10.0
libtpu: 0.0.40
codegen_flags: <defaults>
</compile_context>

<pallas_src>
import functools
import math

import jax
import jax.numpy as jnp
import numpy as np
from jax.experimental import pallas as pl
from jax.experimental.pallas import tpu as pltpu


# Rows of the packed per-layer [L, 15, D] vector slab.
_SA_BQ, _SA_BK, _SA_BV, _SA_BO = 0, 1, 2, 3
_CA_BQ, _CA_BK, _CA_BV, _CA_BO = 4, 5, 6, 7
_N1W, _N1B, _N2W, _N2B, _N3W, _N3B = 8, 9, 10, 11, 12, 13
_FF2B = 14
_NUM_VEC_ROWS = 15


def _layer_norm(x, w, b, eps=1e-5):
    mu = jnp.mean(x, axis=-1, keepdims=True)
    var = jnp.mean(jnp.square(x - mu), axis=-1, keepdims=True)
    return (x - mu) * jax.lax.rsqrt(var + eps) * w + b


# ---------------------------------------------------------------------------
# Fused decoder kernel (one batch element per grid step, all layers inside)
# ---------------------------------------------------------------------------
def _decoder_kernel(x_ref, mem_ref, tmask_ref, mmask_ref,
                    sa_in_ref, sa_out_ref, ca_q_ref, ca_kv_ref, ca_out_ref,
                    ff1_ref, ff2_ref, vecs_ref, ff1b_ref,
                    out_ref, *, num_heads, num_layers):
    D = x_ref.shape[-1]
    S = mem_ref.shape[1]
    hd = D // num_heads
    scale = 1.0 / math.sqrt(hd)

    x = x_ref[0]            # [T, D]
    mem = mem_ref[0]        # [S, D]
    tmask = tmask_ref[...]  # [T, T] additive
    mmask = mmask_ref[...]  # [T, S] additive

    def vec(layer, row):
        return vecs_ref[layer, row:row + 1, :]   # [1, D]

    def attend(q, k, mask, v=None, out_w_ref=None, layer=None,
               need_out=True, need_weights=False):
        """Per-head attention. q is already scaled by 1/sqrt(hd).
        When need_out, head outputs are folded directly into the output
        projection (out_w_ref[layer]); when need_weights, head-averaged
        softmax weights are returned and all dead work is skipped."""
        out = None
        wsum = None
        for h in range(num_heads):
            sl = slice(h * hd, (h + 1) * hd)
            s = jax.lax.dot_general(q[:, sl], k[:, sl], (((1,), (1,)), ((), ())),
                                    preferred_element_type=jnp.float32) + mask
            s = s - jnp.max(s, axis=-1, keepdims=True)
            e = jnp.exp(s)
            p = e / jnp.sum(e, axis=-1, keepdims=True)
            if need_out:
                oh = jnp.dot(p, v[:, sl], preferred_element_type=jnp.float32)
                # TODO(synk): at production head dims, assemble all heads into one
                # [T, D] tile and run a single output-projection matmul (needs
                # unaligned-lane concat / sliced stores); at hd=8 the per-head
                # accumulation below is negligible and guaranteed to lower.
                contrib = jnp.dot(oh, out_w_ref[layer, sl, :],
                                  preferred_element_type=jnp.float32)
                out = contrib if out is None else out + contrib
            if need_weights:
                wsum = p if wsum is None else wsum + p
        w = None if wsum is None else wsum * (1.0 / num_heads)
        return out, w

    # ---- standard layers (all but last): post-norm, relu, dropout = 0 ----
    # TODO(synk): for large L / production dims, stream one layer per grid step
    # ("arbitrary" layer axis, x kept in VMEM scratch) instead of this static
    # unroll, so resident weights fit v7x's 64 MiB VMEM.
    for l in range(num_layers - 1):
        # --- self attention (single fused QKV projection) ---
        qkv = jnp.dot(x, sa_in_ref[l], preferred_element_type=jnp.float32)
        q = (qkv[:, 0 * D:1 * D] + vec(l, _SA_BQ)) * scale
        k = qkv[:, 1 * D:2 * D] + vec(l, _SA_BK)
        v = qkv[:, 2 * D:3 * D] + vec(l, _SA_BV)
        sa, _ = attend(q, k, tmask, v=v, out_w_ref=sa_out_ref, layer=l)
        x = _layer_norm(x + sa + vec(l, _SA_BO), vec(l, _N1W), vec(l, _N1B))

        # --- cross attention (fused KV projection of memory) ---
        q = (jnp.dot(x, ca_q_ref[l], preferred_element_type=jnp.float32)
             + vec(l, _CA_BQ)) * scale
        kv = jnp.dot(mem, ca_kv_ref[l], preferred_element_type=jnp.float32)
        k = kv[:, 0:D] + vec(l, _CA_BK)
        v = kv[:, D:2 * D] + vec(l, _CA_BV)
        ca, _ = attend(q, k, mmask, v=v, out_w_ref=ca_out_ref, layer=l)
        x = _layer_norm(x + ca + vec(l, _CA_BO), vec(l, _N2W), vec(l, _N2B))

        # --- feed forward ---
        h1 = jnp.maximum(jnp.dot(x, ff1_ref[l], preferred_element_type=jnp.float32)
                         + ff1b_ref[l], 0.0)
        ff = jnp.dot(h1, ff2_ref[l], preferred_element_type=jnp.float32) + vec(l, _FF2B)
        x = _layer_norm(x + ff, vec(l, _N3W), vec(l, _N3B))

    # ---- last layer: self-attn + norm1, then cross-attention WEIGHTS only ----
    l = num_layers - 1
    qkv = jnp.dot(x, sa_in_ref[l], preferred_element_type=jnp.float32)
    q = (qkv[:, 0 * D:1 * D] + vec(l, _SA_BQ)) * scale
    k = qkv[:, 1 * D:2 * D] + vec(l, _SA_BK)
    v = qkv[:, 2 * D:3 * D] + vec(l, _SA_BV)
    sa, _ = attend(q, k, tmask, v=v, out_w_ref=sa_out_ref, layer=l)
    x = _layer_norm(x + sa + vec(l, _SA_BO), vec(l, _N1W), vec(l, _N1B))

    # Cross attention: only Q/K projections and the softmax are live
    # (V projection, P@V and the output projection are dead and skipped).
    q = (jnp.dot(x, ca_q_ref[l], preferred_element_type=jnp.float32)
         + vec(l, _CA_BQ)) * scale
    k = (jnp.dot(mem, ca_kv_ref[l, :, 0:D], preferred_element_type=jnp.float32)
         + vec(l, _CA_BK))
    _, attn_w = attend(q, k, mmask, need_out=False, need_weights=True)

    # In-kernel equivalent of torch.cat((zeros(B,T,2), attn_w), dim=2):
    # shift the [T,S] weights into a [T, S+2] slab with a 0/1 shift matmul
    # (avoids unaligned lane stores/concat, exact for 0/1 coefficients).
    src = jax.lax.broadcasted_iota(jnp.int32, (S, S + 2), 0)
    dst = jax.lax.broadcasted_iota(jnp.int32, (S, S + 2), 1)
    shift = (dst == src + 2).astype(jnp.float32)
    out_ref[0] = jnp.dot(attn_w, shift,
                         preferred_element_type=jnp.float32).astype(out_ref.dtype)


# ---------------------------------------------------------------------------
# Host wrapper: stack per-layer params, single pallas_call
# ---------------------------------------------------------------------------
def _replicated_spec(arr):
    zeros = (0,) * arr.ndim
    return pl.BlockSpec(arr.shape, lambda b, z=zeros: z)


def decoder_forward(tgt_embed, memory, tgt_src_mask, tgt_tgt_mask, params, num_heads):
    """Equivalent of DecoderPyTorch.forward (batch-first layout)."""
    B, T, D = tgt_embed.shape
    S = memory.shape[1]
    L = len(params)

    def stack(fn):
        return jnp.stack([fn(p) for p in params], axis=0)

    sa_in = stack(lambda p: p['sa_in_w'].T)        # [L, D, 3D]
    sa_out = stack(lambda p: p['sa_out_w'].T)      # [L, D, D]
    ca_q = stack(lambda p: p['ca_in_w'][:D].T)     # [L, D, D]
    ca_kv = stack(lambda p: p['ca_in_w'][D:].T)    # [L, D, 2D]  (K then V columns)
    ca_out = stack(lambda p: p['ca_out_w'].T)      # [L, D, D]
    ff1 = stack(lambda p: p['l1_w'].T)             # [L, D, FF]
    ff2 = stack(lambda p: p['l2_w'].T)             # [L, FF, D]
    vecs = stack(lambda p: jnp.stack([
        p['sa_in_b'][:D], p['sa_in_b'][D:2 * D], p['sa_in_b'][2 * D:],
        p['sa_out_b'],
        p['ca_in_b'][:D], p['ca_in_b'][D:2 * D], p['ca_in_b'][2 * D:],
        p['ca_out_b'],
        p['n1_w'], p['n1_b'], p['n2_w'], p['n2_b'], p['n3_w'], p['n3_b'],
        p['l2_b'],
    ], axis=0))                                    # [L, 15, D]
    ff1_b = stack(lambda p: p['l1_b'][None, :])    # [L, 1, FF]

    weights = [sa_in, sa_out, ca_q, ca_kv, ca_out, ff1, ff2, vecs, ff1_b]

    kernel = functools.partial(_decoder_kernel, num_heads=num_heads, num_layers=L)
    return pl.pallas_call(
        kernel,
        out_shape=jax.ShapeDtypeStruct((B, T, S + 2), jnp.float32),
        grid=(B,),
        in_specs=[
            pl.BlockSpec((1, T, D), lambda b: (b, 0, 0)),   # tgt_embed
            pl.BlockSpec((1, S, D), lambda b: (b, 0, 0)),   # memory
            pl.BlockSpec((T, T), lambda b: (0, 0)),         # tgt_tgt_mask
            pl.BlockSpec((T, S), lambda b: (0, 0)),         # tgt_src_mask
        ] + [_replicated_spec(w) for w in weights],
        out_specs=pl.BlockSpec((1, T, S + 2), lambda b: (b, 0, 0)),
        compiler_params=pltpu.CompilerParams(dimension_semantics=("parallel",)),
    )(tgt_embed, memory, tgt_tgt_mask, tgt_src_mask, *weights)


# ---------------------------------------------------------------------------
# Deterministic parameter init (shapes from nn.TransformerDecoderLayer)
# ---------------------------------------------------------------------------
def init_params(key, dim_model, dim_feedforward, num_layers):
    D, FF = dim_model, dim_feedforward
    s = 1.0 / math.sqrt(D)
    sf = 1.0 / math.sqrt(FF)
    params = []
    for _ in range(num_layers):
        key, *ks = jax.random.split(key, 21)
        p = {
            'sa_in_w': jax.random.uniform(ks[0], (3 * D, D), jnp.float32, -s, s),
            'sa_in_b': jax.random.uniform(ks[1], (3 * D,), jnp.float32, -s, s),
            'sa_out_w': jax.random.uniform(ks[2], (D, D), jnp.float32, -s, s),
            'sa_out_b': jax.random.uniform(ks[3], (D,), jnp.float32, -s, s),
            'ca_in_w': jax.random.uniform(ks[4], (3 * D, D), jnp.float32, -s, s),
            'ca_in_b': jax.random.uniform(ks[5], (3 * D,), jnp.float32, -s, s),
            'ca_out_w': jax.random.uniform(ks[6], (D, D), jnp.float32, -s, s),
            'ca_out_b': jax.random.uniform(ks[7], (D,), jnp.float32, -s, s),
            'n1_w': 1.0 + 0.1 * jax.random.normal(ks[8], (D,), jnp.float32),
            'n1_b': 0.1 * jax.random.normal(ks[9], (D,), jnp.float32),
            'n2_w': 1.0 + 0.1 * jax.random.normal(ks[10], (D,), jnp.float32),
            'n2_b': 0.1 * jax.random.normal(ks[11], (D,), jnp.float32),
            'n3_w': 1.0 + 0.1 * jax.random.normal(ks[12], (D,), jnp.float32),
            'n3_b': 0.1 * jax.random.normal(ks[13], (D,), jnp.float32),
            'l1_w': jax.random.uniform(ks[14], (FF, D), jnp.float32, -s, s),
            'l1_b': jax.random.uniform(ks[15], (FF,), jnp.float32, -s, s),
            'l2_w': jax.random.uniform(ks[16], (D, FF), jnp.float32, -sf, sf),
            'l2_b': jax.random.uniform(ks[17], (D,), jnp.float32, -sf, sf),
        }
        params.append(p)
    return params


# ---------------------------------------------------------------------------
# Pure-JAX reference (mirrors PyTorch semantics) for correctness check
# ---------------------------------------------------------------------------
def _ref_ln(x, w, b, eps=1e-5):
    mu = jnp.mean(x, axis=-1, keepdims=True)
    var = jnp.mean(jnp.square(x - mu), axis=-1, keepdims=True)
    return (x - mu) / jnp.sqrt(var + eps) * w + b


def _ref_mha(q, k, v, in_w, in_b, out_w, out_b, mask, num_heads):
    T, D = q.shape
    S = k.shape[0]
    hd = D // num_heads
    Q = (q @ in_w[:D].T + in_b[:D]).reshape(T, num_heads, hd).transpose(1, 0, 2)
    K = (k @ in_w[D:2 * D].T + in_b[D:2 * D]).reshape(S, num_heads, hd).transpose(1, 0, 2)
    V = (v @ in_w[2 * D:].T + in_b[2 * D:]).reshape(S, num_heads, hd).transpose(1, 0, 2)
    scores = jnp.einsum('htd,hsd->hts', Q, K) / math.sqrt(hd) + mask[None]
    p = jax.nn.softmax(scores, axis=-1)
    o = jnp.einsum('hts,hsd->htd', p, V).transpose(1, 0, 2).reshape(T, D)
    return o @ out_w.T + out_b, p.mean(axis=0)


def ref_decoder_forward(tgt_embed, memory, tgt_src_mask, tgt_tgt_mask, params, num_heads):
    B, T, _ = tgt_embed.shape
    outs = []
    for b in range(B):
        x = tgt_embed[b]
        mem = memory[b]
        for p in params[:-1]:
            sa, _ = _ref_mha(x, x, x, p['sa_in_w'], p['sa_in_b'], p['sa_out_w'], p['sa_out_b'],
                             tgt_tgt_mask, num_heads)
            x = _ref_ln(x + sa, p['n1_w'], p['n1_b'])
            ca, _ = _ref_mha(x, mem, mem, p['ca_in_w'], p['ca_in_b'], p['ca_out_w'], p['ca_out_b'],
                             tgt_src_mask, num_heads)
            x = _ref_ln(x + ca, p['n2_w'], p['n2_b'])
            ff = jnp.maximum(x @ p['l1_w'].T + p['l1_b'], 0.0) @ p['l2_w'].T + p['l2_b']
            x = _ref_ln(x + ff, p['n3_w'], p['n3_b'])
        p = params[-1]
        sa, _ = _ref_mha(x, x, x, p['sa_in_w'], p['sa_in_b'], p['sa_out_w'], p['sa_out_b'],
                         tgt_tgt_mask, num_heads)
        x = _ref_ln(x + sa, p['n1_w'], p['n1_b'])
        _, w = _ref_mha(x, mem, mem, p['ca_in_w'], p['ca_in_b'], p['ca_out_w'], p['ca_out_b'],
                        tgt_src_mask, num_heads)
        outs.append(w)
    w = jnp.stack(outs, axis=0)
    return jnp.concatenate([jnp.zeros((B, T, 2), w.dtype), w], axis=2)


# ---------------------------------------------------------------------------
if __name__ == "__main__":
    B, T, S = 2, 8, 16          # batch, tgt seq len, src seq len
    D, H, FF, L = 32, 4, 64, 2  # dim_model, num_heads, dim_feedforward, num_layers

    key = jax.random.PRNGKey(0)
    k1, k2, k3, k4 = jax.random.split(key, 4)
    tgt_embed = jax.random.normal(k1, (B, T, D), jnp.float32)
    memory = jax.random.normal(k2, (B, S, D), jnp.float32)
    # Causal additive mask for self-attention; mild additive bias for cross-attn.
    tgt_tgt_mask = jnp.where(
        jnp.arange(T)[:, None] >= jnp.arange(T)[None, :], 0.0, -1e9
    ).astype(jnp.float32)
    tgt_src_mask = 0.3 * jax.random.normal(k4, (T, S), jnp.float32)

    params = init_params(k3, D, FF, L)

    out = decoder_forward(tgt_embed, memory, tgt_src_mask, tgt_tgt_mask, params, H)
    out = jax.block_until_ready(out)
    assert out.shape == (B, T, 2 + S)

    ref = ref_decoder_forward(tgt_embed, memory, tgt_src_mask, tgt_tgt_mask, params, H)
    np.testing.assert_allclose(np.asarray(out), np.asarray(ref), atol=3e-5, rtol=3e-5)

    print("KERNEL_OK")
</pallas_src>

<mosaic_0001>
module attributes {stable_mosaic.version = 11 : i64} {
  func.func @_decoder_kernel(%arg0: i32, %arg1: memref<1x8x32xf32, #tpu.memory_space<vmem>>, %arg2: memref<1x16x32xf32, #tpu.memory_space<vmem>>, %arg3: memref<8x8xf32, #tpu.memory_space<vmem>>, %arg4: memref<8x16xf32, #tpu.memory_space<vmem>>, %arg5: memref<2x32x96xf32, #tpu.memory_space<vmem>>, %arg6: memref<2x32x32xf32, #tpu.memory_space<vmem>>, %arg7: memref<2x32x32xf32, #tpu.memory_space<vmem>>, %arg8: memref<2x32x64xf32, #tpu.memory_space<vmem>>, %arg9: memref<2x32x32xf32, #tpu.memory_space<vmem>>, %arg10: memref<2x32x64xf32, #tpu.memory_space<vmem>>, %arg11: memref<2x64x32xf32, #tpu.memory_space<vmem>>, %arg12: memref<2x15x32xf32, #tpu.memory_space<vmem>>, %arg13: memref<2x1x64xf32, #tpu.memory_space<vmem>>, %arg14: memref<1x8x18xf32, #tpu.memory_space<vmem>>) attributes {dimension_semantics = [#tpu.dimension_semantics<parallel>], iteration_bounds = array<i64: 2>, scalar_prefetch = 0 : i64, scratch_operands = 0 : i64, tpu.core_type = #tpu.core_type<tc>, window_params = [{transform_indices = @transform_0, window_bounds = array<i64: 1, 8, 32>}, {transform_indices = @transform_1, window_bounds = array<i64: 1, 16, 32>}, {pipeline_mode = #tpu.pipeline_mode<synchronous>, transform_indices = @transform_2, window_bounds = array<i64: 8, 8>}, {pipeline_mode = #tpu.pipeline_mode<synchronous>, transform_indices = @transform_3, window_bounds = array<i64: 8, 16>}, {pipeline_mode = #tpu.pipeline_mode<synchronous>, transform_indices = @transform_4, window_bounds = array<i64: 2, 32, 96>}, {pipeline_mode = #tpu.pipeline_mode<synchronous>, transform_indices = @transform_5, window_bounds = array<i64: 2, 32, 32>}, {pipeline_mode = #tpu.pipeline_mode<synchronous>, transform_indices = @transform_6, window_bounds = array<i64: 2, 32, 32>}, {pipeline_mode = #tpu.pipeline_mode<synchronous>, transform_indices = @transform_7, window_bounds = array<i64: 2, 32, 64>}, {pipeline_mode = #tpu.pipeline_mode<synchronous>, transform_indices = @transform_8, window_bounds = array<i64: 2, 32, 32>}, {pipeline_mode = #tpu.pipeline_mode<synchronous>, transform_indices = @transform_9, window_bounds = array<i64: 2, 32, 64>}, {pipeline_mode = #tpu.pipeline_mode<synchronous>, transform_indices = @transform_10, window_bounds = array<i64: 2, 64, 32>}, {pipeline_mode = #tpu.pipeline_mode<synchronous>, transform_indices = @transform_11, window_bounds = array<i64: 2, 15, 32>}, {pipeline_mode = #tpu.pipeline_mode<synchronous>, transform_indices = @transform_12, window_bounds = array<i64: 2, 1, 64>}, {transform_indices = @transform_13, window_bounds = array<i64: 1, 8, 18>}]} {
    %c0 = arith.constant 0 : index
    %c0_0 = arith.constant 0 : index
    %c0_1 = arith.constant 0 : index
    %0 = vector.load %arg1[%c0, %c0_0, %c0_1] : memref<1x8x32xf32, #tpu.memory_space<vmem>>, vector<1x8x32xf32>
    %1 = vector.shape_cast %0 : vector<1x8x32xf32> to vector<8x32xf32>
    %c0_2 = arith.constant 0 : index
    %c0_3 = arith.constant 0 : index
    %c0_4 = arith.constant 0 : index
    %2 = vector.load %arg2[%c0_2, %c0_3, %c0_4] : memref<1x16x32xf32, #tpu.memory_space<vmem>>, vector<1x16x32xf32>
    %3 = vector.shape_cast %2 : vector<1x16x32xf32> to vector<16x32xf32>
    %c0_5 = arith.constant 0 : index
    %c0_6 = arith.constant 0 : index
    %4 = vector.load %arg3[%c0_5, %c0_6] : memref<8x8xf32, #tpu.memory_space<vmem>>, vector<8x8xf32>
    %c0_7 = arith.constant 0 : index
    %c0_8 = arith.constant 0 : index
    %5 = vector.load %arg4[%c0_7, %c0_8] : memref<8x16xf32, #tpu.memory_space<vmem>>, vector<8x16xf32>
    %c0_9 = arith.constant 0 : index
    %c0_10 = arith.constant 0 : index
    %c0_11 = arith.constant 0 : index
    %6 = vector.load %arg5[%c0_9, %c0_10, %c0_11] : memref<2x32x96xf32, #tpu.memory_space<vmem>>, vector<1x32x96xf32>
    %7 = vector.shape_cast %6 : vector<1x32x96xf32> to vector<32x96xf32>
    %cst = arith.constant dense<0.000000e+00> : vector<8x96xf32>
    %8 = tpu.matmul %1, %7, %cst {dimension_numbers = #tpu.dot_dimension_numbers<[1], [0], [0], [1], [0, 0, 1, 1], [], []>} : vector<8x32xf32>, vector<32x96xf32>, vector<8x96xf32> -> vector<8x96xf32>
    %9 = vector.extract_strided_slice %8 {offsets = [0, 0], sizes = [8, 32], strides = [1, 1]} : vector<8x96xf32> to vector<8x32xf32>
    %c0_12 = arith.constant 0 : index
    %c0_13 = arith.constant 0 : index
    %c0_14 = arith.constant 0 : index
    %10 = vector.load %arg12[%c0_12, %c0_13, %c0_14] : memref<2x15x32xf32, #tpu.memory_space<vmem>>, vector<1x1x32xf32>
    %11 = vector.shape_cast %10 : vector<1x1x32xf32> to vector<1x32xf32>
    %12 = vector.broadcast %11 : vector<1x32xf32> to vector<8x32xf32>
    %13 = arith.addf %9, %12 : vector<8x32xf32>
    %cst_15 = arith.constant 0.353553385 : f32
    %14 = vector.broadcast %cst_15 : f32 to vector<8x32xf32>
    %15 = arith.mulf %13, %14 : vector<8x32xf32>
    %16 = vector.extract_strided_slice %8 {offsets = [0, 32], sizes = [8, 32], strides = [1, 1]} : vector<8x96xf32> to vector<8x32xf32>
    %c0_16 = arith.constant 0 : index
    %c1 = arith.constant 1 : index
    %c0_17 = arith.constant 0 : index
    %17 = vector.load %arg12[%c0_16, %c1, %c0_17] : memref<2x15x32xf32, #tpu.memory_space<vmem>>, vector<1x1x32xf32>
    %18 = vector.shape_cast %17 : vector<1x1x32xf32> to vector<1x32xf32>
    %19 = vector.broadcast %18 : vector<1x32xf32> to vector<8x32xf32>
    %20 = arith.addf %16, %19 : vector<8x32xf32>
    %21 = vector.extract_strided_slice %8 {offsets = [0, 64], sizes = [8, 32], strides = [1, 1]} : vector<8x96xf32> to vector<8x32xf32>
    %c0_18 = arith.constant 0 : index
    %c2 = arith.constant 2 : index
    %c0_19 = arith.constant 0 : index
    %22 = vector.load %arg12[%c0_18, %c2, %c0_19] : memref<2x15x32xf32, #tpu.memory_space<vmem>>, vector<1x1x32xf32>
    %23 = vector.shape_cast %22 : vector<1x1x32xf32> to vector<1x32xf32>
    %24 = vector.broadcast %23 : vector<1x32xf32> to vector<8x32xf32>
    %25 = arith.addf %21, %24 : vector<8x32xf32>
    %26 = vector.extract_strided_slice %15 {offsets = [0, 0], sizes = [8, 8], strides = [1, 1]} : vector<8x32xf32> to vector<8x8xf32>
    %27 = vector.extract_strided_slice %20 {offsets = [0, 0], sizes = [8, 8], strides = [1, 1]} : vector<8x32xf32> to vector<8x8xf32>
    %cst_20 = arith.constant dense<0.000000e+00> : vector<8x8xf32>
    %28 = tpu.matmul %26, %27, %cst_20 {dimension_numbers = #tpu.dot_dimension_numbers<[1], [1], [0], [0], [0, 0, 1, 0], [], []>} : vector<8x8xf32>, vector<8x8xf32>, vector<8x8xf32> -> vector<8x8xf32>
    %29 = arith.addf %28, %4 : vector<8x8xf32>
    %cst_21 = arith.constant dense<0xFF800000> : vector<8xf32>
    %30 = vector.multi_reduction <maximumf>, %29, %cst_21 [1] : vector<8x8xf32> to vector<8xf32>
    %31 = vector.shape_cast %30 : vector<8xf32> to vector<8x1xf32>
    %32 = vector.broadcast %31 : vector<8x1xf32> to vector<8x8xf32>
    %33 = arith.subf %29, %32 : vector<8x8xf32>
    %34 = math.exp %33 : vector<8x8xf32>
    %cst_22 = arith.constant dense<0.000000e+00> : vector<8xf32>
    %35 = vector.multi_reduction <add>, %34, %cst_22 [1] : vector<8x8xf32> to vector<8xf32>
    %36 = vector.shape_cast %35 : vector<8xf32> to vector<8x1xf32>
    %37 = vector.broadcast %36 : vector<8x1xf32> to vector<8x8xf32>
    %38 = arith.divf %34, %37 : vector<8x8xf32>
    %39 = vector.extract_strided_slice %25 {offsets = [0, 0], sizes = [8, 8], strides = [1, 1]} : vector<8x32xf32> to vector<8x8xf32>
    %cst_23 = arith.constant dense<0.000000e+00> : vector<8x8xf32>
    %40 = tpu.matmul %38, %39, %cst_23 {dimension_numbers = #tpu.dot_dimension_numbers<[1], [0], [0], [1], [0, 0, 1, 1], [], []>} : vector<8x8xf32>, vector<8x8xf32>, vector<8x8xf32> -> vector<8x8xf32>
    %c0_24 = arith.constant 0 : index
    %c0_25 = arith.constant 0 : index
    %c0_26 = arith.constant 0 : index
    %41 = vector.load %arg6[%c0_24, %c0_25, %c0_26] : memref<2x32x32xf32, #tpu.memory_space<vmem>>, vector<1x8x32xf32>
    %42 = vector.shape_cast %41 : vector<1x8x32xf32> to vector<8x32xf32>
    %cst_27 = arith.constant dense<0.000000e+00> : vector<8x32xf32>
    %43 = tpu.matmul %40, %42, %cst_27 {dimension_numbers = #tpu.dot_dimension_numbers<[1], [0], [0], [1], [0, 0, 1, 1], [], []>} : vector<8x8xf32>, vector<8x32xf32>, vector<8x32xf32> -> vector<8x32xf32>
    %44 = vector.extract_strided_slice %15 {offsets = [0, 8], sizes = [8, 8], strides = [1, 1]} : vector<8x32xf32> to vector<8x8xf32>
    %45 = vector.extract_strided_slice %20 {offsets = [0, 8], sizes = [8, 8], strides = [1, 1]} : vector<8x32xf32> to vector<8x8xf32>
    %cst_28 = arith.constant dense<0.000000e+00> : vector<8x8xf32>
    %46 = tpu.matmul %44, %45, %cst_28 {dimension_numbers = #tpu.dot_dimension_numbers<[1], [1], [0], [0], [0, 0, 1, 0], [], []>} : vector<8x8xf32>, vector<8x8xf32>, vector<8x8xf32> -> vector<8x8xf32>
    %47 = arith.addf %46, %4 : vector<8x8xf32>
    %cst_29 = arith.constant dense<0xFF800000> : vector<8xf32>
    %48 = vector.multi_reduction <maximumf>, %47, %cst_29 [1] : vector<8x8xf32> to vector<8xf32>
    %49 = vector.shape_cast %48 : vector<8xf32> to vector<8x1xf32>
    %50 = vector.broadcast %49 : vector<8x1xf32> to vector<8x8xf32>
    %51 = arith.subf %47, %50 : vector<8x8xf32>
    %52 = math.exp %51 : vector<8x8xf32>
    %cst_30 = arith.constant dense<0.000000e+00> : vector<8xf32>
    %53 = vector.multi_reduction <add>, %52, %cst_30 [1] : vector<8x8xf32> to vector<8xf32>
    %54 = vector.shape_cast %53 : vector<8xf32> to vector<8x1xf32>
    %55 = vector.broadcast %54 : vector<8x1xf32> to vector<8x8xf32>
    %56 = arith.divf %52, %55 : vector<8x8xf32>
    %57 = vector.extract_strided_slice %25 {offsets = [0, 8], sizes = [8, 8], strides = [1, 1]} : vector<8x32xf32> to vector<8x8xf32>
    %cst_31 = arith.constant dense<0.000000e+00> : vector<8x8xf32>
    %58 = tpu.matmul %56, %57, %cst_31 {dimension_numbers = #tpu.dot_dimension_numbers<[1], [0], [0], [1], [0, 0, 1, 1], [], []>} : vector<8x8xf32>, vector<8x8xf32>, vector<8x8xf32> -> vector<8x8xf32>
    %c0_32 = arith.constant 0 : index
    %c8 = arith.constant 8 : index
    %c0_33 = arith.constant 0 : index
    %59 = vector.load %arg6[%c0_32, %c8, %c0_33] : memref<2x32x32xf32, #tpu.memory_space<vmem>>, vector<1x8x32xf32>
    %60 = vector.shape_cast %59 : vector<1x8x32xf32> to vector<8x32xf32>
    %cst_34 = arith.constant dense<0.000000e+00> : vector<8x32xf32>
    %61 = tpu.matmul %58, %60, %cst_34 {dimension_numbers = #tpu.dot_dimension_numbers<[1], [0], [0], [1], [0, 0, 1, 1], [], []>} : vector<8x8xf32>, vector<8x32xf32>, vector<8x32xf32> -> vector<8x32xf32>
    %62 = arith.addf %43, %61 : vector<8x32xf32>
    %63 = vector.extract_strided_slice %15 {offsets = [0, 16], sizes = [8, 8], strides = [1, 1]} : vector<8x32xf32> to vector<8x8xf32>
    %64 = vector.extract_strided_slice %20 {offsets = [0, 16], sizes = [8, 8], strides = [1, 1]} : vector<8x32xf32> to vector<8x8xf32>
    %cst_35 = arith.constant dense<0.000000e+00> : vector<8x8xf32>
    %65 = tpu.matmul %63, %64, %cst_35 {dimension_numbers = #tpu.dot_dimension_numbers<[1], [1], [0], [0], [0, 0, 1, 0], [], []>} : vector<8x8xf32>, vector<8x8xf32>, vector<8x8xf32> -> vector<8x8xf32>
    %66 = arith.addf %65, %4 : vector<8x8xf32>
    %cst_36 = arith.constant dense<0xFF800000> : vector<8xf32>
    %67 = vector.multi_reduction <maximumf>, %66, %cst_36 [1] : vector<8x8xf32> to vector<8xf32>
    %68 = vector.shape_cast %67 : vector<8xf32> to vector<8x1xf32>
    %69 = vector.broadcast %68 : vector<8x1xf32> to vector<8x8xf32>
    %70 = arith.subf %66, %69 : vector<8x8xf32>
    %71 = math.exp %70 : vector<8x8xf32>
    %cst_37 = arith.constant dense<0.000000e+00> : vector<8xf32>
    %72 = vector.multi_reduction <add>, %71, %cst_37 [1] : vector<8x8xf32> to vector<8xf32>
    %73 = vector.shape_cast %72 : vector<8xf32> to vector<8x1xf32>
    %74 = vector.broadcast %73 : vector<8x1xf32> to vector<8x8xf32>
    %75 = arith.divf %71, %74 : vector<8x8xf32>
    %76 = vector.extract_strided_slice %25 {offsets = [0, 16], sizes = [8, 8], strides = [1, 1]} : vector<8x32xf32> to vector<8x8xf32>
    %cst_38 = arith.constant dense<0.000000e+00> : vector<8x8xf32>
    %77 = tpu.matmul %75, %76, %cst_38 {dimension_numbers = #tpu.dot_dimension_numbers<[1], [0], [0], [1], [0, 0, 1, 1], [], []>} : vector<8x8xf32>, vector<8x8xf32>, vector<8x8xf32> -> vector<8x8xf32>
    %c0_39 = arith.constant 0 : index
    %c16 = arith.constant 16 : index
    %c0_40 = arith.constant 0 : index
    %78 = vector.load %arg6[%c0_39, %c16, %c0_40] : memref<2x32x32xf32, #tpu.memory_space<vmem>>, vector<1x8x32xf32>
    %79 = vector.shape_cast %78 : vector<1x8x32xf32> to vector<8x32xf32>
    %cst_41 = arith.constant dense<0.000000e+00> : vector<8x32xf32>
    %80 = tpu.matmul %77, %79, %cst_41 {dimension_numbers = #tpu.dot_dimension_numbers<[1], [0], [0], [1], [0, 0, 1, 1], [], []>} : vector<8x8xf32>, vector<8x32xf32>, vector<8x32xf32> -> vector<8x32xf32>
    %81 = arith.addf %62, %80 : vector<8x32xf32>
    %82 = vector.extract_strided_slice %15 {offsets = [0, 24], sizes = [8, 8], strides = [1, 1]} : vector<8x32xf32> to vector<8x8xf32>
    %83 = vector.extract_strided_slice %20 {offsets = [0, 24], sizes = [8, 8], strides = [1, 1]} : vector<8x32xf32> to vector<8x8xf32>
    %cst_42 = arith.constant dense<0.000000e+00> : vector<8x8xf32>
    %84 = tpu.matmul %82, %83, %cst_42 {dimension_numbers = #tpu.dot_dimension_numbers<[1], [1], [0], [0], [0, 0, 1, 0], [], []>} : vector<8x8xf32>, vector<8x8xf32>, vector<8x8xf32> -> vector<8x8xf32>
    %85 = arith.addf %84, %4 : vector<8x8xf32>
    %cst_43 = arith.constant dense<0xFF800000> : vector<8xf32>
    %86 = vector.multi_reduction <maximumf>, %85, %cst_43 [1] : vector<8x8xf32> to vector<8xf32>
    %87 = vector.shape_cast %86 : vector<8xf32> to vector<8x1xf32>
    %88 = vector.broadcast %87 : vector<8x1xf32> to vector<8x8xf32>
    %89 = arith.subf %85, %88 : vector<8x8xf32>
    %90 = math.exp %89 : vector<8x8xf32>
    %cst_44 = arith.constant dense<0.000000e+00> : vector<8xf32>
    %91 = vector.multi_reduction <add>, %90, %cst_44 [1] : vector<8x8xf32> to vector<8xf32>
    %92 = vector.shape_cast %91 : vector<8xf32> to vector<8x1xf32>
    %93 = vector.broadcast %92 : vector<8x1xf32> to vector<8x8xf32>
    %94 = arith.divf %90, %93 : vector<8x8xf32>
    %95 = vector.extract_strided_slice %25 {offsets = [0, 24], sizes = [8, 8], strides = [1, 1]} : vector<8x32xf32> to vector<8x8xf32>
    %cst_45 = arith.constant dense<0.000000e+00> : vector<8x8xf32>
    %96 = tpu.matmul %94, %95, %cst_45 {dimension_numbers = #tpu.dot_dimension_numbers<[1], [0], [0], [1], [0, 0, 1, 1], [], []>} : vector<8x8xf32>, vector<8x8xf32>, vector<8x8xf32> -> vector<8x8xf32>
    %c0_46 = arith.constant 0 : index
    %c24 = arith.constant 24 : index
    %c0_47 = arith.constant 0 : index
    %97 = vector.load %arg6[%c0_46, %c24, %c0_47] : memref<2x32x32xf32, #tpu.memory_space<vmem>>, vector<1x8x32xf32>
    %98 = vector.shape_cast %97 : vector<1x8x32xf32> to vector<8x32xf32>
    %cst_48 = arith.constant dense<0.000000e+00> : vector<8x32xf32>
    %99 = tpu.matmul %96, %98, %cst_48 {dimension_numbers = #tpu.dot_dimension_numbers<[1], [0], [0], [1], [0, 0, 1, 1], [], []>} : vector<8x8xf32>, vector<8x32xf32>, vector<8x32xf32> -> vector<8x32xf32>
    %100 = arith.addf %81, %99 : vector<8x32xf32>
    %101 = arith.addf %1, %100 : vector<8x32xf32>
    %c0_49 = arith.constant 0 : index
    %c3 = arith.constant 3 : index
    %c0_50 = arith.constant 0 : index
    %102 = vector.load %arg12[%c0_49, %c3, %c0_50] : memref<2x15x32xf32, #tpu.memory_space<vmem>>, vector<1x1x32xf32>
    %103 = vector.shape_cast %102 : vector<1x1x32xf32> to vector<1x32xf32>
    %104 = vector.broadcast %103 : vector<1x32xf32> to vector<8x32xf32>
    %105 = arith.addf %101, %104 : vector<8x32xf32>
    %c0_51 = arith.constant 0 : index
    %c8_52 = arith.constant 8 : index
    %c0_53 = arith.constant 0 : index
    %106 = vector.load %arg12[%c0_51, %c8_52, %c0_53] : memref<2x15x32xf32, #tpu.memory_space<vmem>>, vector<1x1x32xf32>
    %107 = vector.shape_cast %106 : vector<1x1x32xf32> to vector<1x32xf32>
    %c0_54 = arith.constant 0 : index
    %c9 = arith.constant 9 : index
    %c0_55 = arith.constant 0 : index
    %108 = vector.load %arg12[%c0_54, %c9, %c0_55] : memref<2x15x32xf32, #tpu.memory_space<vmem>>, vector<1x1x32xf32>
    %109 = vector.shape_cast %108 : vector<1x1x32xf32> to vector<1x32xf32>
    %cst_56 = arith.constant dense<0.000000e+00> : vector<8xf32>
    %110 = vector.multi_reduction <add>, %105, %cst_56 [1] : vector<8x32xf32> to vector<8xf32>
    %111 = vector.shape_cast %110 : vector<8xf32> to vector<8x1xf32>
    %cst_57 = arith.constant 3.200000e+01 : f32
    %112 = vector.broadcast %cst_57 : f32 to vector<8x1xf32>
    %113 = arith.divf %111, %112 : vector<8x1xf32>
    %114 = vector.broadcast %113 : vector<8x1xf32> to vector<8x32xf32>
    %115 = arith.subf %105, %114 : vector<8x32xf32>
    %116 = arith.mulf %115, %115 : vector<8x32xf32>
    %cst_58 = arith.constant dense<0.000000e+00> : vector<8xf32>
    %117 = vector.multi_reduction <add>, %116, %cst_58 [1] : vector<8x32xf32> to vector<8xf32>
    %118 = vector.shape_cast %117 : vector<8xf32> to vector<8x1xf32>
    %cst_59 = arith.constant 3.200000e+01 : f32
    %119 = vector.broadcast %cst_59 : f32 to vector<8x1xf32>
    %120 = arith.divf %118, %119 : vector<8x1xf32>
    %121 = vector.broadcast %113 : vector<8x1xf32> to vector<8x32xf32>
    %122 = arith.subf %105, %121 : vector<8x32xf32>
    %cst_60 = arith.constant 9.99999974E-6 : f32
    %123 = vector.broadcast %cst_60 : f32 to vector<8x1xf32>
    %124 = arith.addf %120, %123 : vector<8x1xf32>
    %125 = math.rsqrt %124 : vector<8x1xf32>
    %126 = vector.broadcast %125 : vector<8x1xf32> to vector<8x32xf32>
    %127 = arith.mulf %122, %126 : vector<8x32xf32>
    %128 = vector.broadcast %107 : vector<1x32xf32> to vector<8x32xf32>
    %129 = arith.mulf %127, %128 : vector<8x32xf32>
    %130 = vector.broadcast %109 : vector<1x32xf32> to vector<8x32xf32>
    %131 = arith.addf %129, %130 : vector<8x32xf32>
    %c0_61 = arith.constant 0 : index
    %c0_62 = arith.constant 0 : index
    %c0_63 = arith.constant 0 : index
    %132 = vector.load %arg7[%c0_61, %c0_62, %c0_63] : memref<2x32x32xf32, #tpu.memory_space<vmem>>, vector<1x32x32xf32>
    %133 = vector.shape_cast %132 : vector<1x32x32xf32> to vector<32x32xf32>
    %cst_64 = arith.constant dense<0.000000e+00> : vector<8x32xf32>
    %134 = tpu.matmul %131, %133, %cst_64 {dimension_numbers = #tpu.dot_dimension_numbers<[1], [0], [0], [1], [0, 0, 1, 1], [], []>} : vector<8x32xf32>, vector<32x32xf32>, vector<8x32xf32> -> vector<8x32xf32>
    %c0_65 = arith.constant 0 : index
    %c4 = arith.constant 4 : index
    %c0_66 = arith.constant 0 : index
    %135 = vector.load %arg12[%c0_65, %c4, %c0_66] : memref<2x15x32xf32, #tpu.memory_space<vmem>>, vector<1x1x32xf32>
    %136 = vector.shape_cast %135 : vector<1x1x32xf32> to vector<1x32xf32>
    %137 = vector.broadcast %136 : vector<1x32xf32> to vector<8x32xf32>
    %138 = arith.addf %134, %137 : vector<8x32xf32>
    %cst_67 = arith.constant 0.353553385 : f32
    %139 = vector.broadcast %cst_67 : f32 to vector<8x32xf32>
    %140 = arith.mulf %138, %139 : vector<8x32xf32>
    %c0_68 = arith.constant 0 : index
    %c0_69 = arith.constant 0 : index
    %c0_70 = arith.constant 0 : index
    %141 = vector.load %arg8[%c0_68, %c0_69, %c0_70] : memref<2x32x64xf32, #tpu.memory_space<vmem>>, vector<1x32x64xf32>
    %142 = vector.shape_cast %141 : vector<1x32x64xf32> to vector<32x64xf32>
    %cst_71 = arith.constant dense<0.000000e+00> : vector<16x64xf32>
    %143 = tpu.matmul %3, %142, %cst_71 {dimension_numbers = #tpu.dot_dimension_numbers<[1], [0], [0], [1], [0, 0, 1, 1], [], []>} : vector<16x32xf32>, vector<32x64xf32>, vector<16x64xf32> -> vector<16x64xf32>
    %144 = vector.extract_strided_slice %143 {offsets = [0, 0], sizes = [16, 32], strides = [1, 1]} : vector<16x64xf32> to vector<16x32xf32>
    %c0_72 = arith.constant 0 : index
    %c5 = arith.constant 5 : index
    %c0_73 = arith.constant 0 : index
    %145 = vector.load %arg12[%c0_72, %c5, %c0_73] : memref<2x15x32xf32, #tpu.memory_space<vmem>>, vector<1x1x32xf32>
    %146 = vector.shape_cast %145 : vector<1x1x32xf32> to vector<1x32xf32>
    %147 = vector.broadcast %146 : vector<1x32xf32> to vector<16x32xf32>
    %148 = arith.addf %144, %147 : vector<16x32xf32>
    %149 = vector.extract_strided_slice %143 {offsets = [0, 32], sizes = [16, 32], strides = [1, 1]} : vector<16x64xf32> to vector<16x32xf32>
    %c0_74 = arith.constant 0 : index
    %c6 = arith.constant 6 : index
    %c0_75 = arith.constant 0 : index
    %150 = vector.load %arg12[%c0_74, %c6, %c0_75] : memref<2x15x32xf32, #tpu.memory_space<vmem>>, vector<1x1x32xf32>
    %151 = vector.shape_cast %150 : vector<1x1x32xf32> to vector<1x32xf32>
    %152 = vector.broadcast %151 : vector<1x32xf32> to vector<16x32xf32>
    %153 = arith.addf %149, %152 : vector<16x32xf32>
    %154 = vector.extract_strided_slice %140 {offsets = [0, 0], sizes = [8, 8], strides = [1, 1]} : vector<8x32xf32> to vector<8x8xf32>
    %155 = vector.extract_strided_slice %148 {offsets = [0, 0], sizes = [16, 8], strides = [1, 1]} : vector<16x32xf32> to vector<16x8xf32>
    %cst_76 = arith.constant dense<0.000000e+00> : vector<8x16xf32>
    %156 = tpu.matmul %154, %155, %cst_76 {dimension_numbers = #tpu.dot_dimension_numbers<[1], [1], [0], [0], [0, 0, 1, 0], [], []>} : vector<8x8xf32>, vector<16x8xf32>, vector<8x16xf32> -> vector<8x16xf32>
    %157 = arith.addf %156, %5 : vector<8x16xf32>
    %cst_77 = arith.constant dense<0xFF800000> : vector<8xf32>
    %158 = vector.multi_reduction <maximumf>, %157, %cst_77 [1] : vector<8x16xf32> to vector<8xf32>
    %159 = vector.shape_cast %158 : vector<8xf32> to vector<8x1xf32>
    %160 = vector.broadcast %159 : vector<8x1xf32> to vector<8x16xf32>
    %161 = arith.subf %157, %160 : vector<8x16xf32>
    %162 = math.exp %161 : vector<8x16xf32>
    %cst_78 = arith.constant dense<0.000000e+00> : vector<8xf32>
    %163 = vector.multi_reduction <add>, %162, %cst_78 [1] : vector<8x16xf32> to vector<8xf32>
    %164 = vector.shape_cast %163 : vector<8xf32> to vector<8x1xf32>
    %165 = vector.broadcast %164 : vector<8x1xf32> to vector<8x16xf32>
    %166 = arith.divf %162, %165 : vector<8x16xf32>
    %167 = vector.extract_strided_slice %153 {offsets = [0, 0], sizes = [16, 8], strides = [1, 1]} : vector<16x32xf32> to vector<16x8xf32>
    %cst_79 = arith.constant dense<0.000000e+00> : vector<8x8xf32>
    %168 = tpu.matmul %166, %167, %cst_79 {dimension_numbers = #tpu.dot_dimension_numbers<[1], [0], [0], [1], [0, 0, 1, 1], [], []>} : vector<8x16xf32>, vector<16x8xf32>, vector<8x8xf32> -> vector<8x8xf32>
    %c0_80 = arith.constant 0 : index
    %c0_81 = arith.constant 0 : index
    %c0_82 = arith.constant 0 : index
    %169 = vector.load %arg9[%c0_80, %c0_81, %c0_82] : memref<2x32x32xf32, #tpu.memory_space<vmem>>, vector<1x8x32xf32>
    %170 = vector.shape_cast %169 : vector<1x8x32xf32> to vector<8x32xf32>
    %cst_83 = arith.constant dense<0.000000e+00> : vector<8x32xf32>
    %171 = tpu.matmul %168, %170, %cst_83 {dimension_numbers = #tpu.dot_dimension_numbers<[1], [0], [0], [1], [0, 0, 1, 1], [], []>} : vector<8x8xf32>, vector<8x32xf32>, vector<8x32xf32> -> vector<8x32xf32>
    %172 = vector.extract_strided_slice %140 {offsets = [0, 8], sizes = [8, 8], strides = [1, 1]} : vector<8x32xf32> to vector<8x8xf32>
    %173 = vector.extract_strided_slice %148 {offsets = [0, 8], sizes = [16, 8], strides = [1, 1]} : vector<16x32xf32> to vector<16x8xf32>
    %cst_84 = arith.constant dense<0.000000e+00> : vector<8x16xf32>
    %174 = tpu.matmul %172, %173, %cst_84 {dimension_numbers = #tpu.dot_dimension_numbers<[1], [1], [0], [0], [0, 0, 1, 0], [], []>} : vector<8x8xf32>, vector<16x8xf32>, vector<8x16xf32> -> vector<8x16xf32>
    %175 = arith.addf %174, %5 : vector<8x16xf32>
    %cst_85 = arith.constant dense<0xFF800000> : vector<8xf32>
    %176 = vector.multi_reduction <maximumf>, %175, %cst_85 [1] : vector<8x16xf32> to vector<8xf32>
    %177 = vector.shape_cast %176 : vector<8xf32> to vector<8x1xf32>
    %178 = vector.broadcast %177 : vector<8x1xf32> to vector<8x16xf32>
    %179 = arith.subf %175, %178 : vector<8x16xf32>
    %180 = math.exp %179 : vector<8x16xf32>
    %cst_86 = arith.constant dense<0.000000e+00> : vector<8xf32>
    %181 = vector.multi_reduction <add>, %180, %cst_86 [1] : vector<8x16xf32> to vector<8xf32>
    %182 = vector.shape_cast %181 : vector<8xf32> to vector<8x1xf32>
    %183 = vector.broadcast %182 : vector<8x1xf32> to vector<8x16xf32>
    %184 = arith.divf %180, %183 : vector<8x16xf32>
    %185 = vector.extract_strided_slice %153 {offsets = [0, 8], sizes = [16, 8], strides = [1, 1]} : vector<16x32xf32> to vector<16x8xf32>
    %cst_87 = arith.constant dense<0.000000e+00> : vector<8x8xf32>
    %186 = tpu.matmul %184, %185, %cst_87 {dimension_numbers = #tpu.dot_dimension_numbers<[1], [0], [0], [1], [0, 0, 1, 1], [], []>} : vector<8x16xf32>, vector<16x8xf32>, vector<8x8xf32> -> vector<8x8xf32>
    %c0_88 = arith.constant 0 : index
    %c8_89 = arith.constant 8 : index
    %c0_90 = arith.constant 0 : index
    %187 = vector.load %arg9[%c0_88, %c8_89, %c0_90] : memref<2x32x32xf32, #tpu.memory_space<vmem>>, vector<1x8x32xf32>
    %188 = vector.shape_cast %187 : vector<1x8x32xf32> to vector<8x32xf32>
    %cst_91 = arith.constant dense<0.000000e+00> : vector<8x32xf32>
    %189 = tpu.matmul %186, %188, %cst_91 {dimension_numbers = #tpu.dot_dimension_numbers<[1], [0], [0], [1], [0, 0, 1, 1], [], []>} : vector<8x8xf32>, vector<8x32xf32>, vector<8x32xf32> -> vector<8x32xf32>
    %190 = arith.addf %171, %189 : vector<8x32xf32>
    %191 = vector.extract_strided_slice %140 {offsets = [0, 16], sizes = [8, 8], strides = [1, 1]} : vector<8x32xf32> to vector<8x8xf32>
    %192 = vector.extract_strided_slice %148 {offsets = [0, 16], sizes = [16, 8], strides = [1, 1]} : vector<16x32xf32> to vector<16x8xf32>
    %cst_92 = arith.constant dense<0.000000e+00> : vector<8x16xf32>
    %193 = tpu.matmul %191, %192, %cst_92 {dimension_numbers = #tpu.dot_dimension_numbers<[1], [1], [0], [0], [0, 0, 1, 0], [], []>} : vector<8x8xf32>, vector<16x8xf32>, vector<8x16xf32> -> vector<8x16xf32>
    %194 = arith.addf %193, %5 : vector<8x16xf32>
    %cst_93 = arith.constant dense<0xFF800000> : vector<8xf32>
    %195 = vector.multi_reduction <maximumf>, %194, %cst_93 [1] : vector<8x16xf32> to vector<8xf32>
    %196 = vector.shape_cast %195 : vector<8xf32> to vector<8x1xf32>
    %197 = vector.broadcast %196 : vector<8x1xf32> to vector<8x16xf32>
    %198 = arith.subf %194, %197 : vector<8x16xf32>
    %199 = math.exp %198 : vector<8x16xf32>
    %cst_94 = arith.constant dense<0.000000e+00> : vector<8xf32>
    %200 = vector.multi_reduction <add>, %199, %cst_94 [1] : vector<8x16xf32> to vector<8xf32>
    %201 = vector.shape_cast %200 : vector<8xf32> to vector<8x1xf32>
    %202 = vector.broadcast %201 : vector<8x1xf32> to vector<8x16xf32>
    %203 = arith.divf %199, %202 : vector<8x16xf32>
    %204 = vector.extract_strided_slice %153 {offsets = [0, 16], sizes = [16, 8], strides = [1, 1]} : vector<16x32xf32> to vector<16x8xf32>
    %cst_95 = arith.constant dense<0.000000e+00> : vector<8x8xf32>
    %205 = tpu.matmul %203, %204, %cst_95 {dimension_numbers = #tpu.dot_dimension_numbers<[1], [0], [0], [1], [0, 0, 1, 1], [], []>} : vector<8x16xf32>, vector<16x8xf32>, vector<8x8xf32> -> vector<8x8xf32>
    %c0_96 = arith.constant 0 : index
    %c16_97 = arith.constant 16 : index
    %c0_98 = arith.constant 0 : index
    %206 = vector.load %arg9[%c0_96, %c16_97, %c0_98] : memref<2x32x32xf32, #tpu.memory_space<vmem>>, vector<1x8x32xf32>
    %207 = vector.shape_cast %206 : vector<1x8x32xf32> to vector<8x32xf32>
    %cst_99 = arith.constant dense<0.000000e+00> : vector<8x32xf32>
    %208 = tpu.matmul %205, %207, %cst_99 {dimension_numbers = #tpu.dot_dimension_numbers<[1], [0], [0], [1], [0, 0, 1, 1], [], []>} : vector<8x8xf32>, vector<8x32xf32>, vector<8x32xf32> -> vector<8x32xf32>
    %209 = arith.addf %190, %208 : vector<8x32xf32>
    %210 = vector.extract_strided_slice %140 {offsets = [0, 24], sizes = [8, 8], strides = [1, 1]} : vector<8x32xf32> to vector<8x8xf32>
    %211 = vector.extract_strided_slice %148 {offsets = [0, 24], sizes = [16, 8], strides = [1, 1]} : vector<16x32xf32> to vector<16x8xf32>
    %cst_100 = arith.constant dense<0.000000e+00> : vector<8x16xf32>
    %212 = tpu.matmul %210, %211, %cst_100 {dimension_numbers = #tpu.dot_dimension_numbers<[1], [1], [0], [0], [0, 0, 1, 0], [], []>} : vector<8x8xf32>, vector<16x8xf32>, vector<8x16xf32> -> vector<8x16xf32>
    %213 = arith.addf %212, %5 : vector<8x16xf32>
    %cst_101 = arith.constant dense<0xFF800000> : vector<8xf32>
    %214 = vector.multi_reduction <maximumf>, %213, %cst_101 [1] : vector<8x16xf32> to vector<8xf32>
    %215 = vector.shape_cast %214 : vector<8xf32> to vector<8x1xf32>
    %216 = vector.broadcast %215 : vector<8x1xf32> to vector<8x16xf32>
    %217 = arith.subf %213, %216 : vector<8x16xf32>
    %218 = math.exp %217 : vector<8x16xf32>
    %cst_102 = arith.constant dense<0.000000e+00> : vector<8xf32>
    %219 = vector.multi_reduction <add>, %218, %cst_102 [1] : vector<8x16xf32> to vector<8xf32>
    %220 = vector.shape_cast %219 : vector<8xf32> to vector<8x1xf32>
    %221 = vector.broadcast %220 : vector<8x1xf32> to vector<8x16xf32>
    %222 = arith.divf %218, %221 : vector<8x16xf32>
    %223 = vector.extract_strided_slice %153 {offsets = [0, 24], sizes = [16, 8], strides = [1, 1]} : vector<16x32xf32> to vector<16x8xf32>
    %cst_103 = arith.constant dense<0.000000e+00> : vector<8x8xf32>
    %224 = tpu.matmul %222, %223, %cst_103 {dimension_numbers = #tpu.dot_dimension_numbers<[1], [0], [0], [1], [0, 0, 1, 1], [], []>} : vector<8x16xf32>, vector<16x8xf32>, vector<8x8xf32> -> vector<8x8xf32>
    %c0_104 = arith.constant 0 : index
    %c24_105 = arith.constant 24 : index
    %c0_106 = arith.constant 0 : index
    %225 = vector.load %arg9[%c0_104, %c24_105, %c0_106] : memref<2x32x32xf32, #tpu.memory_space<vmem>>, vector<1x8x32xf32>
    %226 = vector.shape_cast %225 : vector<1x8x32xf32> to vector<8x32xf32>
    %cst_107 = arith.constant dense<0.000000e+00> : vector<8x32xf32>
    %227 = tpu.matmul %224, %226, %cst_107 {dimension_numbers = #tpu.dot_dimension_numbers<[1], [0], [0], [1], [0, 0, 1, 1], [], []>} : vector<8x8xf32>, vector<8x32xf32>, vector<8x32xf32> -> vector<8x32xf32>
    %228 = arith.addf %209, %227 : vector<8x32xf32>
    %229 = arith.addf %131, %228 : vector<8x32xf32>
    %c0_108 = arith.constant 0 : index
    %c7 = arith.constant 7 : index
    %c0_109 = arith.constant 0 : index
    %230 = vector.load %arg12[%c0_108, %c7, %c0_109] : memref<2x15x32xf32, #tpu.memory_space<vmem>>, vector<1x1x32xf32>
    %231 = vector.shape_cast %230 : vector<1x1x32xf32> to vector<1x32xf32>
    %232 = vector.broadcast %231 : vector<1x32xf32> to vector<8x32xf32>
    %233 = arith.addf %229, %232 : vector<8x32xf32>
    %c0_110 = arith.constant 0 : index
    %c10 = arith.constant 10 : index
    %c0_111 = arith.constant 0 : index
    %234 = vector.load %arg12[%c0_110, %c10, %c0_111] : memref<2x15x32xf32, #tpu.memory_space<vmem>>, vector<1x1x32xf32>
    %235 = vector.shape_cast %234 : vector<1x1x32xf32> to vector<1x32xf32>
    %c0_112 = arith.constant 0 : index
    %c11 = arith.constant 11 : index
    %c0_113 = arith.constant 0 : index
    %236 = vector.load %arg12[%c0_112, %c11, %c0_113] : memref<2x15x32xf32, #tpu.memory_space<vmem>>, vector<1x1x32xf32>
    %237 = vector.shape_cast %236 : vector<1x1x32xf32> to vector<1x32xf32>
    %cst_114 = arith.constant dense<0.000000e+00> : vector<8xf32>
    %238 = vector.multi_reduction <add>, %233, %cst_114 [1] : vector<8x32xf32> to vector<8xf32>
    %239 = vector.shape_cast %238 : vector<8xf32> to vector<8x1xf32>
    %cst_115 = arith.constant 3.200000e+01 : f32
    %240 = vector.broadcast %cst_115 : f32 to vector<8x1xf32>
    %241 = arith.divf %239, %240 : vector<8x1xf32>
    %242 = vector.broadcast %241 : vector<8x1xf32> to vector<8x32xf32>
    %243 = arith.subf %233, %242 : vector<8x32xf32>
    %244 = arith.mulf %243, %243 : vector<8x32xf32>
    %cst_116 = arith.constant dense<0.000000e+00> : vector<8xf32>
    %245 = vector.multi_reduction <add>, %244, %cst_116 [1] : vector<8x32xf32> to vector<8xf32>
    %246 = vector.shape_cast %245 : vector<8xf32> to vector<8x1xf32>
    %cst_117 = arith.constant 3.200000e+01 : f32
    %247 = vector.broadcast %cst_117 : f32 to vector<8x1xf32>
    %248 = arith.divf %246, %247 : vector<8x1xf32>
    %249 = vector.broadcast %241 : vector<8x1xf32> to vector<8x32xf32>
    %250 = arith.subf %233, %249 : vector<8x32xf32>
    %cst_118 = arith.constant 9.99999974E-6 : f32
    %251 = vector.broadcast %cst_118 : f32 to vector<8x1xf32>
    %252 = arith.addf %248, %251 : vector<8x1xf32>
    %253 = math.rsqrt %252 : vector<8x1xf32>
    %254 = vector.broadcast %253 : vector<8x1xf32> to vector<8x32xf32>
    %255 = arith.mulf %250, %254 : vector<8x32xf32>
    %256 = vector.broadcast %235 : vector<1x32xf32> to vector<8x32xf32>
    %257 = arith.mulf %255, %256 : vector<8x32xf32>
    %258 = vector.broadcast %237 : vector<1x32xf32> to vector<8x32xf32>
    %259 = arith.addf %257, %258 : vector<8x32xf32>
    %c0_119 = arith.constant 0 : index
    %c0_120 = arith.constant 0 : index
    %c0_121 = arith.constant 0 : index
    %260 = vector.load %arg10[%c0_119, %c0_120, %c0_121] : memref<2x32x64xf32, #tpu.memory_space<vmem>>, vector<1x32x64xf32>
    %261 = vector.shape_cast %260 : vector<1x32x64xf32> to vector<32x64xf32>
    %cst_122 = arith.constant dense<0.000000e+00> : vector<8x64xf32>
    %262 = tpu.matmul %259, %261, %cst_122 {dimension_numbers = #tpu.dot_dimension_numbers<[1], [0], [0], [1], [0, 0, 1, 1], [], []>} : vector<8x32xf32>, vector<32x64xf32>, vector<8x64xf32> -> vector<8x64xf32>
    %c0_123 = arith.constant 0 : index
    %c0_124 = arith.constant 0 : index
    %c0_125 = arith.constant 0 : index
    %263 = vector.load %arg13[%c0_123, %c0_124, %c0_125] : memref<2x1x64xf32, #tpu.memory_space<vmem>>, vector<1x1x64xf32>
    %264 = vector.shape_cast %263 : vector<1x1x64xf32> to vector<1x64xf32>
    %265 = vector.broadcast %264 : vector<1x64xf32> to vector<8x64xf32>
    %266 = arith.addf %262, %265 : vector<8x64xf32>
    %cst_126 = arith.constant 0.000000e+00 : f32
    %267 = vector.broadcast %cst_126 : f32 to vector<8x64xf32>
    %268 = arith.maximumf %266, %267 : vector<8x64xf32>
    %c0_127 = arith.constant 0 : index
    %c0_128 = arith.constant 0 : index
    %c0_129 = arith.constant 0 : index
    %269 = vector.load %arg11[%c0_127, %c0_128, %c0_129] : memref<2x64x32xf32, #tpu.memory_space<vmem>>, vector<1x64x32xf32>
    %270 = vector.shape_cast %269 : vector<1x64x32xf32> to vector<64x32xf32>
    %cst_130 = arith.constant dense<0.000000e+00> : vector<8x32xf32>
    %271 = tpu.matmul %268, %270, %cst_130 {dimension_numbers = #tpu.dot_dimension_numbers<[1], [0], [0], [1], [0, 0, 1, 1], [], []>} : vector<8x64xf32>, vector<64x32xf32>, vector<8x32xf32> -> vector<8x32xf32>
    %c0_131 = arith.constant 0 : index
    %c14 = arith.constant 14 : index
    %c0_132 = arith.constant 0 : index
    %272 = vector.load %arg12[%c0_131, %c14, %c0_132] : memref<2x15x32xf32, #tpu.memory_space<vmem>>, vector<1x1x32xf32>
    %273 = vector.shape_cast %272 : vector<1x1x32xf32> to vector<1x32xf32>
    %274 = vector.broadcast %273 : vector<1x32xf32> to vector<8x32xf32>
    %275 = arith.addf %271, %274 : vector<8x32xf32>
    %276 = arith.addf %259, %275 : vector<8x32xf32>
    %c0_133 = arith.constant 0 : index
    %c12 = arith.constant 12 : index
    %c0_134 = arith.constant 0 : index
    %277 = vector.load %arg12[%c0_133, %c12, %c0_134] : memref<2x15x32xf32, #tpu.memory_space<vmem>>, vector<1x1x32xf32>
    %278 = vector.shape_cast %277 : vector<1x1x32xf32> to vector<1x32xf32>
    %c0_135 = arith.constant 0 : index
    %c13 = arith.constant 13 : index
    %c0_136 = arith.constant 0 : index
    %279 = vector.load %arg12[%c0_135, %c13, %c0_136] : memref<2x15x32xf32, #tpu.memory_space<vmem>>, vector<1x1x32xf32>
    %280 = vector.shape_cast %279 : vector<1x1x32xf32> to vector<1x32xf32>
    %cst_137 = arith.constant dense<0.000000e+00> : vector<8xf32>
    %281 = vector.multi_reduction <add>, %276, %cst_137 [1] : vector<8x32xf32> to vector<8xf32>
    %282 = vector.shape_cast %281 : vector<8xf32> to vector<8x1xf32>
    %cst_138 = arith.constant 3.200000e+01 : f32
    %283 = vector.broadcast %cst_138 : f32 to vector<8x1xf32>
    %284 = arith.divf %282, %283 : vector<8x1xf32>
    %285 = vector.broadcast %284 : vector<8x1xf32> to vector<8x32xf32>
    %286 = arith.subf %276, %285 : vector<8x32xf32>
    %287 = arith.mulf %286, %286 : vector<8x32xf32>
    %cst_139 = arith.constant dense<0.000000e+00> : vector<8xf32>
    %288 = vector.multi_reduction <add>, %287, %cst_139 [1] : vector<8x32xf32> to vector<8xf32>
    %289 = vector.shape_cast %288 : vector<8xf32> to vector<8x1xf32>
    %cst_140 = arith.constant 3.200000e+01 : f32
    %290 = vector.broadcast %cst_140 : f32 to vector<8x1xf32>
    %291 = arith.divf %289, %290 : vector<8x1xf32>
    %292 = vector.broadcast %284 : vector<8x1xf32> to vector<8x32xf32>
    %293 = arith.subf %276, %292 : vector<8x32xf32>
    %cst_141 = arith.constant 9.99999974E-6 : f32
    %294 = vector.broadcast %cst_141 : f32 to vector<8x1xf32>
    %295 = arith.addf %291, %294 : vector<8x1xf32>
    %296 = math.rsqrt %295 : vector<8x1xf32>
    %297 = vector.broadcast %296 : vector<8x1xf32> to vector<8x32xf32>
    %298 = arith.mulf %293, %297 : vector<8x32xf32>
    %299 = vector.broadcast %278 : vector<1x32xf32> to vector<8x32xf32>
    %300 = arith.mulf %298, %299 : vector<8x32xf32>
    %301 = vector.broadcast %280 : vector<1x32xf32> to vector<8x32xf32>
    %302 = arith.addf %300, %301 : vector<8x32xf32>
    %c1_142 = arith.constant 1 : index
    %c0_143 = arith.constant 0 : index
    %c0_144 = arith.constant 0 : index
    %303 = vector.load %arg5[%c1_142, %c0_143, %c0_144] : memref<2x32x96xf32, #tpu.memory_space<vmem>>, vector<1x32x96xf32>
    %304 = vector.shape_cast %303 : vector<1x32x96xf32> to vector<32x96xf32>
    %cst_145 = arith.constant dense<0.000000e+00> : vector<8x96xf32>
    %305 = tpu.matmul %302, %304, %cst_145 {dimension_numbers = #tpu.dot_dimension_numbers<[1], [0], [0], [1], [0, 0, 1, 1], [], []>} : vector<8x32xf32>, vector<32x96xf32>, vector<8x96xf32> -> vector<8x96xf32>
    %306 = vector.extract_strided_slice %305 {offsets = [0, 0], sizes = [8, 32], strides = [1, 1]} : vector<8x96xf32> to vector<8x32xf32>
    %c1_146 = arith.constant 1 : index
    %c0_147 = arith.constant 0 : index
    %c0_148 = arith.constant 0 : index
    %307 = vector.load %arg12[%c1_146, %c0_147, %c0_148] : memref<2x15x32xf32, #tpu.memory_space<vmem>>, vector<1x1x32xf32>
    %308 = vector.shape_cast %307 : vector<1x1x32xf32> to vector<1x32xf32>
    %309 = vector.broadcast %308 : vector<1x32xf32> to vector<8x32xf32>
    %310 = arith.addf %306, %309 : vector<8x32xf32>
    %cst_149 = arith.constant 0.353553385 : f32
    %311 = vector.broadcast %cst_149 : f32 to vector<8x32xf32>
    %312 = arith.mulf %310, %311 : vector<8x32xf32>
    %313 = vector.extract_strided_slice %305 {offsets = [0, 32], sizes = [8, 32], strides = [1, 1]} : vector<8x96xf32> to vector<8x32xf32>
    %c1_150 = arith.constant 1 : index
    %c1_151 = arith.constant 1 : index
    %c0_152 = arith.constant 0 : index
    %314 = vector.load %arg12[%c1_150, %c1_151, %c0_152] : memref<2x15x32xf32, #tpu.memory_space<vmem>>, vector<1x1x32xf32>
    %315 = vector.shape_cast %314 : vector<1x1x32xf32> to vector<1x32xf32>
    %316 = vector.broadcast %315 : vector<1x32xf32> to vector<8x32xf32>
    %317 = arith.addf %313, %316 : vector<8x32xf32>
    %318 = vector.extract_strided_slice %305 {offsets = [0, 64], sizes = [8, 32], strides = [1, 1]} : vector<8x96xf32> to vector<8x32xf32>
    %c1_153 = arith.constant 1 : index
    %c2_154 = arith.constant 2 : index
    %c0_155 = arith.constant 0 : index
    %319 = vector.load %arg12[%c1_153, %c2_154, %c0_155] : memref<2x15x32xf32, #tpu.memory_space<vmem>>, vector<1x1x32xf32>
    %320 = vector.shape_cast %319 : vector<1x1x32xf32> to vector<1x32xf32>
    %321 = vector.broadcast %320 : vector<1x32xf32> to vector<8x32xf32>
    %322 = arith.addf %318, %321 : vector<8x32xf32>
    %323 = vector.extract_strided_slice %312 {offsets = [0, 0], sizes = [8, 8], strides = [1, 1]} : vector<8x32xf32> to vector<8x8xf32>
    %324 = vector.extract_strided_slice %317 {offsets = [0, 0], sizes = [8, 8], strides = [1, 1]} : vector<8x32xf32> to vector<8x8xf32>
    %cst_156 = arith.constant dense<0.000000e+00> : vector<8x8xf32>
    %325 = tpu.matmul %323, %324, %cst_156 {dimension_numbers = #tpu.dot_dimension_numbers<[1], [1], [0], [0], [0, 0, 1, 0], [], []>} : vector<8x8xf32>, vector<8x8xf32>, vector<8x8xf32> -> vector<8x8xf32>
    %326 = arith.addf %325, %4 : vector<8x8xf32>
    %cst_157 = arith.constant dense<0xFF800000> : vector<8xf32>
    %327 = vector.multi_reduction <maximumf>, %326, %cst_157 [1] : vector<8x8xf32> to vector<8xf32>
    %328 = vector.shape_cast %327 : vector<8xf32> to vector<8x1xf32>
    %329 = vector.broadcast %328 : vector<8x1xf32> to vector<8x8xf32>
    %330 = arith.subf %326, %329 : vector<8x8xf32>
    %331 = math.exp %330 : vector<8x8xf32>
    %cst_158 = arith.constant dense<0.000000e+00> : vector<8xf32>
    %332 = vector.multi_reduction <add>, %331, %cst_158 [1] : vector<8x8xf32> to vector<8xf32>
    %333 = vector.shape_cast %332 : vector<8xf32> to vector<8x1xf32>
    %334 = vector.broadcast %333 : vector<8x1xf32> to vector<8x8xf32>
    %335 = arith.divf %331, %334 : vector<8x8xf32>
    %336 = vector.extract_strided_slice %322 {offsets = [0, 0], sizes = [8, 8], strides = [1, 1]} : vector<8x32xf32> to vector<8x8xf32>
    %cst_159 = arith.constant dense<0.000000e+00> : vector<8x8xf32>
    %337 = tpu.matmul %335, %336, %cst_159 {dimension_numbers = #tpu.dot_dimension_numbers<[1], [0], [0], [1], [0, 0, 1, 1], [], []>} : vector<8x8xf32>, vector<8x8xf32>, vector<8x8xf32> -> vector<8x8xf32>
    %c1_160 = arith.constant 1 : index
    %c0_161 = arith.constant 0 : index
    %c0_162 = arith.constant 0 : index
    %338 = vector.load %arg6[%c1_160, %c0_161, %c0_162] : memref<2x32x32xf32, #tpu.memory_space<vmem>>, vector<1x8x32xf32>
    %339 = vector.shape_cast %338 : vector<1x8x32xf32> to vector<8x32xf32>
    %cst_163 = arith.constant dense<0.000000e+00> : vector<8x32xf32>
    %340 = tpu.matmul %337, %339, %cst_163 {dimension_numbers = #tpu.dot_dimension_numbers<[1], [0], [0], [1], [0, 0, 1, 1], [], []>} : vector<8x8xf32>, vector<8x32xf32>, vector<8x32xf32> -> vector<8x32xf32>
    %341 = vector.extract_strided_slice %312 {offsets = [0, 8], sizes = [8, 8], strides = [1, 1]} : vector<8x32xf32> to vector<8x8xf32>
    %342 = vector.extract_strided_slice %317 {offsets = [0, 8], sizes = [8, 8], strides = [1, 1]} : vector<8x32xf32> to vector<8x8xf32>
    %cst_164 = arith.constant dense<0.000000e+00> : vector<8x8xf32>
    %343 = tpu.matmul %341, %342, %cst_164 {dimension_numbers = #tpu.dot_dimension_numbers<[1], [1], [0], [0], [0, 0, 1, 0], [], []>} : vector<8x8xf32>, vector<8x8xf32>, vector<8x8xf32> -> vector<8x8xf32>
    %344 = arith.addf %343, %4 : vector<8x8xf32>
    %cst_165 = arith.constant dense<0xFF800000> : vector<8xf32>
    %345 = vector.multi_reduction <maximumf>, %344, %cst_165 [1] : vector<8x8xf32> to vector<8xf32>
    %346 = vector.shape_cast %345 : vector<8xf32> to vector<8x1xf32>
    %347 = vector.broadcast %346 : vector<8x1xf32> to vector<8x8xf32>
    %348 = arith.subf %344, %347 : vector<8x8xf32>
    %349 = math.exp %348 : vector<8x8xf32>
    %cst_166 = arith.constant dense<0.000000e+00> : vector<8xf32>
    %350 = vector.multi_reduction <add>, %349, %cst_166 [1] : vector<8x8xf32> to vector<8xf32>
    %351 = vector.shape_cast %350 : vector<8xf32> to vector<8x1xf32>
    %352 = vector.broadcast %351 : vector<8x1xf32> to vector<8x8xf32>
    %353 = arith.divf %349, %352 : vector<8x8xf32>
    %354 = vector.extract_strided_slice %322 {offsets = [0, 8], sizes = [8, 8], strides = [1, 1]} : vector<8x32xf32> to vector<8x8xf32>
    %cst_167 = arith.constant dense<0.000000e+00> : vector<8x8xf32>
    %355 = tpu.matmul %353, %354, %cst_167 {dimension_numbers = #tpu.dot_dimension_numbers<[1], [0], [0], [1], [0, 0, 1, 1], [], []>} : vector<8x8xf32>, vector<8x8xf32>, vector<8x8xf32> -> vector<8x8xf32>
    %c1_168 = arith.constant 1 : index
    %c8_169 = arith.constant 8 : index
    %c0_170 = arith.constant 0 : index
    %356 = vector.load %arg6[%c1_168, %c8_169, %c0_170] : memref<2x32x32xf32, #tpu.memory_space<vmem>>, vector<1x8x32xf32>
    %357 = vector.shape_cast %356 : vector<1x8x32xf32> to vector<8x32xf32>
    %cst_171 = arith.constant dense<0.000000e+00> : vector<8x32xf32>
    %358 = tpu.matmul %355, %357, %cst_171 {dimension_numbers = #tpu.dot_dimension_numbers<[1], [0], [0], [1], [0, 0, 1, 1], [], []>} : vector<8x8xf32>, vector<8x32xf32>, vector<8x32xf32> -> vector<8x32xf32>
    %359 = arith.addf %340, %358 : vector<8x32xf32>
    %360 = vector.extract_strided_slice %312 {offsets = [0, 16], sizes = [8, 8], strides = [1, 1]} : vector<8x32xf32> to vector<8x8xf32>
    %361 = vector.extract_strided_slice %317 {offsets = [0, 16], sizes = [8, 8], strides = [1, 1]} : vector<8x32xf32> to vector<8x8xf32>
    %cst_172 = arith.constant dense<0.000000e+00> : vector<8x8xf32>
    %362 = tpu.matmul %360, %361, %cst_172 {dimension_numbers = #tpu.dot_dimension_numbers<[1], [1], [0], [0], [0, 0, 1, 0], [], []>} : vector<8x8xf32>, vector<8x8xf32>, vector<8x8xf32> -> vector<8x8xf32>
    %363 = arith.addf %362, %4 : vector<8x8xf32>
    %cst_173 = arith.constant dense<0xFF800000> : vector<8xf32>
    %364 = vector.multi_reduction <maximumf>, %363, %cst_173 [1] : vector<8x8xf32> to vector<8xf32>
    %365 = vector.shape_cast %364 : vector<8xf32> to vector<8x1xf32>
    %366 = vector.broadcast %365 : vector<8x1xf32> to vector<8x8xf32>
    %367 = arith.subf %363, %366 : vector<8x8xf32>
    %368 = math.exp %367 : vector<8x8xf32>
    %cst_174 = arith.constant dense<0.000000e+00> : vector<8xf32>
    %369 = vector.multi_reduction <add>, %368, %cst_174 [1] : vector<8x8xf32> to vector<8xf32>
    %370 = vector.shape_cast %369 : vector<8xf32> to vector<8x1xf32>
    %371 = vector.broadcast %370 : vector<8x1xf32> to vector<8x8xf32>
    %372 = arith.divf %368, %371 : vector<8x8xf32>
    %373 = vector.extract_strided_slice %322 {offsets = [0, 16], sizes = [8, 8], strides = [1, 1]} : vector<8x32xf32> to vector<8x8xf32>
    %cst_175 = arith.constant dense<0.000000e+00> : vector<8x8xf32>
    %374 = tpu.matmul %372, %373, %cst_175 {dimension_numbers = #tpu.dot_dimension_numbers<[1], [0], [0], [1], [0, 0, 1, 1], [], []>} : vector<8x8xf32>, vector<8x8xf32>, vector<8x8xf32> -> vector<8x8xf32>
    %c1_176 = arith.constant 1 : index
    %c16_177 = arith.constant 16 : index
    %c0_178 = arith.constant 0 : index
    %375 = vector.load %arg6[%c1_176, %c16_177, %c0_178] : memref<2x32x32xf32, #tpu.memory_space<vmem>>, vector<1x8x32xf32>
    %376 = vector.shape_cast %375 : vector<1x8x32xf32> to vector<8x32xf32>
    %cst_179 = arith.constant dense<0.000000e+00> : vector<8x32xf32>
    %377 = tpu.matmul %374, %376, %cst_179 {dimension_numbers = #tpu.dot_dimension_numbers<[1], [0], [0], [1], [0, 0, 1, 1], [], []>} : vector<8x8xf32>, vector<8x32xf32>, vector<8x32xf32> -> vector<8x32xf32>
    %378 = arith.addf %359, %377 : vector<8x32xf32>
    %379 = vector.extract_strided_slice %312 {offsets = [0, 24], sizes = [8, 8], strides = [1, 1]} : vector<8x32xf32> to vector<8x8xf32>
    %380 = vector.extract_strided_slice %317 {offsets = [0, 24], sizes = [8, 8], strides = [1, 1]} : vector<8x32xf32> to vector<8x8xf32>
    %cst_180 = arith.constant dense<0.000000e+00> : vector<8x8xf32>
    %381 = tpu.matmul %379, %380, %cst_180 {dimension_numbers = #tpu.dot_dimension_numbers<[1], [1], [0], [0], [0, 0, 1, 0], [], []>} : vector<8x8xf32>, vector<8x8xf32>, vector<8x8xf32> -> vector<8x8xf32>
    %382 = arith.addf %381, %4 : vector<8x8xf32>
    %cst_181 = arith.constant dense<0xFF800000> : vector<8xf32>
    %383 = vector.multi_reduction <maximumf>, %382, %cst_181 [1] : vector<8x8xf32> to vector<8xf32>
    %384 = vector.shape_cast %383 : vector<8xf32> to vector<8x1xf32>
    %385 = vector.broadcast %384 : vector<8x1xf32> to vector<8x8xf32>
    %386 = arith.subf %382, %385 : vector<8x8xf32>
    %387 = math.exp %386 : vector<8x8xf32>
    %cst_182 = arith.constant dense<0.000000e+00> : vector<8xf32>
    %388 = vector.multi_reduction <add>, %387, %cst_182 [1] : vector<8x8xf32> to vector<8xf32>
    %389 = vector.shape_cast %388 : vector<8xf32> to vector<8x1xf32>
    %390 = vector.broadcast %389 : vector<8x1xf32> to vector<8x8xf32>
    %391 = arith.divf %387, %390 : vector<8x8xf32>
    %392 = vector.extract_strided_slice %322 {offsets = [0, 24], sizes = [8, 8], strides = [1, 1]} : vector<8x32xf32> to vector<8x8xf32>
    %cst_183 = arith.constant dense<0.000000e+00> : vector<8x8xf32>
    %393 = tpu.matmul %391, %392, %cst_183 {dimension_numbers = #tpu.dot_dimension_numbers<[1], [0], [0], [1], [0, 0, 1, 1], [], []>} : vector<8x8xf32>, vector<8x8xf32>, vector<8x8xf32> -> vector<8x8xf32>
    %c1_184 = arith.constant 1 : index
    %c24_185 = arith.constant 24 : index
    %c0_186 = arith.constant 0 : index
    %394 = vector.load %arg6[%c1_184, %c24_185, %c0_186] : memref<2x32x32xf32, #tpu.memory_space<vmem>>, vector<1x8x32xf32>
    %395 = vector.shape_cast %394 : vector<1x8x32xf32> to vector<8x32xf32>
    %cst_187 = arith.constant dense<0.000000e+00> : vector<8x32xf32>
    %396 = tpu.matmul %393, %395, %cst_187 {dimension_numbers = #tpu.dot_dimension_numbers<[1], [0], [0], [1], [0, 0, 1, 1], [], []>} : vector<8x8xf32>, vector<8x32xf32>, vector<8x32xf32> -> vector<8x32xf32>
    %397 = arith.addf %378, %396 : vector<8x32xf32>
    %398 = arith.addf %302, %397 : vector<8x32xf32>
    %c1_188 = arith.constant 1 : index
    %c3_189 = arith.constant 3 : index
    %c0_190 = arith.constant 0 : index
    %399 = vector.load %arg12[%c1_188, %c3_189, %c0_190] : memref<2x15x32xf32, #tpu.memory_space<vmem>>, vector<1x1x32xf32>
    %400 = vector.shape_cast %399 : vector<1x1x32xf32> to vector<1x32xf32>
    %401 = vector.broadcast %400 : vector<1x32xf32> to vector<8x32xf32>
    %402 = arith.addf %398, %401 : vector<8x32xf32>
    %c1_191 = arith.constant 1 : index
    %c8_192 = arith.constant 8 : index
    %c0_193 = arith.constant 0 : index
    %403 = vector.load %arg12[%c1_191, %c8_192, %c0_193] : memref<2x15x32xf32, #tpu.memory_space<vmem>>, vector<1x1x32xf32>
    %404 = vector.shape_cast %403 : vector<1x1x32xf32> to vector<1x32xf32>
    %c1_194 = arith.constant 1 : index
    %c9_195 = arith.constant 9 : index
    %c0_196 = arith.constant 0 : index
    %405 = vector.load %arg12[%c1_194, %c9_195, %c0_196] : memref<2x15x32xf32, #tpu.memory_space<vmem>>, vector<1x1x32xf32>
    %406 = vector.shape_cast %405 : vector<1x1x32xf32> to vector<1x32xf32>
    %cst_197 = arith.constant dense<0.000000e+00> : vector<8xf32>
    %407 = vector.multi_reduction <add>, %402, %cst_197 [1] : vector<8x32xf32> to vector<8xf32>
    %408 = vector.shape_cast %407 : vector<8xf32> to vector<8x1xf32>
    %cst_198 = arith.constant 3.200000e+01 : f32
    %409 = vector.broadcast %cst_198 : f32 to vector<8x1xf32>
    %410 = arith.divf %408, %409 : vector<8x1xf32>
    %411 = vector.broadcast %410 : vector<8x1xf32> to vector<8x32xf32>
    %412 = arith.subf %402, %411 : vector<8x32xf32>
    %413 = arith.mulf %412, %412 : vector<8x32xf32>
    %cst_199 = arith.constant dense<0.000000e+00> : vector<8xf32>
    %414 = vector.multi_reduction <add>, %413, %cst_199 [1] : vector<8x32xf32> to vector<8xf32>
    %415 = vector.shape_cast %414 : vector<8xf32> to vector<8x1xf32>
    %cst_200 = arith.constant 3.200000e+01 : f32
    %416 = vector.broadcast %cst_200 : f32 to vector<8x1xf32>
    %417 = arith.divf %415, %416 : vector<8x1xf32>
    %418 = vector.broadcast %410 : vector<8x1xf32> to vector<8x32xf32>
    %419 = arith.subf %402, %418 : vector<8x32xf32>
    %cst_201 = arith.constant 9.99999974E-6 : f32
    %420 = vector.broadcast %cst_201 : f32 to vector<8x1xf32>
    %421 = arith.addf %417, %420 : vector<8x1xf32>
    %422 = math.rsqrt %421 : vector<8x1xf32>
    %423 = vector.broadcast %422 : vector<8x1xf32> to vector<8x32xf32>
    %424 = arith.mulf %419, %423 : vector<8x32xf32>
    %425 = vector.broadcast %404 : vector<1x32xf32> to vector<8x32xf32>
    %426 = arith.mulf %424, %425 : vector<8x32xf32>
    %427 = vector.broadcast %406 : vector<1x32xf32> to vector<8x32xf32>
    %428 = arith.addf %426, %427 : vector<8x32xf32>
    %c1_202 = arith.constant 1 : index
    %c0_203 = arith.constant 0 : index
    %c0_204 = arith.constant 0 : index
    %429 = vector.load %arg7[%c1_202, %c0_203, %c0_204] : memref<2x32x32xf32, #tpu.memory_space<vmem>>, vector<1x32x32xf32>
    %430 = vector.shape_cast %429 : vector<1x32x32xf32> to vector<32x32xf32>
    %cst_205 = arith.constant dense<0.000000e+00> : vector<8x32xf32>
    %431 = tpu.matmul %428, %430, %cst_205 {dimension_numbers = #tpu.dot_dimension_numbers<[1], [0], [0], [1], [0, 0, 1, 1], [], []>} : vector<8x32xf32>, vector<32x32xf32>, vector<8x32xf32> -> vector<8x32xf32>
    %c1_206 = arith.constant 1 : index
    %c4_207 = arith.constant 4 : index
    %c0_208 = arith.constant 0 : index
    %432 = vector.load %arg12[%c1_206, %c4_207, %c0_208] : memref<2x15x32xf32, #tpu.memory_space<vmem>>, vector<1x1x32xf32>
    %433 = vector.shape_cast %432 : vector<1x1x32xf32> to vector<1x32xf32>
    %434 = vector.broadcast %433 : vector<1x32xf32> to vector<8x32xf32>
    %435 = arith.addf %431, %434 : vector<8x32xf32>
    %cst_209 = arith.constant 0.353553385 : f32
    %436 = vector.broadcast %cst_209 : f32 to vector<8x32xf32>
    %437 = arith.mulf %435, %436 : vector<8x32xf32>
    %c1_210 = arith.constant 1 : index
    %c0_211 = arith.constant 0 : index
    %c0_212 = arith.constant 0 : index
    %438 = vector.load %arg8[%c1_210, %c0_211, %c0_212] : memref<2x32x64xf32, #tpu.memory_space<vmem>>, vector<1x32x32xf32>
    %439 = vector.shape_cast %438 : vector<1x32x32xf32> to vector<32x32xf32>
    %cst_213 = arith.constant dense<0.000000e+00> : vector<16x32xf32>
    %440 = tpu.matmul %3, %439, %cst_213 {dimension_numbers = #tpu.dot_dimension_numbers<[1], [0], [0], [1], [0, 0, 1, 1], [], []>} : vector<16x32xf32>, vector<32x32xf32>, vector<16x32xf32> -> vector<16x32xf32>
    %c1_214 = arith.constant 1 : index
    %c5_215 = arith.constant 5 : index
    %c0_216 = arith.constant 0 : index
    %441 = vector.load %arg12[%c1_214, %c5_215, %c0_216] : memref<2x15x32xf32, #tpu.memory_space<vmem>>, vector<1x1x32xf32>
    %442 = vector.shape_cast %441 : vector<1x1x32xf32> to vector<1x32xf32>
    %443 = vector.broadcast %442 : vector<1x32xf32> to vector<16x32xf32>
    %444 = arith.addf %440, %443 : vector<16x32xf32>
    %445 = vector.extract_strided_slice %437 {offsets = [0, 0], sizes = [8, 8], strides = [1, 1]} : vector<8x32xf32> to vector<8x8xf32>
    %446 = vector.extract_strided_slice %444 {offsets = [0, 0], sizes = [16, 8], strides = [1, 1]} : vector<16x32xf32> to vector<16x8xf32>
    %cst_217 = arith.constant dense<0.000000e+00> : vector<8x16xf32>
    %447 = tpu.matmul %445, %446, %cst_217 {dimension_numbers = #tpu.dot_dimension_numbers<[1], [1], [0], [0], [0, 0, 1, 0], [], []>} : vector<8x8xf32>, vector<16x8xf32>, vector<8x16xf32> -> vector<8x16xf32>
    %448 = arith.addf %447, %5 : vector<8x16xf32>
    %cst_218 = arith.constant dense<0xFF800000> : vector<8xf32>
    %449 = vector.multi_reduction <maximumf>, %448, %cst_218 [1] : vector<8x16xf32> to vector<8xf32>
    %450 = vector.shape_cast %449 : vector<8xf32> to vector<8x1xf32>
    %451 = vector.broadcast %450 : vector<8x1xf32> to vector<8x16xf32>
    %452 = arith.subf %448, %451 : vector<8x16xf32>
    %453 = math.exp %452 : vector<8x16xf32>
    %cst_219 = arith.constant dense<0.000000e+00> : vector<8xf32>
    %454 = vector.multi_reduction <add>, %453, %cst_219 [1] : vector<8x16xf32> to vector<8xf32>
    %455 = vector.shape_cast %454 : vector<8xf32> to vector<8x1xf32>
    %456 = vector.broadcast %455 : vector<8x1xf32> to vector<8x16xf32>
    %457 = arith.divf %453, %456 : vector<8x16xf32>
    %458 = vector.extract_strided_slice %437 {offsets = [0, 8], sizes = [8, 8], strides = [1, 1]} : vector<8x32xf32> to vector<8x8xf32>
    %459 = vector.extract_strided_slice %444 {offsets = [0, 8], sizes = [16, 8], strides = [1, 1]} : vector<16x32xf32> to vector<16x8xf32>
    %cst_220 = arith.constant dense<0.000000e+00> : vector<8x16xf32>
    %460 = tpu.matmul %458, %459, %cst_220 {dimension_numbers = #tpu.dot_dimension_numbers<[1], [1], [0], [0], [0, 0, 1, 0], [], []>} : vector<8x8xf32>, vector<16x8xf32>, vector<8x16xf32> -> vector<8x16xf32>
    %461 = arith.addf %460, %5 : vector<8x16xf32>
    %cst_221 = arith.constant dense<0xFF800000> : vector<8xf32>
    %462 = vector.multi_reduction <maximumf>, %461, %cst_221 [1] : vector<8x16xf32> to vector<8xf32>
    %463 = vector.shape_cast %462 : vector<8xf32> to vector<8x1xf32>
    %464 = vector.broadcast %463 : vector<8x1xf32> to vector<8x16xf32>
    %465 = arith.subf %461, %464 : vector<8x16xf32>
    %466 = math.exp %465 : vector<8x16xf32>
    %cst_222 = arith.constant dense<0.000000e+00> : vector<8xf32>
    %467 = vector.multi_reduction <add>, %466, %cst_222 [1] : vector<8x16xf32> to vector<8xf32>
    %468 = vector.shape_cast %467 : vector<8xf32> to vector<8x1xf32>
    %469 = vector.broadcast %468 : vector<8x1xf32> to vector<8x16xf32>
    %470 = arith.divf %466, %469 : vector<8x16xf32>
    %471 = arith.addf %457, %470 : vector<8x16xf32>
    %472 = vector.extract_strided_slice %437 {offsets = [0, 16], sizes = [8, 8], strides = [1, 1]} : vector<8x32xf32> to vector<8x8xf32>
    %473 = vector.extract_strided_slice %444 {offsets = [0, 16], sizes = [16, 8], strides = [1, 1]} : vector<16x32xf32> to vector<16x8xf32>
    %cst_223 = arith.constant dense<0.000000e+00> : vector<8x16xf32>
    %474 = tpu.matmul %472, %473, %cst_223 {dimension_numbers = #tpu.dot_dimension_numbers<[1], [1], [0], [0], [0, 0, 1, 0], [], []>} : vector<8x8xf32>, vector<16x8xf32>, vector<8x16xf32> -> vector<8x16xf32>
    %475 = arith.addf %474, %5 : vector<8x16xf32>
    %cst_224 = arith.constant dense<0xFF800000> : vector<8xf32>
    %476 = vector.multi_reduction <maximumf>, %475, %cst_224 [1] : vector<8x16xf32> to vector<8xf32>
    %477 = vector.shape_cast %476 : vector<8xf32> to vector<8x1xf32>
    %478 = vector.broadcast %477 : vector<8x1xf32> to vector<8x16xf32>
    %479 = arith.subf %475, %478 : vector<8x16xf32>
    %480 = math.exp %479 : vector<8x16xf32>
    %cst_225 = arith.constant dense<0.000000e+00> : vector<8xf32>
    %481 = vector.multi_reduction <add>, %480, %cst_225 [1] : vector<8x16xf32> to vector<8xf32>
    %482 = vector.shape_cast %481 : vector<8xf32> to vector<8x1xf32>
    %483 = vector.broadcast %482 : vector<8x1xf32> to vector<8x16xf32>
    %484 = arith.divf %480, %483 : vector<8x16xf32>
    %485 = arith.addf %471, %484 : vector<8x16xf32>
    %486 = vector.extract_strided_slice %437 {offsets = [0, 24], sizes = [8, 8], strides = [1, 1]} : vector<8x32xf32> to vector<8x8xf32>
    %487 = vector.extract_strided_slice %444 {offsets = [0, 24], sizes = [16, 8], strides = [1, 1]} : vector<16x32xf32> to vector<16x8xf32>
    %cst_226 = arith.constant dense<0.000000e+00> : vector<8x16xf32>
    %488 = tpu.matmul %486, %487, %cst_226 {dimension_numbers = #tpu.dot_dimension_numbers<[1], [1], [0], [0], [0, 0, 1, 0], [], []>} : vector<8x8xf32>, vector<16x8xf32>, vector<8x16xf32> -> vector<8x16xf32>
    %489 = arith.addf %488, %5 : vector<8x16xf32>
    %cst_227 = arith.constant dense<0xFF800000> : vector<8xf32>
    %490 = vector.multi_reduction <maximumf>, %489, %cst_227 [1] : vector<8x16xf32> to vector<8xf32>
    %491 = vector.shape_cast %490 : vector<8xf32> to vector<8x1xf32>
    %492 = vector.broadcast %491 : vector<8x1xf32> to vector<8x16xf32>
    %493 = arith.subf %489, %492 : vector<8x16xf32>
    %494 = math.exp %493 : vector<8x16xf32>
    %cst_228 = arith.constant dense<0.000000e+00> : vector<8xf32>
    %495 = vector.multi_reduction <add>, %494, %cst_228 [1] : vector<8x16xf32> to vector<8xf32>
    %496 = vector.shape_cast %495 : vector<8xf32> to vector<8x1xf32>
    %497 = vector.broadcast %496 : vector<8x1xf32> to vector<8x16xf32>
    %498 = arith.divf %494, %497 : vector<8x16xf32>
    %499 = arith.addf %485, %498 : vector<8x16xf32>
    %cst_229 = arith.constant 2.500000e-01 : f32
    %500 = vector.broadcast %cst_229 : f32 to vector<8x16xf32>
    %501 = arith.mulf %499, %500 : vector<8x16xf32>
    %502 = tpu.iota {dimensions = array<i32: 0>} : vector<16x18xi32>
    %503 = tpu.iota {dimensions = array<i32: 1>} : vector<16x18xi32>
    %c2_i32 = arith.constant 2 : i32
    %504 = vector.broadcast %c2_i32 : i32 to vector<16x18xi32>
    %505 = arith.addi %502, %504 : vector<16x18xi32>
    %506 = arith.cmpi eq, %503, %505 : vector<16x18xi32>
    %507 = arith.extui %506 : vector<16x18xi1> to vector<16x18xi32>
    %508 = arith.sitofp %507 : vector<16x18xi32> to vector<16x18xf32>
    %cst_230 = arith.constant dense<0.000000e+00> : vector<8x18xf32>
    %509 = tpu.matmul %501, %508, %cst_230 {dimension_numbers = #tpu.dot_dimension_numbers<[1], [0], [0], [1], [0, 0, 1, 1], [], []>} : vector<8x16xf32>, vector<16x18xf32>, vector<8x18xf32> -> vector<8x18xf32>
    %c0_231 = arith.constant 0 : index
    %c0_232 = arith.constant 0 : index
    %c0_233 = arith.constant 0 : index
    %510 = vector.load %arg14[%c0_231, %c0_232, %c0_233] : memref<1x8x18xf32, #tpu.memory_space<vmem>>, vector<1x8x18xf32>
    %511 = vector.shape_cast %510 : vector<1x8x18xf32> to vector<8x18xf32>
    %512 = vector.shape_cast %509 : vector<8x18xf32> to vector<1x8x18xf32>
    tpu.vector_store %arg14[%c0_231, %c0_232, %c0_233], %512 {strides = array<i32>} : memref<1x8x18xf32, #tpu.memory_space<vmem>>, vector<1x8x18xf32>,
    return
  }
  func.func @transform_0(%arg0: i32) -> (i32, i32, i32) {
    %c0_i32 = arith.constant 0 : i32
    %c0_i32_0 = arith.constant 0 : i32
    %c0_i32_1 = arith.constant 0 : i32
    return %arg0, %c0_i32, %c0_i32_0 : i32, i32, i32
  }
  func.func @transform_1(%arg0: i32) -> (i32, i32, i32) {
    %c0_i32 = arith.constant 0 : i32
    %c0_i32_0 = arith.constant 0 : i32
    %c0_i32_1 = arith.constant 0 : i32
    return %arg0, %c0_i32, %c0_i32_0 : i32, i32, i32
  }
  func.func @transform_2(%arg0: i32) -> (i32, i32) {
    %c0_i32 = arith.constant 0 : i32
    %c0_i32_0 = arith.constant 0 : i32
    %c0_i32_1 = arith.constant 0 : i32
    return %c0_i32, %c0_i32_0 : i32, i32
  }
  func.func @transform_3(%arg0: i32) -> (i32, i32) {
    %c0_i32 = arith.constant 0 : i32
    %c0_i32_0 = arith.constant 0 : i32
    %c0_i32_1 = arith.constant 0 : i32
    return %c0_i32, %c0_i32_0 : i32, i32
  }
  func.func @transform_4(%arg0: i32) -> (i32, i32, i32) {
    %c0_i32 = arith.constant 0 : i32
    %c0_i32_0 = arith.constant 0 : i32
    %c0_i32_1 = arith.constant 0 : i32
    %c0_i32_2 = arith.constant 0 : i32
    return %c0_i32, %c0_i32_0, %c0_i32_1 : i32, i32, i32
  }
  func.func @transform_5(%arg0: i32) -> (i32, i32, i32) {
    %c0_i32 = arith.constant 0 : i32
    %c0_i32_0 = arith.constant 0 : i32
    %c0_i32_1 = arith.constant 0 : i32
    %c0_i32_2 = arith.constant 0 : i32
    return %c0_i32, %c0_i32_0, %c0_i32_1 : i32, i32, i32
  }
  func.func @transform_6(%arg0: i32) -> (i32, i32, i32) {
    %c0_i32 = arith.constant 0 : i32
    %c0_i32_0 = arith.constant 0 : i32
    %c0_i32_1 = arith.constant 0 : i32
    %c0_i32_2 = arith.constant 0 : i32
    return %c0_i32, %c0_i32_0, %c0_i32_1 : i32, i32, i32
  }
  func.func @transform_7(%arg0: i32) -> (i32, i32, i32) {
    %c0_i32 = arith.constant 0 : i32
    %c0_i32_0 = arith.constant 0 : i32
    %c0_i32_1 = arith.constant 0 : i32
    %c0_i32_2 = arith.constant 0 : i32
    return %c0_i32, %c0_i32_0, %c0_i32_1 : i32, i32, i32
  }
  func.func @transform_8(%arg0: i32) -> (i32, i32, i32) {
    %c0_i32 = arith.constant 0 : i32
    %c0_i32_0 = arith.constant 0 : i32
    %c0_i32_1 = arith.constant 0 : i32
    %c0_i32_2 = arith.constant 0 : i32
    return %c0_i32, %c0_i32_0, %c0_i32_1 : i32, i32, i32
  }
  func.func @transform_9(%arg0: i32) -> (i32, i32, i32) {
    %c0_i32 = arith.constant 0 : i32
    %c0_i32_0 = arith.constant 0 : i32
    %c0_i32_1 = arith.constant 0 : i32
    %c0_i32_2 = arith.constant 0 : i32
    return %c0_i32, %c0_i32_0, %c0_i32_1 : i32, i32, i32
  }
  func.func @transform_10(%arg0: i32) -> (i32, i32, i32) {
    %c0_i32 = arith.constant 0 : i32
    %c0_i32_0 = arith.constant 0 : i32
    %c0_i32_1 = arith.constant 0 : i32
    %c0_i32_2 = arith.constant 0 : i32
    return %c0_i32, %c0_i32_0, %c0_i32_1 : i32, i32, i32
  }
  func.func @transform_11(%arg0: i32) -> (i32, i32, i32) {
    %c0_i32 = arith.constant 0 : i32
    %c0_i32_0 = arith.constant 0 : i32
    %c0_i32_1 = arith.constant 0 : i32
    %c0_i32_2 = arith.constant 0 : i32
    return %c0_i32, %c0_i32_0, %c0_i32_1 : i32, i32, i32
  }
  func.func @transform_12(%arg0: i32) -> (i32, i32, i32) {
    %c0_i32 = arith.constant 0 : i32
    %c0_i32_0 = arith.constant 0 : i32
    %c0_i32_1 = arith.constant 0 : i32
    %c0_i32_2 = arith.constant 0 : i32
    return %c0_i32, %c0_i32_0, %c0_i32_1 : i32, i32, i32
  }
  func.func @transform_13(%arg0: i32) -> (i32, i32, i32) {
    %c0_i32 = arith.constant 0 : i32
    %c0_i32_0 = arith.constant 0 : i32
    %c0_i32_1 = arith.constant 0 : i32
    return %arg0, %c0_i32, %c0_i32_0 : i32, i32, i32
  }
}

</mosaic_0001>

<llo_original>
// kernel: tpu_custom_call.1
$region0: #{tpu_custom_call.1}
  #allocation0 [shape = 'u32[]', space=smem, size = 0x4, offset = 0x4, fixed_abs, tag = 'smem constant byte address 0x4 - core index']
  #allocation1 [shape = 'u32[144,128]{1,0:T(1,128)}', space=vmem, size = 0x12000, scoped, tag = 'internal scratch']
  %s0 = inlined_call_operand.hbm [shape: f32[2,8,32], index: 0, kind: input, shape index: {}]
  %s1 = inlined_call_operand.vmem [shape: f32[2,16,32], index: 1, kind: input, shape index: {}]
  %s2 = inlined_call_operand.hbm [shape: f32[8,8], index: 2, kind: input, shape index: {}]
  %s3 = inlined_call_operand.hbm [shape: f32[8,16], index: 3, kind: input, shape index: {}]
  %s4 = inlined_call_operand.vmem [shape: f32[2,32,96], index: 4, kind: input, shape index: {}]
  %s5 = inlined_call_operand.vmem [shape: f32[2,32,32], index: 5, kind: input, shape index: {}]
  %s6 = inlined_call_operand.vmem [shape: f32[2,32,32], index: 6, kind: input, shape index: {}]
  %s7 = inlined_call_operand.hbm [shape: f32[2,32,64], index: 7, kind: input, shape index: {}]
  %s8 = inlined_call_operand.hbm [shape: f32[2,32,32], index: 8, kind: input, shape index: {}]
  %s9 = inlined_call_operand.hbm [shape: f32[2,32,64], index: 9, kind: input, shape index: {}]
  %s10 = inlined_call_operand.vmem [shape: f32[2,64,32], index: 10, kind: input, shape index: {}]
  %s11 = inlined_call_operand.vmem [shape: f32[2,15,32], index: 11, kind: input, shape index: {}]
  %s12 = inlined_call_operand.vmem [shape: f32[2,1,64], index: 12, kind: input, shape index: {}]
  %s13 = inlined_call_operand.hbm [shape: f32[2,8,18], index: 13, kind: output, shape index: {}]
  %s14 = sld [smem:[#allocation0]]
  $region109: #{tpu_custom_call.1} parent=0
    _
  %s16 = ssub.s32 1, %s14
  %s17 = scalar_select 0, %s16, %s14
  $region1: #{tpu_custom_call.1} parent=0
    #allocation2 [shape = 'u8[8192]{0}', space=vmem, size = 0x2000, scoped, tag = 'input window, operand 0']
    #allocation3 [shape = 's32[2]{0}', space=sflag, size = 0x8, scoped, tag = 'scoped memory for tpu_custom_call.1']
    #allocation4 [shape = 's32[2]{0}', space=sflag, size = 0x8, scoped, tag = 'scoped memory for tpu_custom_call.1']
    #allocation5 [shape = 'u8[4096]{0}', space=vmem, size = 0x1000, scoped, tag = 'input window, operand 2, single buffered']
    #allocation6 [shape = 's32[1]{0}', space=sflag, size = 0x4, scoped, tag = 'scoped memory for tpu_custom_call.1']
    #allocation7 [shape = 'u8[4096]{0}', space=vmem, size = 0x1000, scoped, tag = 'input window, operand 3, single buffered']
    #allocation8 [shape = 'u8[32768]{0}', space=vmem, size = 0x8000, scoped, tag = 'input window, operand 7, single buffered']
    #allocation9 [shape = 's32[1]{0}', space=sflag, size = 0x4, scoped, tag = 'scoped memory for tpu_custom_call.1']
    #allocation10 [shape = 'u8[32768]{0}', space=vmem, size = 0x8000, scoped, tag = 'input window, operand 8, single buffered']
    #allocation11 [shape = 'u8[32768]{0}', space=vmem, size = 0x8000, scoped, tag = 'input window, operand 9, single buffered']
    #allocation12 [shape = 's32[1]{0}', space=sflag, size = 0x4, scoped, tag = 'scoped memory for tpu_custom_call.1']
    #allocation13 [shape = 'u8[8192]{0}', space=vmem, size = 0x2000, scoped, tag = 'output window, operand 0']
    %18 = vsyncpa [#allocation3], 0
    %s19 = scalar_lea.sflag [#allocation3], 1
    %20 = vsyncpa %s19, 0
    %21 = vsyncpa [#allocation6], 0
    %22 = vsyncpa [#allocation9], 0
    %23 = vsyncpa [#allocation12], 0
    %24 = vsyncpa [#allocation4], 0
    %s25 = scalar_lea.sflag [#allocation4], 1
    %26 = vsyncpa %s25, 0
    loop: start=0, step=1, limit=4
    $region2: #{tpu_custom_call.1} parent=1 // loop_pre_header
      _
    $region3: #{tpu_custom_call.1} parent=1 // loop_header
      %s28 = sphi 0, %s32
      %p29 = scmp.ge.s32.totalorder %s28, 4
      %s38 = sphi 0, %s40
      %s41 = sphi 0, %s38
      %s42 = sphi 0, %s41
      %s58 = sphi 0, %s42
      %s64 = sphi 0, %s66
      %s67 = sphi 0, %s64
      %s68 = sphi 0, %s67
      %s84 = sphi 0, %s68
      %s88 = sphi 0, %s88
      %s90 = sphi 0, %s88
      %s91 = sphi 0, %s90
      %s105 = sphi 0, %s91
      %s109 = sphi 0, %s109
      %s111 = sphi 0, %s109
      %s112 = sphi 0, %s111
      %s126 = sphi 0, %s112
      %s130 = sphi 0, %s130
      %s132 = sphi 0, %s130
      %s133 = sphi 0, %s132
      %s147 = sphi 0, %s133
      %s151 = sphi 0, %s151
      %s153 = sphi 0, %s151
      %s154 = sphi 0, %s153
      %s168 = sphi 0, %s154
      %s172 = sphi 0, %s172
      %s174 = sphi 0, %s172
      %s175 = sphi 0, %s174
      %s189 = sphi 0, %s175
      %s193 = sphi 0, %s193
      %s195 = sphi 0, %s193
      %s196 = sphi 0, %s195
      %s210 = sphi 0, %s196
      %s214 = sphi 0, %s214
      %s216 = sphi 0, %s214
      %s217 = sphi 0, %s216
      %s231 = sphi 0, %s217
      %s235 = sphi 0, %s235
      %s237 = sphi 0, %s235
      %s238 = sphi 0, %s237
      %s252 = sphi 0, %s238
      %s256 = sphi 0, %s256
      %s258 = sphi 0, %s256
      %s259 = sphi 0, %s258
      %s273 = sphi 0, %s259
      %s277 = sphi 0, %s277
      %s279 = sphi 0, %s277
      %s280 = sphi 0, %s279
      %s294 = sphi 0, %s280
      %s298 = sphi 0, %s298
      %s300 = sphi 0, %s298
      %s301 = sphi 0, %s300
      %s315 = sphi 0, %s301
      %s321 = sphi 0, %s323
      %s324 = sphi 0, %s321
      %s325 = sphi 0, %s324
      %s341 = sphi 0, %s325
    $region4: #{tpu_custom_call.1} parent=1 // loop_header_branch
      %31 = sbr.rel (%p29) target = $region8
    $region5: #{tpu_custom_call.1} parent=1 // loop_body
      %s33 = ssub.s32 %s28, 1
      %s34 = ssub.s32 %s28, 2
      %s35 = sadd.s32 %s28, 1
      %s36 = ssub.s32 %s28, %s35
      %p37 = scmp.eq.s32.totalorder %s36, 0
      %s39 = sadd.s32 %s38, 1
      %s40 = scalar_select %p37, %s38, %s39
      %p43 = pneg %p37
      %p44 = scmp.eq.s32.totalorder %s28, 1
      %p45 = por %p43, %p44
      %p46 = scmp.ne.s32.totalorder %s38, %s41
      %p47 = scmp.eq.s32.totalorder %s28, 0
      %p48 = por %p46, %p47
      %p49 = scmp.ne.s32.totalorder %s38, %s41
      %p50 = scmp.eq.s32.totalorder %s33, 1
      %p51 = por %p49, %p50
      %p52 = scmp.ne.s32.totalorder %s41, %s42
      %p53 = scmp.eq.s32.totalorder %s33, 0
      %p54 = por %p52, %p53
      %p55 = scmp.ne.s32.totalorder %s41, %s42
      %p56 = scmp.eq.s32.totalorder %s34, 1
      %p57 = por %p55, %p56
      %p59 = scmp.ne.s32.totalorder %s42, %s58
      %p60 = scmp.eq.s32.totalorder %s34, 0
      %p61 = por %p59, %p60
      %s62 = ssub.s32 %s28, %s35
      %p63 = scmp.eq.s32.totalorder %s62, 0
      %s65 = sadd.s32 %s64, 1
      %s66 = scalar_select %p63, %s64, %s65
      %p69 = pneg %p63
      %p70 = scmp.eq.s32.totalorder %s28, 1
      %p71 = por %p69, %p70
      %p72 = scmp.ne.s32.totalorder %s64, %s67
      %p73 = scmp.eq.s32.totalorder %s28, 0
      %p74 = por %p72, %p73
      %p75 = scmp.ne.s32.totalorder %s64, %s67
      %p76 = scmp.eq.s32.totalorder %s33, 1
      %p77 = por %p75, %p76
      %p78 = scmp.ne.s32.totalorder %s67, %s68
      %p79 = scmp.eq.s32.totalorder %s33, 0
      %p80 = por %p78, %p79
      %p81 = scmp.ne.s32.totalorder %s67, %s68
      %p82 = scmp.eq.s32.totalorder %s34, 1
      %p83 = por %p81, %p82
      %p85 = scmp.ne.s32.totalorder %s68, %s84
      %p86 = scmp.eq.s32.totalorder %s34, 0
      %p87 = por %p85, %p86
      %s89 = sadd.s32 %s88, 1
      %p92 = scmp.eq.s32.totalorder %s28, 1
      %p93 = scmp.ne.s32.totalorder %s88, %s90
      %p94 = scmp.eq.s32.totalorder %s28, 0
      %p95 = por %p93, %p94
      %p96 = scmp.ne.s32.totalorder %s88, %s90
      %p97 = scmp.eq.s32.totalorder %s33, 1
      %p98 = por %p96, %p97
      %p99 = scmp.ne.s32.totalorder %s90, %s91
      %p100 = scmp.eq.s32.totalorder %s33, 0
      %p101 = por %p99, %p100
      %p102 = scmp.ne.s32.totalorder %s90, %s91
      %p103 = scmp.eq.s32.totalorder %s34, 1
      %p104 = por %p102, %p103
      %p106 = scmp.ne.s32.totalorder %s91, %s105
      %p107 = scmp.eq.s32.totalorder %s34, 0
      %p108 = por %p106, %p107
      %s110 = sadd.s32 %s109, 1
      %p113 = scmp.eq.s32.totalorder %s28, 1
      %p114 = scmp.ne.s32.totalorder %s109, %s111
      %p115 = scmp.eq.s32.totalorder %s28, 0
      %p116 = por %p114, %p115
      %p117 = scmp.ne.s32.totalorder %s109, %s111
      %p118 = scmp.eq.s32.totalorder %s33, 1
      %p119 = por %p117, %p118
      %p120 = scmp.ne.s32.totalorder %s111, %s112
      %p121 = scmp.eq.s32.totalorder %s33, 0
      %p122 = por %p120, %p121
      %p123 = scmp.ne.s32.totalorder %s111, %s112
      %p124 = scmp.eq.s32.totalorder %s34, 1
      %p125 = por %p123, %p124
      %p127 = scmp.ne.s32.totalorder %s112, %s126
      %p128 = scmp.eq.s32.totalorder %s34, 0
      %p129 = por %p127, %p128
      %s131 = sadd.s32 %s130, 1
      %p134 = scmp.eq.s32.totalorder %s28, 1
      %p135 = scmp.ne.s32.totalorder %s130, %s132
      %p136 = scmp.eq.s32.totalorder %s28, 0
      %p137 = por %p135, %p136
      %p138 = scmp.ne.s32.totalorder %s130, %s132
      %p139 = scmp.eq.s32.totalorder %s33, 1
      %p140 = por %p138, %p139
      %p141 = scmp.ne.s32.totalorder %s132, %s133
      %p142 = scmp.eq.s32.totalorder %s33, 0
      %p143 = por %p141, %p142
      %p144 = scmp.ne.s32.totalorder %s132, %s133
      %p145 = scmp.eq.s32.totalorder %s34, 1
      %p146 = por %p144, %p145
      %p148 = scmp.ne.s32.totalorder %s133, %s147
      %p149 = scmp.eq.s32.totalorder %s34, 0
      %p150 = por %p148, %p149
      %s152 = sadd.s32 %s151, 1
      %p155 = scmp.eq.s32.totalorder %s28, 1
      %p156 = scmp.ne.s32.totalorder %s151, %s153
      %p157 = scmp.eq.s32.totalorder %s28, 0
      %p158 = por %p156, %p157
      %p159 = scmp.ne.s32.totalorder %s151, %s153
      %p160 = scmp.eq.s32.totalorder %s33, 1
      %p161 = por %p159, %p160
      %p162 = scmp.ne.s32.totalorder %s153, %s154
      %p163 = scmp.eq.s32.totalorder %s33, 0
      %p164 = por %p162, %p163
      %p165 = scmp.ne.s32.totalorder %s153, %s154
      %p166 = scmp.eq.s32.totalorder %s34, 1
      %p167 = por %p165, %p166
      %p169 = scmp.ne.s32.totalorder %s154, %s168
      %p170 = scmp.eq.s32.totalorder %s34, 0
      %p171 = por %p169, %p170
      %s173 = sadd.s32 %s172, 1
      %p176 = scmp.eq.s32.totalorder %s28, 1
      %p177 = scmp.ne.s32.totalorder %s172, %s174
      %p178 = scmp.eq.s32.totalorder %s28, 0
      %p179 = por %p177, %p178
      %p180 = scmp.ne.s32.totalorder %s172, %s174
      %p181 = scmp.eq.s32.totalorder %s33, 1
      %p182 = por %p180, %p181
      %p183 = scmp.ne.s32.totalorder %s174, %s175
      %p184 = scmp.eq.s32.totalorder %s33, 0
      %p185 = por %p183, %p184
      %p186 = scmp.ne.s32.totalorder %s174, %s175
      %p187 = scmp.eq.s32.totalorder %s34, 1
      %p188 = por %p186, %p187
      %p190 = scmp.ne.s32.totalorder %s175, %s189
      %p191 = scmp.eq.s32.totalorder %s34, 0
      %p192 = por %p190, %p191
      %s194 = sadd.s32 %s193, 1
      %p197 = scmp.eq.s32.totalorder %s28, 1
      %p198 = scmp.ne.s32.totalorder %s193, %s195
      %p199 = scmp.eq.s32.totalorder %s28, 0
      %p200 = por %p198, %p199
      %p201 = scmp.ne.s32.totalorder %s193, %s195
      %p202 = scmp.eq.s32.totalorder %s33, 1
      %p203 = por %p201, %p202
      %p204 = scmp.ne.s32.totalorder %s195, %s196
      %p205 = scmp.eq.s32.totalorder %s33, 0
      %p206 = por %p204, %p205
      %p207 = scmp.ne.s32.totalorder %s195, %s196
      %p208 = scmp.eq.s32.totalorder %s34, 1
      %p209 = por %p207, %p208
      %p211 = scmp.ne.s32.totalorder %s196, %s210
      %p212 = scmp.eq.s32.totalorder %s34, 0
      %p213 = por %p211, %p212
      %s215 = sadd.s32 %s214, 1
      %p218 = scmp.eq.s32.totalorder %s28, 1
      %p219 = scmp.ne.s32.totalorder %s214, %s216
      %p220 = scmp.eq.s32.totalorder %s28, 0
      %p221 = por %p219, %p220
      %p222 = scmp.ne.s32.totalorder %s214, %s216
      %p223 = scmp.eq.s32.totalorder %s33, 1
      %p224 = por %p222, %p223
      %p225 = scmp.ne.s32.totalorder %s216, %s217
      %p226 = scmp.eq.s32.totalorder %s33, 0
      %p227 = por %p225, %p226
      %p228 = scmp.ne.s32.totalorder %s216, %s217
      %p229 = scmp.eq.s32.totalorder %s34, 1
      %p230 = por %p228, %p229
      %p232 = scmp.ne.s32.totalorder %s217, %s231
      %p233 = scmp.eq.s32.totalorder %s34, 0
      %p234 = por %p232, %p233
      %s236 = sadd.s32 %s235, 1
      %p239 = scmp.eq.s32.totalorder %s28, 1
      %p240 = scmp.ne.s32.totalorder %s235, %s237
      %p241 = scmp.eq.s32.totalorder %s28, 0
      %p242 = por %p240, %p241
      %p243 = scmp.ne.s32.totalorder %s235, %s237
      %p244 = scmp.eq.s32.totalorder %s33, 1
      %p245 = por %p243, %p244
      %p246 = scmp.ne.s32.totalorder %s237, %s238
      %p247 = scmp.eq.s32.totalorder %s33, 0
      %p248 = por %p246, %p247
      %p249 = scmp.ne.s32.totalorder %s237, %s238
      %p250 = scmp.eq.s32.totalorder %s34, 1
      %p251 = por %p249, %p250
      %p253 = scmp.ne.s32.totalorder %s238, %s252
      %p254 = scmp.eq.s32.totalorder %s34, 0
      %p255 = por %p253, %p254
      %s257 = sadd.s32 %s256, 1
      %p260 = scmp.eq.s32.totalorder %s28, 1
      %p261 = scmp.ne.s32.totalorder %s256, %s258
      %p262 = scmp.eq.s32.totalorder %s28, 0
      %p263 = por %p261, %p262
      %p264 = scmp.ne.s32.totalorder %s256, %s258
      %p265 = scmp.eq.s32.totalorder %s33, 1
      %p266 = por %p264, %p265
      %p267 = scmp.ne.s32.totalorder %s258, %s259
      %p268 = scmp.eq.s32.totalorder %s33, 0
      %p269 = por %p267, %p268
      %p270 = scmp.ne.s32.totalorder %s258, %s259
      %p271 = scmp.eq.s32.totalorder %s34, 1
      %p272 = por %p270, %p271
      %p274 = scmp.ne.s32.totalorder %s259, %s273
      %p275 = scmp.eq.s32.totalorder %s34, 0
      %p276 = por %p274, %p275
      %s278 = sadd.s32 %s277, 1
      %p281 = scmp.eq.s32.totalorder %s28, 1
      %p282 = scmp.ne.s32.totalorder %s277, %s279
      %p283 = scmp.eq.s32.totalorder %s28, 0
      %p284 = por %p282, %p283
      %p285 = scmp.ne.s32.totalorder %s277, %s279
      %p286 = scmp.eq.s32.totalorder %s33, 1
      %p287 = por %p285, %p286
      %p288 = scmp.ne.s32.totalorder %s279, %s280
      %p289 = scmp.eq.s32.totalorder %s33, 0
      %p290 = por %p288, %p289
      %p291 = scmp.ne.s32.totalorder %s279, %s280
      %p292 = scmp.eq.s32.totalorder %s34, 1
      %p293 = por %p291, %p292
      %p295 = scmp.ne.s32.totalorder %s280, %s294
      %p296 = scmp.eq.s32.totalorder %s34, 0
      %p297 = por %p295, %p296
      %s299 = sadd.s32 %s298, 1
      %p302 = scmp.eq.s32.totalorder %s28, 1
      %p303 = scmp.ne.s32.totalorder %s298, %s300
      %p304 = scmp.eq.s32.totalorder %s28, 0
      %p305 = por %p303, %p304
      %p306 = scmp.ne.s32.totalorder %s298, %s300
      %p307 = scmp.eq.s32.totalorder %s33, 1
      %p308 = por %p306, %p307
      %p309 = scmp.ne.s32.totalorder %s300, %s301
      %p310 = scmp.eq.s32.totalorder %s33, 0
      %p311 = por %p309, %p310
      %p312 = scmp.ne.s32.totalorder %s300, %s301
      %p313 = scmp.eq.s32.totalorder %s34, 1
      %p314 = por %p312, %p313
      %p316 = scmp.ne.s32.totalorder %s301, %s315
      %p317 = scmp.eq.s32.totalorder %s34, 0
      %p318 = por %p316, %p317
      %s319 = ssub.s32 %s28, %s35
      %p320 = scmp.eq.s32.totalorder %s319, 0
      %s322 = sadd.s32 %s321, 1
      %s323 = scalar_select %p320, %s321, %s322
      %p326 = pneg %p320
      %p327 = scmp.eq.s32.totalorder %s28, 1
      %p328 = por %p326, %p327
      %p329 = scmp.ne.s32.totalorder %s321, %s324
      %p330 = scmp.eq.s32.totalorder %s28, 0
      %p331 = por %p329, %p330
      %p332 = scmp.ne.s32.totalorder %s321, %s324
      %p333 = scmp.eq.s32.totalorder %s33, 1
      %p334 = por %p332, %p333
      %p335 = scmp.ne.s32.totalorder %s324, %s325
      %p336 = scmp.eq.s32.totalorder %s33, 0
      %p337 = por %p335, %p336
      %p338 = scmp.ne.s32.totalorder %s324, %s325
      %p339 = scmp.eq.s32.totalorder %s34, 1
      %p340 = por %p338, %p339
      %p342 = scmp.ne.s32.totalorder %s325, %s341
      %p343 = scmp.eq.s32.totalorder %s34, 0
      %p344 = por %p342, %p343
      %p345 = scmp.le.s32.totalorder 1, %s28
      %p346 = scmp.lt.s32.totalorder %s28, 3
      %p347 = pnand %p345, %p346
      %p348 = pneg %p347
      // Predicated region
      $region9: #{tpu_custom_call.1} parent=5 // pred_check
        _
      $region10: #{tpu_custom_call.1} parent=5 // pred_check_branch
        %350 = sbr.rel (%p347) target = $region12
      $region11: #{tpu_custom_call.1} parent=5 // pred_region
        %s351 = ssub.s32 %s28, 1
        // Predicated region
        $region13: #{tpu_custom_call.1} parent=11 // pred_check
          %p352 = pneg %p101
        $region14: #{tpu_custom_call.1} parent=11 // pred_check_branch
          %354 = sbr.rel (%p352) target = $region16
        $region15: #{tpu_custom_call.1} parent=11 // pred_region
          %s356 = ssub.s32 128, 128
          %357 = vsyncadd [#allocation6], %s356
          %s359 = sshll.u32 [#allocation5], 4
          %s360 = int_to_ptr.vmem [resolvable:$true] %s359
          %362 = dma.hbm_to_vmem [thread:$0]  %s2, 128, %s360, [#allocation6]
        $region16: #{tpu_custom_call.1} parent=11 // pred_fallthru
          _
        // Predicated region
        $region17: #{tpu_custom_call.1} parent=11 // pred_check
          %p363 = pneg %p122
        $region18: #{tpu_custom_call.1} parent=11 // pred_check_branch
          %365 = sbr.rel (%p363) target = $region20
        $region19: #{tpu_custom_call.1} parent=11 // pred_region
          %s367 = ssub.s32 128, 128
          %368 = vsyncadd [#allocation6], %s367
          %s370 = sshll.u32 [#allocation7], 4
          %s371 = int_to_ptr.vmem [resolvable:$true] %s370
          %373 = dma.hbm_to_vmem [thread:$0]  %s3, 128, %s371, [#allocation6]
        $region20: #{tpu_custom_call.1} parent=11 // pred_fallthru
          _
        // Predicated region
        $region21: #{tpu_custom_call.1} parent=11 // pred_check
          %p374 = pneg %p143
        $region22: #{tpu_custom_call.1} parent=11 // pred_check_branch
          %376 = sbr.rel (%p374) target = $region24
        $region23: #{tpu_custom_call.1} parent=11 // pred_region
          _
        $region24: #{tpu_custom_call.1} parent=11 // pred_fallthru
          _
        // Predicated region
        $region25: #{tpu_custom_call.1} parent=11 // pred_check
          %p377 = pneg %p164
        $region26: #{tpu_custom_call.1} parent=11 // pred_check_branch
          %379 = sbr.rel (%p377) target = $region28
        $region27: #{tpu_custom_call.1} parent=11 // pred_region
          _
        $region28: #{tpu_custom_call.1} parent=11 // pred_fallthru
          _
        // Predicated region
        $region29: #{tpu_custom_call.1} parent=11 // pred_check
          %p380 = pneg %p185
        $region30: #{tpu_custom_call.1} parent=11 // pred_check_branch
          %382 = sbr.rel (%p380) target = $region32
        $region31: #{tpu_custom_call.1} parent=11 // pred_region
          _
        $region32: #{tpu_custom_call.1} parent=11 // pred_fallthru
          _
        // Predicated region
        $region33: #{tpu_custom_call.1} parent=11 // pred_check
          %p383 = pneg %p206
        $region34: #{tpu_custom_call.1} parent=11 // pred_check_branch
          %385 = sbr.rel (%p383) target = $region36
        $region35: #{tpu_custom_call.1} parent=11 // pred_region
          %s387 = ssub.s32 1024, 1024
          %388 = vsyncadd [#allocation9], %s387
          %s389 = sshll.u32 [#allocation8], 4
          %s390 = int_to_ptr.vmem [resolvable:$true] %s389
          %395 = dma.hbm_to_vmem [thread:$0]  %s7, 1024, %s390, [#allocation9], 128, 128, 8
        $region36: #{tpu_custom_call.1} parent=11 // pred_fallthru
          _
        // Predicated region
        $region37: #{tpu_custom_call.1} parent=11 // pred_check
          %p396 = pneg %p227
        $region38: #{tpu_custom_call.1} parent=11 // pred_check_branch
          %398 = sbr.rel (%p396) target = $region40
        $region39: #{tpu_custom_call.1} parent=11 // pred_region
          %s400 = ssub.s32 1024, 1024
          %401 = vsyncadd [#allocation9], %s400
          %s402 = sshll.u32 [#allocation10], 4
          %s403 = int_to_ptr.vmem [resolvable:$true] %s402
          %408 = dma.hbm_to_vmem [thread:$0]  %s8, 1024, %s403, [#allocation9], 128, 128, 8
        $region40: #{tpu_custom_call.1} parent=11 // pred_fallthru
          _
        // Predicated region
        $region41: #{tpu_custom_call.1} parent=11 // pred_check
          %p409 = pneg %p248
        $region42: #{tpu_custom_call.1} parent=11 // pred_check_branch
          %411 = sbr.rel (%p409) target = $region44
        $region43: #{tpu_custom_call.1} parent=11 // pred_region
          %s413 = ssub.s32 1024, 1024
          %414 = vsyncadd [#allocation12], %s413
          %s415 = sshll.u32 [#allocation11], 4
          %s416 = int_to_ptr.vmem [resolvable:$true] %s415
          %421 = dma.hbm_to_vmem [thread:$0]  %s9, 1024, %s416, [#allocation12], 128, 128, 8
        $region44: #{tpu_custom_call.1} parent=11 // pred_fallthru
          _
        // Predicated region
        $region45: #{tpu_custom_call.1} parent=11 // pred_check
          %p422 = pneg %p269
        $region46: #{tpu_custom_call.1} parent=11 // pred_check_branch
          %424 = sbr.rel (%p422) target = $region48
        $region47: #{tpu_custom_call.1} parent=11 // pred_region
          _
        $region48: #{tpu_custom_call.1} parent=11 // pred_fallthru
          _
        // Predicated region
        $region49: #{tpu_custom_call.1} parent=11 // pred_check
          %p425 = pneg %p290
        $region50: #{tpu_custom_call.1} parent=11 // pred_check_branch
          %427 = sbr.rel (%p425) target = $region52
        $region51: #{tpu_custom_call.1} parent=11 // pred_region
          _
        $region52: #{tpu_custom_call.1} parent=11 // pred_fallthru
          _
        // Predicated region
        $region53: #{tpu_custom_call.1} parent=11 // pred_check
          %p428 = pneg %p311
        $region54: #{tpu_custom_call.1} parent=11 // pred_check_branch
          %430 = sbr.rel (%p428) target = $region56
        $region55: #{tpu_custom_call.1} parent=11 // pred_region
          _
        $region56: #{tpu_custom_call.1} parent=11 // pred_fallthru
          _
      $region12: #{tpu_custom_call.1} parent=5 // pred_fallthru
        _
      %p431 = scmp.lt.s32.totalorder %s28, 2
      // Predicated region
      $region57: #{tpu_custom_call.1} parent=5 // pred_check
        %p432 = pneg %p431
      $region58: #{tpu_custom_call.1} parent=5 // pred_check_branch
        %434 = sbr.rel (%p432) target = $region60
      $region59: #{tpu_custom_call.1} parent=5 // pred_region
        // Predicated region
        $region61: #{tpu_custom_call.1} parent=59 // pred_check
          %p435 = pneg %p48
        $region62: #{tpu_custom_call.1} parent=59 // pred_check_branch
          %437 = sbr.rel (%p435) target = $region64
        $region63: #{tpu_custom_call.1} parent=59 // pred_region
          %s438 = sand.u32 %s38, 1
          %s439 = scalar_lea.sflag [#allocation3], %s438
          %s440 = sand.u32 %s38, 1
          %s441 = smul.addr %s440, 8
          %s442 = scalar_lea.vmem [#allocation2], %s441
          %s444 = ssub.s32 128, 128
          %445 = vsyncadd %s439, %s444
          %s446 = smul.addr %s28, 128
          %s447 = scalar_lea.hbm %s0, %s446
          %s449 = sshll.u32 %s442, 4
          %s450 = int_to_ptr.vmem [resolvable:$true] %s449
          %452 = dma.hbm_to_vmem [thread:$0]  %s447, 128, %s450, %s439
        $region64: #{tpu_custom_call.1} parent=59 // pred_fallthru
          _
        // Predicated region
        $region65: #{tpu_custom_call.1} parent=59 // pred_check
          %p453 = pneg %p74
        $region66: #{tpu_custom_call.1} parent=59 // pred_check_branch
          %455 = sbr.rel (%p453) target = $region68
        $region67: #{tpu_custom_call.1} parent=59 // pred_region
          %p456 = scmp.lt.s32.totalorder %s28, 1
          %s457 = scalar_select %p456, %s28, 1
          %s458 = smul.addr %s457, 2
          %s459 = smul.addr %s458, 8
          %s460 = scalar_lea.vmem %s1, %s459
        $region68: #{tpu_custom_call.1} parent=59 // pred_fallthru
          _
      $region60: #{tpu_custom_call.1} parent=5 // pred_fallthru
        _
      %p461 = scmp.le.s32.totalorder 1, %s28
      %p462 = scmp.lt.s32.totalorder %s28, 3
      %p463 = pnand %p461, %p462
      %p464 = pneg %p463
      // Predicated region
      $region69: #{tpu_custom_call.1} parent=5 // pred_check
        _
      $region70: #{tpu_custom_call.1} parent=5 // pred_check_branch
        %466 = sbr.rel (%p463) target = $region72
      $region71: #{tpu_custom_call.1} parent=5 // pred_region
        %s467 = ssub.s32 %s28, 1
        %s468 = sand.u32 %s41, 1
        %s469 = scalar_lea.sflag [#allocation3], %s468
        %s470 = sand.u32 %s41, 1
        %s471 = smul.addr %s470, 8
        %s472 = scalar_lea.vmem [#allocation2], %s471
        // Predicated region
        $region73: #{tpu_custom_call.1} parent=71 // pred_check
          %p473 = pneg %p54
        $region74: #{tpu_custom_call.1} parent=71 // pred_check_branch
          %475 = sbr.rel (%p473) target = $region76
        $region75: #{tpu_custom_call.1} parent=71 // pred_region
          %476 = dma.done %s469, 128
        $region76: #{tpu_custom_call.1} parent=71 // pred_fallthru
          _
        // Predicated region
        $region77: #{tpu_custom_call.1} parent=71 // pred_check
          %p477 = pneg %p101
        $region78: #{tpu_custom_call.1} parent=71 // pred_check_branch
          %479 = sbr.rel (%p477) target = $region80
        $region79: #{tpu_custom_call.1} parent=71 // pred_region
          %480 = dma.done [#allocation6], 128
        $region80: #{tpu_custom_call.1} parent=71 // pred_fallthru
          _
        // Predicated region
        $region81: #{tpu_custom_call.1} parent=71 // pred_check
          %p481 = pneg %p122
        $region82: #{tpu_custom_call.1} parent=71 // pred_check_branch
          %483 = sbr.rel (%p481) target = $region84
        $region83: #{tpu_custom_call.1} parent=71 // pred_region
          %484 = dma.done [#allocation6], 128
        $region84: #{tpu_custom_call.1} parent=71 // pred_fallthru
          _
        // Predicated region
        $region85: #{tpu_custom_call.1} parent=71 // pred_check
          %p485 = pneg %p206
        $region86: #{tpu_custom_call.1} parent=71 // pred_check_branch
          %487 = sbr.rel (%p485) target = $region88
        $region87: #{tpu_custom_call.1} parent=71 // pred_region
          %488 = dma.done [#allocation9], 1024
        $region88: #{tpu_custom_call.1} parent=71 // pred_fallthru
          _
        // Predicated region
        $region89: #{tpu_custom_call.1} parent=71 // pred_check
          %p489 = pneg %p227
        $region90: #{tpu_custom_call.1} parent=71 // pred_check_branch
          %491 = sbr.rel (%p489) target = $region92
        $region91: #{tpu_custom_call.1} parent=71 // pred_region
          %492 = dma.done [#allocation9], 1024
        $region92: #{tpu_custom_call.1} parent=71 // pred_fallthru
          _
        // Predicated region
        $region93: #{tpu_custom_call.1} parent=71 // pred_check
          %p493 = pneg %p248
        $region94: #{tpu_custom_call.1} parent=71 // pred_check_branch
          %495 = sbr.rel (%p493) target = $region96
        $region95: #{tpu_custom_call.1} parent=71 // pred_region
          %496 = dma.done [#allocation12], 1024
        $region96: #{tpu_custom_call.1} parent=71 // pred_fallthru
          _
        %s497 = sand.u32 %s41, 1
        %s498 = scalar_lea.sflag [#allocation3], %s497
        %s499 = sand.u32 %s41, 1
        %s500 = smul.addr %s499, 8
        %s501 = scalar_lea.vmem [#allocation2], %s500
        %p502 = pneg %p54
        %p503 = pneg %p51
        %p504 = scmp.lt.s32.totalorder %s33, 1
        %s505 = scalar_select %p504, %s33, 1
        %s506 = smul.addr %s505, 2
        %s507 = smul.addr %s506, 8
        %s508 = scalar_lea.vmem %s1, %s507
        %p509 = pneg %p80
        %p510 = pneg %p77
        %p511 = pneg %p101
        %p512 = pneg %p98
        %p513 = pneg %p122
        %p514 = pneg %p119
        %p515 = pneg %p143
        %p516 = pneg %p140
        %p517 = pneg %p164
        %p518 = pneg %p161
        %p519 = pneg %p185
        %p520 = pneg %p182
        %p521 = pneg %p206
        %p522 = pneg %p203
        %p523 = pneg %p227
        %p524 = pneg %p224
        %p525 = pneg %p248
        %p526 = pneg %p245
        %p527 = pneg %p269
        %p528 = pneg %p266
        %p529 = pneg %p290
        %p530 = pneg %p287
        %p531 = pneg %p311
        %p532 = pneg %p308
        %p533 = pneg %p337
        %p534 = pneg %p334
        %s535 = sand.u32 %s324, 1
        %s536 = scalar_lea.sflag [#allocation4], %s535
        %s537 = sand.u32 %s324, 1
        %s538 = smul.addr %s537, 8
        %s539 = scalar_lea.vmem [#allocation13], %s538
        %p540 = scmp.lt.s32.totalorder %s33, 1
        %s541 = scalar_select %p540, %s33, 1
        %s542 = smul.addr %s541, 2
        %s543 = smul.addr %s542, 8
        %s544 = scalar_lea.vmem %s1, %s543
        %v545 = vld [vmem:[%s472] sm:$0xff]
        %v546 = vld [vmem:[%s544] sm:$0xff]
        %v547 = vld [vmem:[%s544 + $0x8] sm:$0xff]
        %v548 = vld [vmem:[#allocation5] sm:$0xff]
        %v549 = vld [vmem:[#allocation7] sm:$0xff]
        %v550 = vld [vmem:[%s4] sm:$0xff]
        %v551 = vld [vmem:[%s4 + $0x8] sm:$0xff]
        %v552 = vld [vmem:[%s4 + $0x10] sm:$0xff]
        %v553 = vld [vmem:[%s4 + $0x18] sm:$0xff]
        %vm554 = vcmask 261120
        %v556 = vsel %vm554, %v545, 0
        %558 = vmatprep.subr.mxu0 0.0
        %559 = vmatpush1.msra.mxu0 %v550
        %560 = vmatprep.subr.mxu0 0.0
        %561 = vmatpush1.msra.mxu0 %v551
        %562 = vmatprep.subr.mxu0 0.0
        %563 = vmatpush1.msra.mxu0 %v552
        %564 = vmatprep.subr.mxu0 0.0
        %565 = vmatpush1.msra.mxu0 %v553
        %566 = vmatprep.subr.mxu0 0.0
        %567 = vmatpush1.msra.mxu0 0.0
        %568 = vmatprep.subr.mxu0 0.0
        %569 = vmatpush1.msra.mxu0 0.0
        %570 = vmatprep.subr.mxu0 0.0
        %571 = vmatpush1.msra.mxu0 0.0
        %572 = vmatprep.subr.mxu0 0.0
        %573 = vmatpush1.msra.mxu0 0.0
        %574 = vmatprep.subr.mxu0 0.0
        %575 = vmatpush1.msra.mxu0 0.0
        %576 = vmatprep.subr.mxu0 0.0
        %577 = vmatpush1.msra.mxu0 0.0
        %578 = vmatprep.subr.mxu0 0.0
        %579 = vmatpush1.msra.mxu0 0.0
        %580 = vmatprep.subr.mxu0 0.0
        %581 = vmatpush1.msra.mxu0 0.0
        %582 = vmatprep.subr.mxu0 0.0
        %583 = vmatpush1.msra.mxu0 0.0
        %584 = vmatprep.subr.mxu0 0.0
        %585 = vmatpush1.msra.mxu0 0.0
        %586 = vmatprep.subr.mxu0 0.0
        %587 = vmatpush1.msra.mxu0 0.0
        %588 = vmatprep.subr.mxu0 0.0
        %589 = vmatpush1.msra.mxu0 0.0
        %590 = vmatprep.subr.mxu0 0.0
        %591 = vmatpush1.msra.mxu0 0.0
        %592 = vmatprep.subr.mxu0 0.0
        %593 = vmatpush1.msra.mxu0 0.0
        %594 = vmatprep.subr.mxu0 0.0
        %595 = vmatpush1.msra.mxu0 0.0
        %596 = vmatprep.subr.mxu0 0.0
        %597 = vmatpush1.msra.mxu0 0.0
        %598 = vmatprep.subr.mxu0 0.0
        %599 = vmatpush1.msra.mxu0 0.0
        %600 = vmatprep.subr.mxu0 0.0
        %601 = vmatpush1.msra.mxu0 0.0
        %602 = vmatprep.subr.mxu0 0.0
        %603 = vmatpush1.msra.mxu0 0.0
        %604 = vmatprep.subr.mxu0 0.0
        %605 = vmatpush1.msra.mxu0 0.0
        %606 = vmatprep.subr.mxu0 0.0
        %607 = vmatpush1.msra.mxu0 0.0
        %608 = vmatprep.subr.mxu0 0.0
        %609 = vmatpush1.msra.mxu0 0.0
        %610 = vmatprep.subr.mxu0 0.0
        %611 = vmatpush1.msra.mxu0 0.0
        %612 = vmatprep.subr.mxu0 0.0
        %613 = vmatpush1.msra.mxu0 0.0
        %614 = vmatprep.subr.mxu0 0.0
        %615 = vmatpush1.msra.mxu0 0.0
        %616 = vmatprep.subr.mxu0 0.0
        %617 = vmatpush1.msra.mxu0 0.0
        %618 = vmatprep.subr.mxu0 0.0
        %619 = vmatpush1.msra.mxu0 0.0
        %620 = vmatprep.subr.mxu0 0.0
        %621 = vmatpush1.msra.mxu0 0.0
        %622 = vmatprep.mubr.f32.mxu0 0.0
        %623 = vmatmul.mubr.f32.gmra.mrb[0].mxu0 %v556
        %v624 = vpop.f32.mrb[0].mxu0
        %v625 = vadd.f32 0.0, %v624
        %v626 = vpop.f32.mrb[0].mxu0
        %627 = vdwg.mxu0
        %v628 = vld [vmem:[%s11] sm:$0x1]
        %v629 = vlaneseq
        %v630 = vshrl.u32 %v629, 7
        %v631 = vsub.s32 0, %v630
        %v632 = vrot.slane %v628, %v631
        %v633 = vadd.f32 %v625, %v632
        %v634 = vmul.f32 %v633, 0.35355338
        %v635 = vld [vmem:[%s11 + $0x1] sm:$0x1]
        %v636 = vlaneseq
        %v637 = vshrl.u32 %v636, 7
        %v638 = vsub.s32 0, %v637
        %v639 = vrot.slane %v635, %v638
        %641 = vrot.lane.b32.xlu0 %v639, 32
        %v642 = vpop.permute.xlu0 %641
        %v644 = vadd.f32 %v625, %v642
        %v645 = vld [vmem:[%s11 + $0x2] sm:$0x1]
        %v646 = vlaneseq
        %v647 = vshrl.u32 %v646, 7
        %v648 = vsub.s32 0, %v647
        %v649 = vrot.slane %v645, %v648
        %651 = vrot.lane.b32.xlu0 %v649, 64
        %v652 = vpop.permute.xlu0 %651
        %v654 = vadd.f32 %v625, %v652
        %656 = vrot.lane.b32.xlu0 %v644, 96
        %v657 = vpop.permute.xlu0 %656
        %vm658 = vcmask 64512
        %v660 = vsel %vm658, %v634, 0
        %v662 = vsel %vm658, %v657, 0
        %664 = vmatprep.subr.mxu0 0.0
        %665 = vmatpush1.xpose.msra.mxu0 %v662
        %666 = vmatprep.subr.mxu0 0.0
        %667 = vmatpush1.xpose.msra.mxu0 0.0
        %668 = vmatprep.subr.mxu0 0.0
        %669 = vmatpush1.xpose.msra.mxu0 0.0
        %670 = vmatprep.subr.mxu0 0.0
        %671 = vmatpush1.xpose.msra.mxu0 0.0
        %672 = vmatprep.subr.mxu0 0.0
        %673 = vmatpush1.xpose.msra.mxu0 0.0
        %674 = vmatprep.subr.mxu0 0.0
        %675 = vmatpush1.xpose.msra.mxu0 0.0
        %676 = vmatprep.subr.mxu0 0.0
        %677 = vmatpush1.xpose.msra.mxu0 0.0
        %678 = vmatprep.subr.mxu0 0.0
        %679 = vmatpush1.xpose.msra.mxu0 0.0
        %680 = vmatprep.subr.mxu0 0.0
        %681 = vmatpush1.xpose.msra.mxu0 0.0
        %682 = vmatprep.subr.mxu0 0.0
        %683 = vmatpush1.xpose.msra.mxu0 0.0
        %684 = vmatprep.subr.mxu0 0.0
        %685 = vmatpush1.xpose.msra.mxu0 0.0
        %686 = vmatprep.subr.mxu0 0.0
        %687 = vmatpush1.xpose.msra.mxu0 0.0
        %688 = vmatprep.subr.mxu0 0.0
        %689 = vmatpush1.xpose.msra.mxu0 0.0
        %690 = vmatprep.subr.mxu0 0.0
        %691 = vmatpush1.xpose.msra.mxu0 0.0
        %692 = vmatprep.subr.mxu0 0.0
        %693 = vmatpush1.xpose.msra.mxu0 0.0
        %694 = vmatprep.subr.mxu0 0.0
        %695 = vmatpush1.xpose.msra.mxu0 0.0
        %696 = vmatprep.subr.mxu0 0.0
        %697 = vmatpush1.xpose.msra.mxu0 0.0
        %698 = vmatprep.subr.mxu0 0.0
        %699 = vmatpush1.xpose.msra.mxu0 0.0
        %700 = vmatprep.subr.mxu0 0.0
        %701 = vmatpush1.xpose.msra.mxu0 0.0
        %702 = vmatprep.subr.mxu0 0.0
        %703 = vmatpush1.xpose.msra.mxu0 0.0
        %704 = vmatprep.subr.mxu0 0.0
        %705 = vmatpush1.xpose.msra.mxu0 0.0
        %706 = vmatprep.subr.mxu0 0.0
        %707 = vmatpush1.xpose.msra.mxu0 0.0
        %708 = vmatprep.subr.mxu0 0.0
        %709 = vmatpush1.xpose.msra.mxu0 0.0
        %710 = vmatprep.subr.mxu0 0.0
        %711 = vmatpush1.xpose.msra.mxu0 0.0
        %712 = vmatprep.subr.mxu0 0.0
        %713 = vmatpush1.xpose.msra.mxu0 0.0
        %714 = vmatprep.subr.mxu0 0.0
        %715 = vmatpush1.xpose.msra.mxu0 0.0
        %716 = vmatprep.subr.mxu0 0.0
        %717 = vmatpush1.xpose.msra.mxu0 0.0
        %718 = vmatprep.subr.mxu0 0.0
        %719 = vmatpush1.xpose.msra.mxu0 0.0
        %720 = vmatprep.subr.mxu0 0.0
        %721 = vmatpush1.xpose.msra.mxu0 0.0
        %722 = vmatprep.subr.mxu0 0.0
        %723 = vmatpush1.xpose.msra.mxu0 0.0
        %724 = vmatprep.subr.mxu0 0.0
        %725 = vmatpush1.xpose.msra.mxu0 0.0
        %726 = vmatprep.subr.mxu0 0.0
        %727 = vmatpush1.xpose.msra.mxu0 0.0
        %728 = vmatprep.mubr.f32.mxu0 0.0
        %729 = vmatmul.mubr.f32.gmra.mrb[0].mxu0 %v660
        %v730 = vpop.f32.mrb[0].mxu0
        %v731 = vadd.f32 %v548, %v730
        %v732 = vpop.f32.mrb[0].mxu0
        %733 = vdwg.mxu0
        %v734 = vsel %vm658, %v731, -inf
        %735 = vmax.xlane.f32.xlu0 %v734
        %v736 = vpop.xlane.xlu0 %735
        %v737 = vsub.f32 %v731, %v736
        %v738 = vmul.f32 %v737, 1.442695
        %v739 = vpow.pop %v738
        %v740 = vsel %vm658, %v739, 0.0
        %741 = vadd.xlane.f32.xlu0 %v740
        %v742 = vpop.xlane.xlu0 %741
        %v743 = vrcp.pop %v742
        %v744 = vmul.f32 %v739, %v743
        %746 = vrot.lane.b32.xlu0 %v654, 64
        %v747 = vpop.permute.xlu0 %746
        %v750 = vsel %vm658, %v744, 0
        %752 = vmatprep.subr.mxu0 0.0
        %753 = vmatpush1.msra.mxu0 %v747
        %754 = vmatprep.subr.mxu0 0.0
        %755 = vmatpush1.msra.mxu0 0.0
        %756 = vmatprep.subr.mxu0 0.0
        %757 = vmatpush1.msra.mxu0 0.0
        %758 = vmatprep.subr.mxu0 0.0
        %759 = vmatpush1.msra.mxu0 0.0
        %760 = vmatprep.subr.mxu0 0.0
        %761 = vmatpush1.msra.mxu0 0.0
        %762 = vmatprep.subr.mxu0 0.0
        %763 = vmatpush1.msra.mxu0 0.0
        %764 = vmatprep.subr.mxu0 0.0
        %765 = vmatpush1.msra.mxu0 0.0
        %766 = vmatprep.subr.mxu0 0.0
        %767 = vmatpush1.msra.mxu0 0.0
        %768 = vmatprep.subr.mxu0 0.0
        %769 = vmatpush1.msra.mxu0 0.0
        %770 = vmatprep.subr.mxu0 0.0
        %771 = vmatpush1.msra.mxu0 0.0
        %772 = vmatprep.subr.mxu0 0.0
        %773 = vmatpush1.msra.mxu0 0.0
        %774 = vmatprep.subr.mxu0 0.0
        %775 = vmatpush1.msra.mxu0 0.0
        %776 = vmatprep.subr.mxu0 0.0
        %777 = vmatpush1.msra.mxu0 0.0
        %778 = vmatprep.subr.mxu0 0.0
        %779 = vmatpush1.msra.mxu0 0.0
        %780 = vmatprep.subr.mxu0 0.0
        %781 = vmatpush1.msra.mxu0 0.0
        %782 = vmatprep.subr.mxu0 0.0
        %783 = vmatpush1.msra.mxu0 0.0
        %784 = vmatprep.subr.mxu0 0.0
        %785 = vmatpush1.msra.mxu0 0.0
        %786 = vmatprep.subr.mxu0 0.0
        %787 = vmatpush1.msra.mxu0 0.0
        %788 = vmatprep.subr.mxu0 0.0
        %789 = vmatpush1.msra.mxu0 0.0
        %790 = vmatprep.subr.mxu0 0.0
        %791 = vmatpush1.msra.mxu0 0.0
        %792 = vmatprep.subr.mxu0 0.0
        %793 = vmatpush1.msra.mxu0 0.0
        %794 = vmatprep.subr.mxu0 0.0
        %795 = vmatpush1.msra.mxu0 0.0
        %796 = vmatprep.subr.mxu0 0.0
        %797 = vmatpush1.msra.mxu0 0.0
        %798 = vmatprep.subr.mxu0 0.0
        %799 = vmatpush1.msra.mxu0 0.0
        %800 = vmatprep.subr.mxu0 0.0
        %801 = vmatpush1.msra.mxu0 0.0
        %802 = vmatprep.subr.mxu0 0.0
        %803 = vmatpush1.msra.mxu0 0.0
        %804 = vmatprep.subr.mxu0 0.0
        %805 = vmatpush1.msra.mxu0 0.0
        %806 = vmatprep.subr.mxu0 0.0
        %807 = vmatpush1.msra.mxu0 0.0
        %808 = vmatprep.subr.mxu0 0.0
        %809 = vmatpush1.msra.mxu0 0.0
        %810 = vmatprep.subr.mxu0 0.0
        %811 = vmatpush1.msra.mxu0 0.0
        %812 = vmatprep.subr.mxu0 0.0
        %813 = vmatpush1.msra.mxu0 0.0
        %814 = vmatprep.subr.mxu0 0.0
        %815 = vmatpush1.msra.mxu0 0.0
        %816 = vmatprep.mubr.f32.mxu0 0.0
        %817 = vmatmul.mubr.f32.gmra.mrb[0].mxu0 %v750
        %v818 = vpop.f32.mrb[0].mxu0
        %v819 = vadd.f32 0.0, %v818
        %v820 = vpop.f32.mrb[0].mxu0
        %821 = vdwg.mxu0
        %v822 = vld [vmem:[%s5] sm:$0xff]
        %823 = vrot.lane.b32.xlu0 %v634, 120
        %v824 = vpop.permute.xlu0 %823
        %825 = vrot.lane.b32.xlu0 %v644, 88
        %v826 = vpop.permute.xlu0 %825
        %v827 = vsel %vm658, %v824, 0
        %v829 = vsel %vm658, %v826, 0
        %831 = vmatprep.subr.mxu0 0.0
        %832 = vmatpush1.xpose.msra.mxu0 %v829
        %833 = vmatprep.subr.mxu0 0.0
        %834 = vmatpush1.xpose.msra.mxu0 0.0
        %835 = vmatprep.subr.mxu0 0.0
        %836 = vmatpush1.xpose.msra.mxu0 0.0
        %837 = vmatprep.subr.mxu0 0.0
        %838 = vmatpush1.xpose.msra.mxu0 0.0
        %839 = vmatprep.subr.mxu0 0.0
        %840 = vmatpush1.xpose.msra.mxu0 0.0
        %841 = vmatprep.subr.mxu0 0.0
        %842 = vmatpush1.xpose.msra.mxu0 0.0
        %843 = vmatprep.subr.mxu0 0.0
        %844 = vmatpush1.xpose.msra.mxu0 0.0
        %845 = vmatprep.subr.mxu0 0.0
        %846 = vmatpush1.xpose.msra.mxu0 0.0
        %847 = vmatprep.subr.mxu0 0.0
        %848 = vmatpush1.xpose.msra.mxu0 0.0
        %849 = vmatprep.subr.mxu0 0.0
        %850 = vmatpush1.xpose.msra.mxu0 0.0
        %851 = vmatprep.subr.mxu0 0.0
        %852 = vmatpush1.xpose.msra.mxu0 0.0
        %853 = vmatprep.subr.mxu0 0.0
        %854 = vmatpush1.xpose.msra.mxu0 0.0
        %855 = vmatprep.subr.mxu0 0.0
        %856 = vmatpush1.xpose.msra.mxu0 0.0
        %857 = vmatprep.subr.mxu0 0.0
        %858 = vmatpush1.xpose.msra.mxu0 0.0
        %859 = vmatprep.subr.mxu0 0.0
        %860 = vmatpush1.xpose.msra.mxu0 0.0
        %861 = vmatprep.subr.mxu0 0.0
        %862 = vmatpush1.xpose.msra.mxu0 0.0
        %863 = vmatprep.subr.mxu0 0.0
        %864 = vmatpush1.xpose.msra.mxu0 0.0
        %865 = vmatprep.subr.mxu0 0.0
        %866 = vmatpush1.xpose.msra.mxu0 0.0
        %867 = vmatprep.subr.mxu0 0.0
        %868 = vmatpush1.xpose.msra.mxu0 0.0
        %869 = vmatprep.subr.mxu0 0.0
        %870 = vmatpush1.xpose.msra.mxu0 0.0
        %871 = vmatprep.subr.mxu0 0.0
        %872 = vmatpush1.xpose.msra.mxu0 0.0
        %873 = vmatprep.subr.mxu0 0.0
        %874 = vmatpush1.xpose.msra.mxu0 0.0
        %875 = vmatprep.subr.mxu0 0.0
        %876 = vmatpush1.xpose.msra.mxu0 0.0
        %877 = vmatprep.subr.mxu0 0.0
        %878 = vmatpush1.xpose.msra.mxu0 0.0
        %879 = vmatprep.subr.mxu0 0.0
        %880 = vmatpush1.xpose.msra.mxu0 0.0
        %881 = vmatprep.subr.mxu0 0.0
        %882 = vmatpush1.xpose.msra.mxu0 0.0
        %883 = vmatprep.subr.mxu0 0.0
        %884 = vmatpush1.xpose.msra.mxu0 0.0
        %885 = vmatprep.subr.mxu0 0.0
        %886 = vmatpush1.xpose.msra.mxu0 0.0
        %887 = vmatprep.subr.mxu0 0.0
        %888 = vmatpush1.xpose.msra.mxu0 0.0
        %889 = vmatprep.subr.mxu0 0.0
        %890 = vmatpush1.xpose.msra.mxu0 0.0
        %891 = vmatprep.subr.mxu0 0.0
        %892 = vmatpush1.xpose.msra.mxu0 0.0
        %893 = vmatprep.subr.mxu0 0.0
        %894 = vmatpush1.xpose.msra.mxu0 0.0
        %895 = vmatprep.mubr.f32.mxu0 0.0
        %896 = vmatmul.mubr.f32.gmra.mrb[0].mxu0 %v827
        %v897 = vpop.f32.mrb[0].mxu0
        %v898 = vadd.f32 %v548, %v897
        %v899 = vpop.f32.mrb[0].mxu0
        %900 = vdwg.mxu0
        %v901 = vsel %vm658, %v898, -inf
        %902 = vmax.xlane.f32.xlu0 %v901
        %v903 = vpop.xlane.xlu0 %902
        %v904 = vsub.f32 %v898, %v903
        %v905 = vmul.f32 %v904, 1.442695
        %v906 = vpow.pop %v905
        %v907 = vsel %vm658, %v906, 0.0
        %908 = vadd.xlane.f32.xlu0 %v907
        %v909 = vpop.xlane.xlu0 %908
        %v910 = vrcp.pop %v909
        %v911 = vmul.f32 %v906, %v910
        %912 = vrot.lane.b32.xlu0 %v654, 56
        %v913 = vpop.permute.xlu0 %912
        %v916 = vsel %vm658, %v911, 0
        %918 = vmatprep.subr.mxu0 0.0
        %919 = vmatpush1.msra.mxu0 %v913
        %920 = vmatprep.subr.mxu0 0.0
        %921 = vmatpush1.msra.mxu0 0.0
        %922 = vmatprep.subr.mxu0 0.0
        %923 = vmatpush1.msra.mxu0 0.0
        %924 = vmatprep.subr.mxu0 0.0
        %925 = vmatpush1.msra.mxu0 0.0
        %926 = vmatprep.subr.mxu0 0.0
        %927 = vmatpush1.msra.mxu0 0.0
        %928 = vmatprep.subr.mxu0 0.0
        %929 = vmatpush1.msra.mxu0 0.0
        %930 = vmatprep.subr.mxu0 0.0
        %931 = vmatpush1.msra.mxu0 0.0
        %932 = vmatprep.subr.mxu0 0.0
        %933 = vmatpush1.msra.mxu0 0.0
        %934 = vmatprep.subr.mxu0 0.0
        %935 = vmatpush1.msra.mxu0 0.0
        %936 = vmatprep.subr.mxu0 0.0
        %937 = vmatpush1.msra.mxu0 0.0
        %938 = vmatprep.subr.mxu0 0.0
        %939 = vmatpush1.msra.mxu0 0.0
        %940 = vmatprep.subr.mxu0 0.0
        %941 = vmatpush1.msra.mxu0 0.0
        %942 = vmatprep.subr.mxu0 0.0
        %943 = vmatpush1.msra.mxu0 0.0
        %944 = vmatprep.subr.mxu0 0.0
        %945 = vmatpush1.msra.mxu0 0.0
        %946 = vmatprep.subr.mxu0 0.0
        %947 = vmatpush1.msra.mxu0 0.0
        %948 = vmatprep.subr.mxu0 0.0
        %949 = vmatpush1.msra.mxu0 0.0
        %950 = vmatprep.subr.mxu0 0.0
        %951 = vmatpush1.msra.mxu0 0.0
        %952 = vmatprep.subr.mxu0 0.0
        %953 = vmatpush1.msra.mxu0 0.0
        %954 = vmatprep.subr.mxu0 0.0
        %955 = vmatpush1.msra.mxu0 0.0
        %956 = vmatprep.subr.mxu0 0.0
        %957 = vmatpush1.msra.mxu0 0.0
        %958 = vmatprep.subr.mxu0 0.0
        %959 = vmatpush1.msra.mxu0 0.0
        %960 = vmatprep.subr.mxu0 0.0
        %961 = vmatpush1.msra.mxu0 0.0
        %962 = vmatprep.subr.mxu0 0.0
        %963 = vmatpush1.msra.mxu0 0.0
        %964 = vmatprep.subr.mxu0 0.0
        %965 = vmatpush1.msra.mxu0 0.0
        %966 = vmatprep.subr.mxu0 0.0
        %967 = vmatpush1.msra.mxu0 0.0
        %968 = vmatprep.subr.mxu0 0.0
        %969 = vmatpush1.msra.mxu0 0.0
        %970 = vmatprep.subr.mxu0 0.0
        %971 = vmatpush1.msra.mxu0 0.0
        %972 = vmatprep.subr.mxu0 0.0
        %973 = vmatpush1.msra.mxu0 0.0
        %974 = vmatprep.subr.mxu0 0.0
        %975 = vmatpush1.msra.mxu0 0.0
        %976 = vmatprep.subr.mxu0 0.0
        %977 = vmatpush1.msra.mxu0 0.0
        %978 = vmatprep.subr.mxu0 0.0
        %979 = vmatpush1.msra.mxu0 0.0
        %980 = vmatprep.subr.mxu0 0.0
        %981 = vmatpush1.msra.mxu0 0.0
        %982 = vmatprep.mubr.f32.mxu0 0.0
        %983 = vmatmul.mubr.f32.gmra.mrb[0].mxu0 %v916
        %v984 = vpop.f32.mrb[0].mxu0
        %v985 = vadd.f32 0.0, %v984
        %v986 = vpop.f32.mrb[0].mxu0
        %987 = vdwg.mxu0
        %v988 = vld [vmem:[%s5 + $0x8] sm:$0xff]
        %v990 = vsel %vm658, %v985, 0
        %992 = vmatprep.subr.mxu0 0.0
        %993 = vmatpush1.msra.mxu0 %v988
        %994 = vmatprep.subr.mxu0 0.0
        %995 = vmatpush1.msra.mxu0 0.0
        %996 = vmatprep.subr.mxu0 0.0
        %997 = vmatpush1.msra.mxu0 0.0
        %998 = vmatprep.subr.mxu0 0.0
        %999 = vmatpush1.msra.mxu0 0.0
        %1000 = vmatprep.subr.mxu0 0.0
        %1001 = vmatpush1.msra.mxu0 0.0
        %1002 = vmatprep.subr.mxu0 0.0
        %1003 = vmatpush1.msra.mxu0 0.0
        %1004 = vmatprep.subr.mxu0 0.0
        %1005 = vmatpush1.msra.mxu0 0.0
        %1006 = vmatprep.subr.mxu0 0.0
        %1007 = vmatpush1.msra.mxu0 0.0
        %1008 = vmatprep.subr.mxu0 0.0
        %1009 = vmatpush1.msra.mxu0 0.0
        %1010 = vmatprep.subr.mxu0 0.0
        %1011 = vmatpush1.msra.mxu0 0.0
        %1012 = vmatprep.subr.mxu0 0.0
        %1013 = vmatpush1.msra.mxu0 0.0
        %1014 = vmatprep.subr.mxu0 0.0
        %1015 = vmatpush1.msra.mxu0 0.0
        %1016 = vmatprep.subr.mxu0 0.0
        %1017 = vmatpush1.msra.mxu0 0.0
        %1018 = vmatprep.subr.mxu0 0.0
        %1019 = vmatpush1.msra.mxu0 0.0
        %1020 = vmatprep.subr.mxu0 0.0
        %1021 = vmatpush1.msra.mxu0 0.0
        %1022 = vmatprep.subr.mxu0 0.0
        %1023 = vmatpush1.msra.mxu0 0.0
        %1024 = vmatprep.subr.mxu0 0.0
        %1025 = vmatpush1.msra.mxu0 0.0
        %1026 = vmatprep.subr.mxu0 0.0
        %1027 = vmatpush1.msra.mxu0 0.0
        %1028 = vmatprep.subr.mxu0 0.0
        %1029 = vmatpush1.msra.mxu0 0.0
        %1030 = vmatprep.subr.mxu0 0.0
        %1031 = vmatpush1.msra.mxu0 0.0
        %1032 = vmatprep.subr.mxu0 0.0
        %1033 = vmatpush1.msra.mxu0 0.0
        %1034 = vmatprep.subr.mxu0 0.0
        %1035 = vmatpush1.msra.mxu0 0.0
        %1036 = vmatprep.subr.mxu0 0.0
        %1037 = vmatpush1.msra.mxu0 0.0
        %1038 = vmatprep.subr.mxu0 0.0
        %1039 = vmatpush1.msra.mxu0 0.0
        %1040 = vmatprep.subr.mxu0 0.0
        %1041 = vmatpush1.msra.mxu0 0.0
        %1042 = vmatprep.subr.mxu0 0.0
        %1043 = vmatpush1.msra.mxu0 0.0
        %1044 = vmatprep.subr.mxu0 0.0
        %1045 = vmatpush1.msra.mxu0 0.0
        %1046 = vmatprep.subr.mxu0 0.0
        %1047 = vmatpush1.msra.mxu0 0.0
        %1048 = vmatprep.subr.mxu0 0.0
        %1049 = vmatpush1.msra.mxu0 0.0
        %1050 = vmatprep.subr.mxu0 0.0
        %1051 = vmatpush1.msra.mxu0 0.0
        %1052 = vmatprep.subr.mxu0 0.0
        %1053 = vmatpush1.msra.mxu0 0.0
        %1054 = vmatprep.subr.mxu0 0.0
        %1055 = vmatpush1.msra.mxu0 0.0
        %1056 = vmatprep.mubr.f32.mxu0 0.0
        %1057 = vmatmul.mubr.f32.gmra.mrb[0].mxu0 %v990
        %v1058 = vpop.f32.mrb[0].mxu0
        %v1059 = vadd.f32 0.0, %v1058
        %v1060 = vpop.f32.mrb[0].mxu0
        %1061 = vdwg.mxu0
        %v1063 = vsel %vm658, %v819, 0
        %1065 = vmatprep.subr.mxu0 0.0
        %1066 = vmatpush1.msra.mxu0 %v822
        %1067 = vmatprep.subr.mxu0 0.0
        %1068 = vmatpush1.msra.mxu0 0.0
        %1069 = vmatprep.subr.mxu0 0.0
        %1070 = vmatpush1.msra.mxu0 0.0
        %1071 = vmatprep.subr.mxu0 0.0
        %1072 = vmatpush1.msra.mxu0 0.0
        %1073 = vmatprep.subr.mxu0 0.0
        %1074 = vmatpush1.msra.mxu0 0.0
        %1075 = vmatprep.subr.mxu0 0.0
        %1076 = vmatpush1.msra.mxu0 0.0
        %1077 = vmatprep.subr.mxu0 0.0
        %1078 = vmatpush1.msra.mxu0 0.0
        %1079 = vmatprep.subr.mxu0 0.0
        %1080 = vmatpush1.msra.mxu0 0.0
        %1081 = vmatprep.subr.mxu0 0.0
        %1082 = vmatpush1.msra.mxu0 0.0
        %1083 = vmatprep.subr.mxu0 0.0
        %1084 = vmatpush1.msra.mxu0 0.0
        %1085 = vmatprep.subr.mxu0 0.0
        %1086 = vmatpush1.msra.mxu0 0.0
        %1087 = vmatprep.subr.mxu0 0.0
        %1088 = vmatpush1.msra.mxu0 0.0
        %1089 = vmatprep.subr.mxu0 0.0
        %1090 = vmatpush1.msra.mxu0 0.0
        %1091 = vmatprep.subr.mxu0 0.0
        %1092 = vmatpush1.msra.mxu0 0.0
        %1093 = vmatprep.subr.mxu0 0.0
        %1094 = vmatpush1.msra.mxu0 0.0
        %1095 = vmatprep.subr.mxu0 0.0
        %1096 = vmatpush1.msra.mxu0 0.0
        %1097 = vmatprep.subr.mxu0 0.0
        %1098 = vmatpush1.msra.mxu0 0.0
        %1099 = vmatprep.subr.mxu0 0.0
        %1100 = vmatpush1.msra.mxu0 0.0
        %1101 = vmatprep.subr.mxu0 0.0
        %1102 = vmatpush1.msra.mxu0 0.0
        %1103 = vmatprep.subr.mxu0 0.0
        %1104 = vmatpush1.msra.mxu0 0.0
        %1105 = vmatprep.subr.mxu0 0.0
        %1106 = vmatpush1.msra.mxu0 0.0
        %1107 = vmatprep.subr.mxu0 0.0
        %1108 = vmatpush1.msra.mxu0 0.0
        %1109 = vmatprep.subr.mxu0 0.0
        %1110 = vmatpush1.msra.mxu0 0.0
        %1111 = vmatprep.subr.mxu0 0.0
        %1112 = vmatpush1.msra.mxu0 0.0
        %1113 = vmatprep.subr.mxu0 0.0
        %1114 = vmatpush1.msra.mxu0 0.0
        %1115 = vmatprep.subr.mxu0 0.0
        %1116 = vmatpush1.msra.mxu0 0.0
        %1117 = vmatprep.subr.mxu0 0.0
        %1118 = vmatpush1.msra.mxu0 0.0
        %1119 = vmatprep.subr.mxu0 0.0
        %1120 = vmatpush1.msra.mxu0 0.0
        %1121 = vmatprep.subr.mxu0 0.0
        %1122 = vmatpush1.msra.mxu0 0.0
        %1123 = vmatprep.subr.mxu0 0.0
        %1124 = vmatpush1.msra.mxu0 0.0
        %1125 = vmatprep.subr.mxu0 0.0
        %1126 = vmatpush1.msra.mxu0 0.0
        %1127 = vmatprep.subr.mxu0 0.0
        %1128 = vmatpush1.msra.mxu0 0.0
        %1129 = vmatprep.mubr.f32.mxu0 0.0
        %1130 = vmatmul.mubr.f32.gmra.mrb[0].mxu0 %v1063
        %v1131 = vpop.f32.mrb[0].mxu0
        %v1132 = vadd.f32 %v1059, %v1131
        %v1133 = vpop.f32.mrb[0].mxu0
        %1134 = vdwg.mxu0
        %1135 = vrot.lane.b32.xlu0 %v634, 112
        %v1136 = vpop.permute.xlu0 %1135
        %1137 = vrot.lane.b32.xlu0 %v644, 80
        %v1138 = vpop.permute.xlu0 %1137
        %v1139 = vsel %vm658, %v1136, 0
        %v1141 = vsel %vm658, %v1138, 0
        %1143 = vmatprep.subr.mxu0 0.0
        %1144 = vmatpush1.xpose.msra.mxu0 %v1141
        %1145 = vmatprep.subr.mxu0 0.0
        %1146 = vmatpush1.xpose.msra.mxu0 0.0
        %1147 = vmatprep.subr.mxu0 0.0
        %1148 = vmatpush1.xpose.msra.mxu0 0.0
        %1149 = vmatprep.subr.mxu0 0.0
        %1150 = vmatpush1.xpose.msra.mxu0 0.0
        %1151 = vmatprep.subr.mxu0 0.0
        %1152 = vmatpush1.xpose.msra.mxu0 0.0
        %1153 = vmatprep.subr.mxu0 0.0
        %1154 = vmatpush1.xpose.msra.mxu0 0.0
        %1155 = vmatprep.subr.mxu0 0.0
        %1156 = vmatpush1.xpose.msra.mxu0 0.0
        %1157 = vmatprep.subr.mxu0 0.0
        %1158 = vmatpush1.xpose.msra.mxu0 0.0
        %1159 = vmatprep.subr.mxu0 0.0
        %1160 = vmatpush1.xpose.msra.mxu0 0.0
        %1161 = vmatprep.subr.mxu0 0.0
        %1162 = vmatpush1.xpose.msra.mxu0 0.0
        %1163 = vmatprep.subr.mxu0 0.0
        %1164 = vmatpush1.xpose.msra.mxu0 0.0
        %1165 = vmatprep.subr.mxu0 0.0
        %1166 = vmatpush1.xpose.msra.mxu0 0.0
        %1167 = vmatprep.subr.mxu0 0.0
        %1168 = vmatpush1.xpose.msra.mxu0 0.0
        %1169 = vmatprep.subr.mxu0 0.0
        %1170 = vmatpush1.xpose.msra.mxu0 0.0
        %1171 = vmatprep.subr.mxu0 0.0
        %1172 = vmatpush1.xpose.msra.mxu0 0.0
        %1173 = vmatprep.subr.mxu0 0.0
        %1174 = vmatpush1.xpose.msra.mxu0 0.0
        %1175 = vmatprep.subr.mxu0 0.0
        %1176 = vmatpush1.xpose.msra.mxu0 0.0
        %1177 = vmatprep.subr.mxu0 0.0
        %1178 = vmatpush1.xpose.msra.mxu0 0.0
        %1179 = vmatprep.subr.mxu0 0.0
        %1180 = vmatpush1.xpose.msra.mxu0 0.0
        %1181 = vmatprep.subr.mxu0 0.0
        %1182 = vmatpush1.xpose.msra.mxu0 0.0
        %1183 = vmatprep.subr.mxu0 0.0
        %1184 = vmatpush1.xpose.msra.mxu0 0.0
        %1185 = vmatprep.subr.mxu0 0.0
        %1186 = vmatpush1.xpose.msra.mxu0 0.0
        %1187 = vmatprep.subr.mxu0 0.0
        %1188 = vmatpush1.xpose.msra.mxu0 0.0
        %1189 = vmatprep.subr.mxu0 0.0
        %1190 = vmatpush1.xpose.msra.mxu0 0.0
        %1191 = vmatprep.subr.mxu0 0.0
        %1192 = vmatpush1.xpose.msra.mxu0 0.0
        %1193 = vmatprep.subr.mxu0 0.0
        %1194 = vmatpush1.xpose.msra.mxu0 0.0
        %1195 = vmatprep.subr.mxu0 0.0
        %1196 = vmatpush1.xpose.msra.mxu0 0.0
        %1197 = vmatprep.subr.mxu0 0.0
        %1198 = vmatpush1.xpose.msra.mxu0 0.0
        %1199 = vmatprep.subr.mxu0 0.0
        %1200 = vmatpush1.xpose.msra.mxu0 0.0
        %1201 = vmatprep.subr.mxu0 0.0
        %1202 = vmatpush1.xpose.msra.mxu0 0.0
        %1203 = vmatprep.subr.mxu0 0.0
        %1204 = vmatpush1.xpose.msra.mxu0 0.0
        %1205 = vmatprep.subr.mxu0 0.0
        %1206 = vmatpush1.xpose.msra.mxu0 0.0
        %1207 = vmatprep.mubr.f32.mxu0 0.0
        %1208 = vmatmul.mubr.f32.gmra.mrb[0].mxu0 %v1139
        %v1209 = vpop.f32.mrb[0].mxu0
        %v1210 = vadd.f32 %v548, %v1209
        %v1211 = vpop.f32.mrb[0].mxu0
        %1212 = vdwg.mxu0
        %v1213 = vsel %vm658, %v1210, -inf
        %1214 = vmax.xlane.f32.xlu0 %v1213
        %v1215 = vpop.xlane.xlu0 %1214
        %v1216 = vsub.f32 %v1210, %v1215
        %v1217 = vmul.f32 %v1216, 1.442695
        %v1218 = vpow.pop %v1217
        %v1219 = vsel %vm658, %v1218, 0.0
        %1220 = vadd.xlane.f32.xlu0 %v1219
        %v1221 = vpop.xlane.xlu0 %1220
        %v1222 = vrcp.pop %v1221
        %v1223 = vmul.f32 %v1218, %v1222
        %1224 = vrot.lane.b32.xlu0 %v654, 48
        %v1225 = vpop.permute.xlu0 %1224
        %v1228 = vsel %vm658, %v1223, 0
        %1230 = vmatprep.subr.mxu0 0.0
        %1231 = vmatpush1.msra.mxu0 %v1225
        %1232 = vmatprep.subr.mxu0 0.0
        %1233 = vmatpush1.msra.mxu0 0.0
        %1234 = vmatprep.subr.mxu0 0.0
        %1235 = vmatpush1.msra.mxu0 0.0
        %1236 = vmatprep.subr.mxu0 0.0
        %1237 = vmatpush1.msra.mxu0 0.0
        %1238 = vmatprep.subr.mxu0 0.0
        %1239 = vmatpush1.msra.mxu0 0.0
        %1240 = vmatprep.subr.mxu0 0.0
        %1241 = vmatpush1.msra.mxu0 0.0
        %1242 = vmatprep.subr.mxu0 0.0
        %1243 = vmatpush1.msra.mxu0 0.0
        %1244 = vmatprep.subr.mxu0 0.0
        %1245 = vmatpush1.msra.mxu0 0.0
        %1246 = vmatprep.subr.mxu0 0.0
        %1247 = vmatpush1.msra.mxu0 0.0
        %1248 = vmatprep.subr.mxu0 0.0
        %1249 = vmatpush1.msra.mxu0 0.0
        %1250 = vmatprep.subr.mxu0 0.0
        %1251 = vmatpush1.msra.mxu0 0.0
        %1252 = vmatprep.subr.mxu0 0.0
        %1253 = vmatpush1.msra.mxu0 0.0
        %1254 = vmatprep.subr.mxu0 0.0
        %1255 = vmatpush1.msra.mxu0 0.0
        %1256 = vmatprep.subr.mxu0 0.0
        %1257 = vmatpush1.msra.mxu0 0.0
        %1258 = vmatprep.subr.mxu0 0.0
        %1259 = vmatpush1.msra.mxu0 0.0
        %1260 = vmatprep.subr.mxu0 0.0
        %1261 = vmatpush1.msra.mxu0 0.0
        %1262 = vmatprep.subr.mxu0 0.0
        %1263 = vmatpush1.msra.mxu0 0.0
        %1264 = vmatprep.subr.mxu0 0.0
        %1265 = vmatpush1.msra.mxu0 0.0
        %1266 = vmatprep.subr.mxu0 0.0
        %1267 = vmatpush1.msra.mxu0 0.0
        %1268 = vmatprep.subr.mxu0 0.0
        %1269 = vmatpush1.msra.mxu0 0.0
        %1270 = vmatprep.subr.mxu0 0.0
        %1271 = vmatpush1.msra.mxu0 0.0
        %1272 = vmatprep.subr.mxu0 0.0
        %1273 = vmatpush1.msra.mxu0 0.0
        %1274 = vmatprep.subr.mxu0 0.0
        %1275 = vmatpush1.msra.mxu0 0.0
        %1276 = vmatprep.subr.mxu0 0.0
        %1277 = vmatpush1.msra.mxu0 0.0
        %1278 = vmatprep.subr.mxu0 0.0
        %1279 = vmatpush1.msra.mxu0 0.0
        %1280 = vmatprep.subr.mxu0 0.0
        %1281 = vmatpush1.msra.mxu0 0.0
        %1282 = vmatprep.subr.mxu0 0.0
        %1283 = vmatpush1.msra.mxu0 0.0
        %1284 = vmatprep.subr.mxu0 0.0
        %1285 = vmatpush1.msra.mxu0 0.0
        %1286 = vmatprep.subr.mxu0 0.0
        %1287 = vmatpush1.msra.mxu0 0.0
        %1288 = vmatprep.subr.mxu0 0.0
        %1289 = vmatpush1.msra.mxu0 0.0
        %1290 = vmatprep.subr.mxu0 0.0
        %1291 = vmatpush1.msra.mxu0 0.0
        %1292 = vmatprep.subr.mxu0 0.0
        %1293 = vmatpush1.msra.mxu0 0.0
        %1294 = vmatprep.mubr.f32.mxu0 0.0
        %1295 = vmatmul.mubr.f32.gmra.mrb[0].mxu0 %v1228
        %v1296 = vpop.f32.mrb[0].mxu0
        %v1297 = vadd.f32 0.0, %v1296
        %v1298 = vpop.f32.mrb[0].mxu0
        %1299 = vdwg.mxu0
        %v1300 = vld [vmem:[%s5 + $0x10] sm:$0xff]
        %v1302 = vsel %vm658, %v1297, 0
        %1304 = vmatprep.subr.mxu0 0.0
        %1305 = vmatpush1.msra.mxu0 %v1300
        %1306 = vmatprep.subr.mxu0 0.0
        %1307 = vmatpush1.msra.mxu0 0.0
        %1308 = vmatprep.subr.mxu0 0.0
        %1309 = vmatpush1.msra.mxu0 0.0
        %1310 = vmatprep.subr.mxu0 0.0
        %1311 = vmatpush1.msra.mxu0 0.0
        %1312 = vmatprep.subr.mxu0 0.0
        %1313 = vmatpush1.msra.mxu0 0.0
        %1314 = vmatprep.subr.mxu0 0.0
        %1315 = vmatpush1.msra.mxu0 0.0
        %1316 = vmatprep.subr.mxu0 0.0
        %1317 = vmatpush1.msra.mxu0 0.0
        %1318 = vmatprep.subr.mxu0 0.0
        %1319 = vmatpush1.msra.mxu0 0.0
        %1320 = vmatprep.subr.mxu0 0.0
        %1321 = vmatpush1.msra.mxu0 0.0
        %1322 = vmatprep.subr.mxu0 0.0
        %1323 = vmatpush1.msra.mxu0 0.0
        %1324 = vmatprep.subr.mxu0 0.0
        %1325 = vmatpush1.msra.mxu0 0.0
        %1326 = vmatprep.subr.mxu0 0.0
        %1327 = vmatpush1.msra.mxu0 0.0
        %1328 = vmatprep.subr.mxu0 0.0
        %1329 = vmatpush1.msra.mxu0 0.0
        %1330 = vmatprep.subr.mxu0 0.0
        %1331 = vmatpush1.msra.mxu0 0.0
        %1332 = vmatprep.subr.mxu0 0.0
        %1333 = vmatpush1.msra.mxu0 0.0
        %1334 = vmatprep.subr.mxu0 0.0
        %1335 = vmatpush1.msra.mxu0 0.0
        %1336 = vmatprep.subr.mxu0 0.0
        %1337 = vmatpush1.msra.mxu0 0.0
        %1338 = vmatprep.subr.mxu0 0.0
        %1339 = vmatpush1.msra.mxu0 0.0
        %1340 = vmatprep.subr.mxu0 0.0
        %1341 = vmatpush1.msra.mxu0 0.0
        %1342 = vmatprep.subr.mxu0 0.0
        %1343 = vmatpush1.msra.mxu0 0.0
        %1344 = vmatprep.subr.mxu0 0.0
        %1345 = vmatpush1.msra.mxu0 0.0
        %1346 = vmatprep.subr.mxu0 0.0
        %1347 = vmatpush1.msra.mxu0 0.0
        %1348 = vmatprep.subr.mxu0 0.0
        %1349 = vmatpush1.msra.mxu0 0.0
        %1350 = vmatprep.subr.mxu0 0.0
        %1351 = vmatpush1.msra.mxu0 0.0
        %1352 = vmatprep.subr.mxu0 0.0
        %1353 = vmatpush1.msra.mxu0 0.0
        %1354 = vmatprep.subr.mxu0 0.0
        %1355 = vmatpush1.msra.mxu0 0.0
        %1356 = vmatprep.subr.mxu0 0.0
        %1357 = vmatpush1.msra.mxu0 0.0
        %1358 = vmatprep.subr.mxu0 0.0
        %1359 = vmatpush1.msra.mxu0 0.0
        %1360 = vmatprep.subr.mxu0 0.0
        %1361 = vmatpush1.msra.mxu0 0.0
        %1362 = vmatprep.subr.mxu0 0.0
        %1363 = vmatpush1.msra.mxu0 0.0
        %1364 = vmatprep.subr.mxu0 0.0
        %1365 = vmatpush1.msra.mxu0 0.0
        %1366 = vmatprep.subr.mxu0 0.0
        %1367 = vmatpush1.msra.mxu0 0.0
        %1368 = vmatprep.mubr.f32.mxu0 0.0
        %1369 = vmatmul.mubr.f32.gmra.mrb[0].mxu0 %v1302
        %v1370 = vpop.f32.mrb[0].mxu0
        %v1371 = vadd.f32 0.0, %v1370
        %v1372 = vpop.f32.mrb[0].mxu0
        %1373 = vdwg.mxu0
        %v1374 = vadd.f32 %v1132, %v1371
        %1375 = vrot.lane.b32.xlu0 %v634, 104
        %v1376 = vpop.permute.xlu0 %1375
        %1377 = vrot.lane.b32.xlu0 %v644, 72
        %v1378 = vpop.permute.xlu0 %1377
        %v1379 = vsel %vm658, %v1376, 0
        %v1381 = vsel %vm658, %v1378, 0
        %1383 = vmatprep.subr.mxu0 0.0
        %1384 = vmatpush1.xpose.msra.mxu0 %v1381
        %1385 = vmatprep.subr.mxu0 0.0
        %1386 = vmatpush1.xpose.msra.mxu0 0.0
        %1387 = vmatprep.subr.mxu0 0.0
        %1388 = vmatpush1.xpose.msra.mxu0 0.0
        %1389 = vmatprep.subr.mxu0 0.0
        %1390 = vmatpush1.xpose.msra.mxu0 0.0
        %1391 = vmatprep.subr.mxu0 0.0
        %1392 = vmatpush1.xpose.msra.mxu0 0.0
        %1393 = vmatprep.subr.mxu0 0.0
        %1394 = vmatpush1.xpose.msra.mxu0 0.0
        %1395 = vmatprep.subr.mxu0 0.0
        %1396 = vmatpush1.xpose.msra.mxu0 0.0
        %1397 = vmatprep.subr.mxu0 0.0
        %1398 = vmatpush1.xpose.msra.mxu0 0.0
        %1399 = vmatprep.subr.mxu0 0.0
        %1400 = vmatpush1.xpose.msra.mxu0 0.0
        %1401 = vmatprep.subr.mxu0 0.0
        %1402 = vmatpush1.xpose.msra.mxu0 0.0
        %1403 = vmatprep.subr.mxu0 0.0
        %1404 = vmatpush1.xpose.msra.mxu0 0.0
        %1405 = vmatprep.subr.mxu0 0.0
        %1406 = vmatpush1.xpose.msra.mxu0 0.0
        %1407 = vmatprep.subr.mxu0 0.0
        %1408 = vmatpush1.xpose.msra.mxu0 0.0
        %1409 = vmatprep.subr.mxu0 0.0
        %1410 = vmatpush1.xpose.msra.mxu0 0.0
        %1411 = vmatprep.subr.mxu0 0.0
        %1412 = vmatpush1.xpose.msra.mxu0 0.0
        %1413 = vmatprep.subr.mxu0 0.0
        %1414 = vmatpush1.xpose.msra.mxu0 0.0
        %1415 = vmatprep.subr.mxu0 0.0
        %1416 = vmatpush1.xpose.msra.mxu0 0.0
        %1417 = vmatprep.subr.mxu0 0.0
        %1418 = vmatpush1.xpose.msra.mxu0 0.0
        %1419 = vmatprep.subr.mxu0 0.0
        %1420 = vmatpush1.xpose.msra.mxu0 0.0
        %1421 = vmatprep.subr.mxu0 0.0
        %1422 = vmatpush1.xpose.msra.mxu0 0.0
        %1423 = vmatprep.subr.mxu0 0.0
        %1424 = vmatpush1.xpose.msra.mxu0 0.0
        %1425 = vmatprep.subr.mxu0 0.0
        %1426 = vmatpush1.xpose.msra.mxu0 0.0
        %1427 = vmatprep.subr.mxu0 0.0
        %1428 = vmatpush1.xpose.msra.mxu0 0.0
        %1429 = vmatprep.subr.mxu0 0.0
        %1430 = vmatpush1.xpose.msra.mxu0 0.0
        %1431 = vmatprep.subr.mxu0 0.0
        %1432 = vmatpush1.xpose.msra.mxu0 0.0
        %1433 = vmatprep.subr.mxu0 0.0
        %1434 = vmatpush1.xpose.msra.mxu0 0.0
        %1435 = vmatprep.subr.mxu0 0.0
        %1436 = vmatpush1.xpose.msra.mxu0 0.0
        %1437 = vmatprep.subr.mxu0 0.0
        %1438 = vmatpush1.xpose.msra.mxu0 0.0
        %1439 = vmatprep.subr.mxu0 0.0
        %1440 = vmatpush1.xpose.msra.mxu0 0.0
        %1441 = vmatprep.subr.mxu0 0.0
        %1442 = vmatpush1.xpose.msra.mxu0 0.0
        %1443 = vmatprep.subr.mxu0 0.0
        %1444 = vmatpush1.xpose.msra.mxu0 0.0
        %1445 = vmatprep.subr.mxu0 0.0
        %1446 = vmatpush1.xpose.msra.mxu0 0.0
        %1447 = vmatprep.mubr.f32.mxu0 0.0
        %1448 = vmatmul.mubr.f32.gmra.mrb[0].mxu0 %v1379
        %v1449 = vpop.f32.mrb[0].mxu0
        %v1450 = vadd.f32 %v548, %v1449
        %v1451 = vpop.f32.mrb[0].mxu0
        %1452 = vdwg.mxu0
        %v1453 = vsel %vm658, %v1450, -inf
        %1454 = vmax.xlane.f32.xlu0 %v1453
        %v1455 = vpop.xlane.xlu0 %1454
        %v1456 = vsub.f32 %v1450, %v1455
        %v1457 = vmul.f32 %v1456, 1.442695
        %v1458 = vpow.pop %v1457
        %v1459 = vsel %vm658, %v1458, 0.0
        %1460 = vadd.xlane.f32.xlu0 %v1459
        %v1461 = vpop.xlane.xlu0 %1460
        %v1462 = vrcp.pop %v1461
        %v1463 = vmul.f32 %v1458, %v1462
        %1464 = vrot.lane.b32.xlu0 %v654, 40
        %v1465 = vpop.permute.xlu0 %1464
        %v1468 = vsel %vm658, %v1463, 0
        %1470 = vmatprep.subr.mxu0 0.0
        %1471 = vmatpush1.msra.mxu0 %v1465
        %1472 = vmatprep.subr.mxu0 0.0
        %1473 = vmatpush1.msra.mxu0 0.0
        %1474 = vmatprep.subr.mxu0 0.0
        %1475 = vmatpush1.msra.mxu0 0.0
        %1476 = vmatprep.subr.mxu0 0.0
        %1477 = vmatpush1.msra.mxu0 0.0
        %1478 = vmatprep.subr.mxu0 0.0
        %1479 = vmatpush1.msra.mxu0 0.0
        %1480 = vmatprep.subr.mxu0 0.0
        %1481 = vmatpush1.msra.mxu0 0.0
        %1482 = vmatprep.subr.mxu0 0.0
        %1483 = vmatpush1.msra.mxu0 0.0
        %1484 = vmatprep.subr.mxu0 0.0
        %1485 = vmatpush1.msra.mxu0 0.0
        %1486 = vmatprep.subr.mxu0 0.0
        %1487 = vmatpush1.msra.mxu0 0.0
        %1488 = vmatprep.subr.mxu0 0.0
        %1489 = vmatpush1.msra.mxu0 0.0
        %1490 = vmatprep.subr.mxu0 0.0
        %1491 = vmatpush1.msra.mxu0 0.0
        %1492 = vmatprep.subr.mxu0 0.0
        %1493 = vmatpush1.msra.mxu0 0.0
        %1494 = vmatprep.subr.mxu0 0.0
        %1495 = vmatpush1.msra.mxu0 0.0
        %1496 = vmatprep.subr.mxu0 0.0
        %1497 = vmatpush1.msra.mxu0 0.0
        %1498 = vmatprep.subr.mxu0 0.0
        %1499 = vmatpush1.msra.mxu0 0.0
        %1500 = vmatprep.subr.mxu0 0.0
        %1501 = vmatpush1.msra.mxu0 0.0
        %1502 = vmatprep.subr.mxu0 0.0
        %1503 = vmatpush1.msra.mxu0 0.0
        %1504 = vmatprep.subr.mxu0 0.0
        %1505 = vmatpush1.msra.mxu0 0.0
        %1506 = vmatprep.subr.mxu0 0.0
        %1507 = vmatpush1.msra.mxu0 0.0
        %1508 = vmatprep.subr.mxu0 0.0
        %1509 = vmatpush1.msra.mxu0 0.0
        %1510 = vmatprep.subr.mxu0 0.0
        %1511 = vmatpush1.msra.mxu0 0.0
        %1512 = vmatprep.subr.mxu0 0.0
        %1513 = vmatpush1.msra.mxu0 0.0
        %1514 = vmatprep.subr.mxu0 0.0
        %1515 = vmatpush1.msra.mxu0 0.0
        %1516 = vmatprep.subr.mxu0 0.0
        %1517 = vmatpush1.msra.mxu0 0.0
        %1518 = vmatprep.subr.mxu0 0.0
        %1519 = vmatpush1.msra.mxu0 0.0
        %1520 = vmatprep.subr.mxu0 0.0
        %1521 = vmatpush1.msra.mxu0 0.0
        %1522 = vmatprep.subr.mxu0 0.0
        %1523 = vmatpush1.msra.mxu0 0.0
        %1524 = vmatprep.subr.mxu0 0.0
        %1525 = vmatpush1.msra.mxu0 0.0
        %1526 = vmatprep.subr.mxu0 0.0
        %1527 = vmatpush1.msra.mxu0 0.0
        %1528 = vmatprep.subr.mxu0 0.0
        %1529 = vmatpush1.msra.mxu0 0.0
        %1530 = vmatprep.subr.mxu0 0.0
        %1531 = vmatpush1.msra.mxu0 0.0
        %1532 = vmatprep.subr.mxu0 0.0
        %1533 = vmatpush1.msra.mxu0 0.0
        %1534 = vmatprep.mubr.f32.mxu0 0.0
        %1535 = vmatmul.mubr.f32.gmra.mrb[0].mxu0 %v1468
        %v1536 = vpop.f32.mrb[0].mxu0
        %v1537 = vadd.f32 0.0, %v1536
        %v1538 = vpop.f32.mrb[0].mxu0
        %1539 = vdwg.mxu0
        %v1540 = vld [vmem:[%s5 + $0x18] sm:$0xff]
        %v1542 = vsel %vm658, %v1537, 0
        %1544 = vmatprep.subr.mxu0 0.0
        %1545 = vmatpush1.msra.mxu0 %v1540
        %1546 = vmatprep.subr.mxu0 0.0
        %1547 = vmatpush1.msra.mxu0 0.0
        %1548 = vmatprep.subr.mxu0 0.0
        %1549 = vmatpush1.msra.mxu0 0.0
        %1550 = vmatprep.subr.mxu0 0.0
        %1551 = vmatpush1.msra.mxu0 0.0
        %1552 = vmatprep.subr.mxu0 0.0
        %1553 = vmatpush1.msra.mxu0 0.0
        %1554 = vmatprep.subr.mxu0 0.0
        %1555 = vmatpush1.msra.mxu0 0.0
        %1556 = vmatprep.subr.mxu0 0.0
        %1557 = vmatpush1.msra.mxu0 0.0
        %1558 = vmatprep.subr.mxu0 0.0
        %1559 = vmatpush1.msra.mxu0 0.0
        %1560 = vmatprep.subr.mxu0 0.0
        %1561 = vmatpush1.msra.mxu0 0.0
        %1562 = vmatprep.subr.mxu0 0.0
        %1563 = vmatpush1.msra.mxu0 0.0
        %1564 = vmatprep.subr.mxu0 0.0
        %1565 = vmatpush1.msra.mxu0 0.0
        %1566 = vmatprep.subr.mxu0 0.0
        %1567 = vmatpush1.msra.mxu0 0.0
        %1568 = vmatprep.subr.mxu0 0.0
        %1569 = vmatpush1.msra.mxu0 0.0
        %1570 = vmatprep.subr.mxu0 0.0
        %1571 = vmatpush1.msra.mxu0 0.0
        %1572 = vmatprep.subr.mxu0 0.0
        %1573 = vmatpush1.msra.mxu0 0.0
        %1574 = vmatprep.subr.mxu0 0.0
        %1575 = vmatpush1.msra.mxu0 0.0
        %1576 = vmatprep.subr.mxu0 0.0
        %1577 = vmatpush1.msra.mxu0 0.0
        %1578 = vmatprep.subr.mxu0 0.0
        %1579 = vmatpush1.msra.mxu0 0.0
        %1580 = vmatprep.subr.mxu0 0.0
        %1581 = vmatpush1.msra.mxu0 0.0
        %1582 = vmatprep.subr.mxu0 0.0
        %1583 = vmatpush1.msra.mxu0 0.0
        %1584 = vmatprep.subr.mxu0 0.0
        %1585 = vmatpush1.msra.mxu0 0.0
        %1586 = vmatprep.subr.mxu0 0.0
        %1587 = vmatpush1.msra.mxu0 0.0
        %1588 = vmatprep.subr.mxu0 0.0
        %1589 = vmatpush1.msra.mxu0 0.0
        %1590 = vmatprep.subr.mxu0 0.0
        %1591 = vmatpush1.msra.mxu0 0.0
        %1592 = vmatprep.subr.mxu0 0.0
        %1593 = vmatpush1.msra.mxu0 0.0
        %1594 = vmatprep.subr.mxu0 0.0
        %1595 = vmatpush1.msra.mxu0 0.0
        %1596 = vmatprep.subr.mxu0 0.0
        %1597 = vmatpush1.msra.mxu0 0.0
        %1598 = vmatprep.subr.mxu0 0.0
        %1599 = vmatpush1.msra.mxu0 0.0
        %1600 = vmatprep.subr.mxu0 0.0
        %1601 = vmatpush1.msra.mxu0 0.0
        %1602 = vmatprep.subr.mxu0 0.0
        %1603 = vmatpush1.msra.mxu0 0.0
        %1604 = vmatprep.subr.mxu0 0.0
        %1605 = vmatpush1.msra.mxu0 0.0
        %1606 = vmatprep.subr.mxu0 0.0
        %1607 = vmatpush1.msra.mxu0 0.0
        %1608 = vmatprep.mubr.f32.mxu0 0.0
        %1609 = vmatmul.mubr.f32.gmra.mrb[0].mxu0 %v1542
        %v1610 = vpop.f32.mrb[0].mxu0
        %v1611 = vadd.f32 0.0, %v1610
        %v1612 = vpop.f32.mrb[0].mxu0
        %1613 = vdwg.mxu0
        %v1614 = vadd.f32 %v1374, %v1611
        %v1615 = vadd.f32 %v545, %v1614
        %v1616 = vld [vmem:[%s11 + $0x3] sm:$0x1]
        %v1617 = vlaneseq
        %v1618 = vshrl.u32 %v1617, 7
        %v1619 = vsub.s32 0, %v1618
        %v1620 = vrot.slane %v1616, %v1619
        %v1621 = vadd.f32 %v1615, %v1620
        %v1622 = vld [vmem:[%s11 + $0x8] sm:$0x1]
        %v1623 = vld [vmem:[%s11 + $0x9] sm:$0x1]
        %v1624 = vsel %vm554, %v1621, 0.0
        %1625 = vadd.xlane.f32.xlu0 %v1624
        %v1626 = vpop.xlane.xlu0 %1625
        %v1627 = vrcp.pop 32.0
        %v1628 = vmul.f32 %v1626, %v1627
        %v1629 = vsub.f32 %v1621, %v1628
        %v1630 = vmul.f32 %v1629, %v1629
        %v1631 = vsel %vm554, %v1630, 0.0
        %1632 = vadd.xlane.f32.xlu0 %v1631
        %v1633 = vpop.xlane.xlu0 %1632
        %v1634 = vmul.f32 %v1633, %v1627
        %v1635 = vadd.f32 %v1634, 1e-05
        %v1636 = vrsqrt.pop %v1635
        %v1637 = vmul.f32 %v1629, %v1636
        %v1638 = vlaneseq
        %v1639 = vshrl.u32 %v1638, 7
        %v1640 = vsub.s32 0, %v1639
        %v1641 = vrot.slane %v1622, %v1640
        %v1642 = vmul.f32 %v1637, %v1641
        %v1643 = vlaneseq
        %v1644 = vshrl.u32 %v1643, 7
        %v1645 = vsub.s32 0, %v1644
        %v1646 = vrot.slane %v1623, %v1645
        %v1647 = vadd.f32 %v1642, %v1646
        %v1648 = vld [vmem:[%s6] sm:$0xff]
        %v1649 = vld [vmem:[%s6 + $0x8] sm:$0xff]
        %v1650 = vld [vmem:[%s6 + $0x10] sm:$0xff]
        %v1651 = vld [vmem:[%s6 + $0x18] sm:$0xff]
        %v1652 = vld [vmem:[%s11 + $0x4] sm:$0x1]
        %v1653 = vlaneseq
        %v1654 = vshrl.u32 %v1653, 7
        %v1655 = vsub.s32 0, %v1654
        %v1656 = vrot.slane %v1652, %v1655
        %v1658 = vsel %vm554, %v1647, 0
        %1660 = vmatprep.subr.mxu0 0.0
        %1661 = vmatpush1.msra.mxu0 %v1648
        %1662 = vmatprep.subr.mxu0 0.0
        %1663 = vmatpush1.msra.mxu0 %v1649
        %1664 = vmatprep.subr.mxu0 0.0
        %1665 = vmatpush1.msra.mxu0 %v1650
        %1666 = vmatprep.subr.mxu0 0.0
        %1667 = vmatpush1.msra.mxu0 %v1651
        %1668 = vmatprep.subr.mxu0 0.0
        %1669 = vmatpush1.msra.mxu0 0.0
        %1670 = vmatprep.subr.mxu0 0.0
        %1671 = vmatpush1.msra.mxu0 0.0
        %1672 = vmatprep.subr.mxu0 0.0
        %1673 = vmatpush1.msra.mxu0 0.0
        %1674 = vmatprep.subr.mxu0 0.0
        %1675 = vmatpush1.msra.mxu0 0.0
        %1676 = vmatprep.subr.mxu0 0.0
        %1677 = vmatpush1.msra.mxu0 0.0
        %1678 = vmatprep.subr.mxu0 0.0
        %1679 = vmatpush1.msra.mxu0 0.0
        %1680 = vmatprep.subr.mxu0 0.0
        %1681 = vmatpush1.msra.mxu0 0.0
        %1682 = vmatprep.subr.mxu0 0.0
        %1683 = vmatpush1.msra.mxu0 0.0
        %1684 = vmatprep.subr.mxu0 0.0
        %1685 = vmatpush1.msra.mxu0 0.0
        %1686 = vmatprep.subr.mxu0 0.0
        %1687 = vmatpush1.msra.mxu0 0.0
        %1688 = vmatprep.subr.mxu0 0.0
        %1689 = vmatpush1.msra.mxu0 0.0
        %1690 = vmatprep.subr.mxu0 0.0
        %1691 = vmatpush1.msra.mxu0 0.0
        %1692 = vmatprep.subr.mxu0 0.0
        %1693 = vmatpush1.msra.mxu0 0.0
        %1694 = vmatprep.subr.mxu0 0.0
        %1695 = vmatpush1.msra.mxu0 0.0
        %1696 = vmatprep.subr.mxu0 0.0
        %1697 = vmatpush1.msra.mxu0 0.0
        %1698 = vmatprep.subr.mxu0 0.0
        %1699 = vmatpush1.msra.mxu0 0.0
        %1700 = vmatprep.subr.mxu0 0.0
        %1701 = vmatpush1.msra.mxu0 0.0
        %1702 = vmatprep.subr.mxu0 0.0
        %1703 = vmatpush1.msra.mxu0 0.0
        %1704 = vmatprep.subr.mxu0 0.0
        %1705 = vmatpush1.msra.mxu0 0.0
        %1706 = vmatprep.subr.mxu0 0.0
        %1707 = vmatpush1.msra.mxu0 0.0
        %1708 = vmatprep.subr.mxu0 0.0
        %1709 = vmatpush1.msra.mxu0 0.0
        %1710 = vmatprep.subr.mxu0 0.0
        %1711 = vmatpush1.msra.mxu0 0.0
        %1712 = vmatprep.subr.mxu0 0.0
        %1713 = vmatpush1.msra.mxu0 0.0
        %1714 = vmatprep.subr.mxu0 0.0
        %1715 = vmatpush1.msra.mxu0 0.0
        %1716 = vmatprep.subr.mxu0 0.0
        %1717 = vmatpush1.msra.mxu0 0.0
        %1718 = vmatprep.subr.mxu0 0.0
        %1719 = vmatpush1.msra.mxu0 0.0
        %1720 = vmatprep.subr.mxu0 0.0
        %1721 = vmatpush1.msra.mxu0 0.0
        %1722 = vmatprep.subr.mxu0 0.0
        %1723 = vmatpush1.msra.mxu0 0.0
        %1724 = vmatprep.mubr.f32.mxu0 0.0
        %1725 = vmatmul.mubr.f32.gmra.mrb[0].mxu0 %v1658
        %v1726 = vpop.f32.mrb[0].mxu0
        %v1727 = vadd.f32 %v1656, %v1726
        %v1728 = vpop.f32.mrb[0].mxu0
        %1729 = vdwg.mxu0
        %v1730 = vmul.f32 %v1727, 0.35355338
        %v1731 = vld [vmem:[#allocation8] sm:$0xff]
        %v1732 = vld [vmem:[#allocation8 + $0x8] sm:$0xff]
        %v1733 = vld [vmem:[#allocation8 + $0x10] sm:$0xff]
        %v1734 = vld [vmem:[#allocation8 + $0x18] sm:$0xff]
        %v1736 = vsel %vm554, %v546, 0
        %v1739 = vsel %vm554, %v547, 0
        %1741 = vmatprep.subr.mxu0 0.0
        %1742 = vmatpush1.msra.mxu0 %v1731
        %1743 = vmatprep.subr.mxu0 0.0
        %1744 = vmatpush1.msra.mxu0 %v1732
        %1745 = vmatprep.subr.mxu0 0.0
        %1746 = vmatpush1.msra.mxu0 %v1733
        %1747 = vmatprep.subr.mxu0 0.0
        %1748 = vmatpush1.msra.mxu0 %v1734
        %1749 = vmatprep.subr.mxu0 0.0
        %1750 = vmatpush1.msra.mxu0 0.0
        %1751 = vmatprep.subr.mxu0 0.0
        %1752 = vmatpush1.msra.mxu0 0.0
        %1753 = vmatprep.subr.mxu0 0.0
        %1754 = vmatpush1.msra.mxu0 0.0
        %1755 = vmatprep.subr.mxu0 0.0
        %1756 = vmatpush1.msra.mxu0 0.0
        %1757 = vmatprep.subr.mxu0 0.0
        %1758 = vmatpush1.msra.mxu0 0.0
        %1759 = vmatprep.subr.mxu0 0.0
        %1760 = vmatpush1.msra.mxu0 0.0
        %1761 = vmatprep.subr.mxu0 0.0
        %1762 = vmatpush1.msra.mxu0 0.0
        %1763 = vmatprep.subr.mxu0 0.0
        %1764 = vmatpush1.msra.mxu0 0.0
        %1765 = vmatprep.subr.mxu0 0.0
        %1766 = vmatpush1.msra.mxu0 0.0
        %1767 = vmatprep.subr.mxu0 0.0
        %1768 = vmatpush1.msra.mxu0 0.0
        %1769 = vmatprep.subr.mxu0 0.0
        %1770 = vmatpush1.msra.mxu0 0.0
        %1771 = vmatprep.subr.mxu0 0.0
        %1772 = vmatpush1.msra.mxu0 0.0
        %1773 = vmatprep.subr.mxu0 0.0
        %1774 = vmatpush1.msra.mxu0 0.0
        %1775 = vmatprep.subr.mxu0 0.0
        %1776 = vmatpush1.msra.mxu0 0.0
        %1777 = vmatprep.subr.mxu0 0.0
        %1778 = vmatpush1.msra.mxu0 0.0
        %1779 = vmatprep.subr.mxu0 0.0
        %1780 = vmatpush1.msra.mxu0 0.0
        %1781 = vmatprep.subr.mxu0 0.0
        %1782 = vmatpush1.msra.mxu0 0.0
        %1783 = vmatprep.subr.mxu0 0.0
        %1784 = vmatpush1.msra.mxu0 0.0
        %1785 = vmatprep.subr.mxu0 0.0
        %1786 = vmatpush1.msra.mxu0 0.0
        %1787 = vmatprep.subr.mxu0 0.0
        %1788 = vmatpush1.msra.mxu0 0.0
        %1789 = vmatprep.subr.mxu0 0.0
        %1790 = vmatpush1.msra.mxu0 0.0
        %1791 = vmatprep.subr.mxu0 0.0
        %1792 = vmatpush1.msra.mxu0 0.0
        %1793 = vmatprep.subr.mxu0 0.0
        %1794 = vmatpush1.msra.mxu0 0.0
        %1795 = vmatprep.subr.mxu0 0.0
        %1796 = vmatpush1.msra.mxu0 0.0
        %1797 = vmatprep.subr.mxu0 0.0
        %1798 = vmatpush1.msra.mxu0 0.0
        %1799 = vmatprep.subr.mxu0 0.0
        %1800 = vmatpush1.msra.mxu0 0.0
        %1801 = vmatprep.subr.mxu0 0.0
        %1802 = vmatpush1.msra.mxu0 0.0
        %1803 = vmatprep.subr.mxu0 0.0
        %1804 = vmatpush1.msra.mxu0 0.0
        %1805 = vmatprep.mubr.f32.mxu0 0.0
        %1806 = vmatmul.mubr.f32.gmra.mrb[0].mxu0 %v1736
        %v1807 = vpop.f32.mrb[0].mxu0
        %v1808 = vadd.f32 0.0, %v1807
        %v1809 = vpop.f32.mrb[0].mxu0
        %1810 = vmatprep.mubr.f32.mxu0 0.0
        %1811 = vmatmul.mubr.f32.gmra.mrb[0].mxu0 %v1739
        %v1812 = vpop.f32.mrb[0].mxu0
        %v1813 = vadd.f32 0.0, %v1812
        %v1814 = vpop.f32.mrb[0].mxu0
        %1815 = vdwg.mxu0
        %v1816 = vld [vmem:[%s11 + $0x5] sm:$0x1]
        %v1817 = vlaneseq
        %v1818 = vshrl.u32 %v1817, 7
        %v1819 = vsub.s32 0, %v1818
        %v1820 = vrot.slane %v1816, %v1819
        %v1821 = vadd.f32 %v1808, %v1820
        %v1822 = vadd.f32 %v1813, %v1820
        %v1823 = vld [vmem:[%s11 + $0x6] sm:$0x1]
        %v1824 = vlaneseq
        %v1825 = vshrl.u32 %v1824, 7
        %v1826 = vsub.s32 0, %v1825
        %v1827 = vrot.slane %v1823, %v1826
        %1829 = vrot.lane.b32.xlu0 %v1827, 32
        %v1830 = vpop.permute.xlu0 %1829
        %v1832 = vadd.f32 %v1808, %v1830
        %v1833 = vadd.f32 %v1813, %v1830
        %v1835 = vsel %vm658, %v1730, 0
        %v1838 = vsel %vm658, %v1821, 0
        %v1841 = vsel %vm658, %v1822, 0
        %1843 = vmatprep.subr.mxu0 0.0
        %1844 = vmatpush1.xpose.msra.mxu0 %v1838
        %1845 = vmatprep.subr.mxu0 0.0
        %1846 = vmatpush1.xpose.msra.mxu0 %v1841
        %1847 = vmatprep.subr.mxu0 0.0
        %1848 = vmatpush1.xpose.msra.mxu0 0.0
        %1849 = vmatprep.subr.mxu0 0.0
        %1850 = vmatpush1.xpose.msra.mxu0 0.0
        %1851 = vmatprep.subr.mxu0 0.0
        %1852 = vmatpush1.xpose.msra.mxu0 0.0
        %1853 = vmatprep.subr.mxu0 0.0
        %1854 = vmatpush1.xpose.msra.mxu0 0.0
        %1855 = vmatprep.subr.mxu0 0.0
        %1856 = vmatpush1.xpose.msra.mxu0 0.0
        %1857 = vmatprep.subr.mxu0 0.0
        %1858 = vmatpush1.xpose.msra.mxu0 0.0
        %1859 = vmatprep.subr.mxu0 0.0
        %1860 = vmatpush1.xpose.msra.mxu0 0.0
        %1861 = vmatprep.subr.mxu0 0.0
        %1862 = vmatpush1.xpose.msra.mxu0 0.0
        %1863 = vmatprep.subr.mxu0 0.0
        %1864 = vmatpush1.xpose.msra.mxu0 0.0
        %1865 = vmatprep.subr.mxu0 0.0
        %1866 = vmatpush1.xpose.msra.mxu0 0.0
        %1867 = vmatprep.subr.mxu0 0.0
        %1868 = vmatpush1.xpose.msra.mxu0 0.0
        %1869 = vmatprep.subr.mxu0 0.0
        %1870 = vmatpush1.xpose.msra.mxu0 0.0
        %1871 = vmatprep.subr.mxu0 0.0
        %1872 = vmatpush1.xpose.msra.mxu0 0.0
        %1873 = vmatprep.subr.mxu0 0.0
        %1874 = vmatpush1.xpose.msra.mxu0 0.0
        %1875 = vmatprep.subr.mxu0 0.0
        %1876 = vmatpush1.xpose.msra.mxu0 0.0
        %1877 = vmatprep.subr.mxu0 0.0
        %1878 = vmatpush1.xpose.msra.mxu0 0.0
        %1879 = vmatprep.subr.mxu0 0.0
        %1880 = vmatpush1.xpose.msra.mxu0 0.0
        %1881 = vmatprep.subr.mxu0 0.0
        %1882 = vmatpush1.xpose.msra.mxu0 0.0
        %1883 = vmatprep.subr.mxu0 0.0
        %1884 = vmatpush1.xpose.msra.mxu0 0.0
        %1885 = vmatprep.subr.mxu0 0.0
        %1886 = vmatpush1.xpose.msra.mxu0 0.0
        %1887 = vmatprep.subr.mxu0 0.0
        %1888 = vmatpush1.xpose.msra.mxu0 0.0
        %1889 = vmatprep.subr.mxu0 0.0
        %1890 = vmatpush1.xpose.msra.mxu0 0.0
        %1891 = vmatprep.subr.mxu0 0.0
        %1892 = vmatpush1.xpose.msra.mxu0 0.0
        %1893 = vmatprep.subr.mxu0 0.0
        %1894 = vmatpush1.xpose.msra.mxu0 0.0
        %1895 = vmatprep.subr.mxu0 0.0
        %1896 = vmatpush1.xpose.msra.mxu0 0.0
        %1897 = vmatprep.subr.mxu0 0.0
        %1898 = vmatpush1.xpose.msra.mxu0 0.0
        %1899 = vmatprep.subr.mxu0 0.0
        %1900 = vmatpush1.xpose.msra.mxu0 0.0
        %1901 = vmatprep.subr.mxu0 0.0
        %1902 = vmatpush1.xpose.msra.mxu0 0.0
        %1903 = vmatprep.subr.mxu0 0.0
        %1904 = vmatpush1.xpose.msra.mxu0 0.0
        %1905 = vmatprep.subr.mxu0 0.0
        %1906 = vmatpush1.xpose.msra.mxu0 0.0
        %1907 = vmatprep.mubr.f32.mxu0 0.0
        %1908 = vmatmul.mubr.f32.gmra.mrb[0].mxu0 %v1835
        %v1909 = vpop.f32.mrb[0].mxu0
        %v1910 = vadd.f32 %v549, %v1909
        %v1911 = vpop.f32.mrb[0].mxu0
        %1912 = vdwg.mxu0
        %vm1913 = vcmask 130048
        %v1914 = vsel %vm1913, %v1910, -inf
        %1915 = vmax.xlane.f32.xlu0 %v1914
        %v1916 = vpop.xlane.xlu0 %1915
        %v1917 = vsub.f32 %v1910, %v1916
        %v1918 = vmul.f32 %v1917, 1.442695
        %v1919 = vpow.pop %v1918
        %v1920 = vsel %vm1913, %v1919, 0.0
        %1921 = vadd.xlane.f32.xlu0 %v1920
        %v1922 = vpop.xlane.xlu0 %1921
        %v1923 = vrcp.pop %v1922
        %v1924 = vmul.f32 %v1919, %v1923
        %1927 = vrot.lane.b32.xlu0 %v1832, 96
        %v1928 = vpop.permute.xlu0 %1927
        %1929 = vrot.lane.b32.xlu0 %v1833, 96
        %v1930 = vpop.permute.xlu0 %1929
        %v1934 = vsel %vm1913, %v1924, 0
        %1936 = vmatprep.subr.mxu0 0.0
        %1937 = vmatpush1.msra.mxu0 %v1928
        %1938 = vmatprep.subr.mxu0 0.0
        %1939 = vmatpush1.msra.mxu0 %v1930
        %1940 = vmatprep.subr.mxu0 0.0
        %1941 = vmatpush1.msra.mxu0 0.0
        %1942 = vmatprep.subr.mxu0 0.0
        %1943 = vmatpush1.msra.mxu0 0.0
        %1944 = vmatprep.subr.mxu0 0.0
        %1945 = vmatpush1.msra.mxu0 0.0
        %1946 = vmatprep.subr.mxu0 0.0
        %1947 = vmatpush1.msra.mxu0 0.0
        %1948 = vmatprep.subr.mxu0 0.0
        %1949 = vmatpush1.msra.mxu0 0.0
        %1950 = vmatprep.subr.mxu0 0.0
        %1951 = vmatpush1.msra.mxu0 0.0
        %1952 = vmatprep.subr.mxu0 0.0
        %1953 = vmatpush1.msra.mxu0 0.0
        %1954 = vmatprep.subr.mxu0 0.0
        %1955 = vmatpush1.msra.mxu0 0.0
        %1956 = vmatprep.subr.mxu0 0.0
        %1957 = vmatpush1.msra.mxu0 0.0
        %1958 = vmatprep.subr.mxu0 0.0
        %1959 = vmatpush1.msra.mxu0 0.0
        %1960 = vmatprep.subr.mxu0 0.0
        %1961 = vmatpush1.msra.mxu0 0.0
        %1962 = vmatprep.subr.mxu0 0.0
        %1963 = vmatpush1.msra.mxu0 0.0
        %1964 = vmatprep.subr.mxu0 0.0
        %1965 = vmatpush1.msra.mxu0 0.0
        %1966 = vmatprep.subr.mxu0 0.0
        %1967 = vmatpush1.msra.mxu0 0.0
        %1968 = vmatprep.subr.mxu0 0.0
        %1969 = vmatpush1.msra.mxu0 0.0
        %1970 = vmatprep.subr.mxu0 0.0
        %1971 = vmatpush1.msra.mxu0 0.0
        %1972 = vmatprep.subr.mxu0 0.0
        %1973 = vmatpush1.msra.mxu0 0.0
        %1974 = vmatprep.subr.mxu0 0.0
        %1975 = vmatpush1.msra.mxu0 0.0
        %1976 = vmatprep.subr.mxu0 0.0
        %1977 = vmatpush1.msra.mxu0 0.0
        %1978 = vmatprep.subr.mxu0 0.0
        %1979 = vmatpush1.msra.mxu0 0.0
        %1980 = vmatprep.subr.mxu0 0.0
        %1981 = vmatpush1.msra.mxu0 0.0
        %1982 = vmatprep.subr.mxu0 0.0
        %1983 = vmatpush1.msra.mxu0 0.0
        %1984 = vmatprep.subr.mxu0 0.0
        %1985 = vmatpush1.msra.mxu0 0.0
        %1986 = vmatprep.subr.mxu0 0.0
        %1987 = vmatpush1.msra.mxu0 0.0
        %1988 = vmatprep.subr.mxu0 0.0
        %1989 = vmatpush1.msra.mxu0 0.0
        %1990 = vmatprep.subr.mxu0 0.0
        %1991 = vmatpush1.msra.mxu0 0.0
        %1992 = vmatprep.subr.mxu0 0.0
        %1993 = vmatpush1.msra.mxu0 0.0
        %1994 = vmatprep.subr.mxu0 0.0
        %1995 = vmatpush1.msra.mxu0 0.0
        %1996 = vmatprep.subr.mxu0 0.0
        %1997 = vmatpush1.msra.mxu0 0.0
        %1998 = vmatprep.subr.mxu0 0.0
        %1999 = vmatpush1.msra.mxu0 0.0
        %2000 = vmatprep.mubr.f32.mxu0 0.0
        %2001 = vmatmul.mubr.f32.gmra.mrb[0].mxu0 %v1934
        %v2002 = vpop.f32.mrb[0].mxu0
        %v2003 = vadd.f32 0.0, %v2002
        %v2004 = vpop.f32.mrb[0].mxu0
        %2005 = vdwg.mxu0
        %v2006 = vld [vmem:[#allocation10] sm:$0xff]
        %2007 = vrot.lane.b32.xlu0 %v1730, 120
        %v2008 = vpop.permute.xlu0 %2007
        %2009 = vrot.lane.b32.xlu0 %v1821, 120
        %v2010 = vpop.permute.xlu0 %2009
        %2011 = vrot.lane.b32.xlu0 %v1822, 120
        %v2012 = vpop.permute.xlu0 %2011
        %v2013 = vsel %vm658, %v2008, 0
        %v2015 = vsel %vm658, %v2010, 0
        %v2017 = vsel %vm658, %v2012, 0
        %2019 = vmatprep.subr.mxu0 0.0
        %2020 = vmatpush1.xpose.msra.mxu0 %v2015
        %2021 = vmatprep.subr.mxu0 0.0
        %2022 = vmatpush1.xpose.msra.mxu0 %v2017
        %2023 = vmatprep.subr.mxu0 0.0
        %2024 = vmatpush1.xpose.msra.mxu0 0.0
        %2025 = vmatprep.subr.mxu0 0.0
        %2026 = vmatpush1.xpose.msra.mxu0 0.0
        %2027 = vmatprep.subr.mxu0 0.0
        %2028 = vmatpush1.xpose.msra.mxu0 0.0
        %2029 = vmatprep.subr.mxu0 0.0
        %2030 = vmatpush1.xpose.msra.mxu0 0.0
        %2031 = vmatprep.subr.mxu0 0.0
        %2032 = vmatpush1.xpose.msra.mxu0 0.0
        %2033 = vmatprep.subr.mxu0 0.0
        %2034 = vmatpush1.xpose.msra.mxu0 0.0
        %2035 = vmatprep.subr.mxu0 0.0
        %2036 = vmatpush1.xpose.msra.mxu0 0.0
        %2037 = vmatprep.subr.mxu0 0.0
        %2038 = vmatpush1.xpose.msra.mxu0 0.0
        %2039 = vmatprep.subr.mxu0 0.0
        %2040 = vmatpush1.xpose.msra.mxu0 0.0
        %2041 = vmatprep.subr.mxu0 0.0
        %2042 = vmatpush1.xpose.msra.mxu0 0.0
        %2043 = vmatprep.subr.mxu0 0.0
        %2044 = vmatpush1.xpose.msra.mxu0 0.0
        %2045 = vmatprep.subr.mxu0 0.0
        %2046 = vmatpush1.xpose.msra.mxu0 0.0
        %2047 = vmatprep.subr.mxu0 0.0
        %2048 = vmatpush1.xpose.msra.mxu0 0.0
        %2049 = vmatprep.subr.mxu0 0.0
        %2050 = vmatpush1.xpose.msra.mxu0 0.0
        %2051 = vmatprep.subr.mxu0 0.0
        %2052 = vmatpush1.xpose.msra.mxu0 0.0
        %2053 = vmatprep.subr.mxu0 0.0
        %2054 = vmatpush1.xpose.msra.mxu0 0.0
        %2055 = vmatprep.subr.mxu0 0.0
        %2056 = vmatpush1.xpose.msra.mxu0 0.0
        %2057 = vmatprep.subr.mxu0 0.0
        %2058 = vmatpush1.xpose.msra.mxu0 0.0
        %2059 = vmatprep.subr.mxu0 0.0
        %2060 = vmatpush1.xpose.msra.mxu0 0.0
        %2061 = vmatprep.subr.mxu0 0.0
        %2062 = vmatpush1.xpose.msra.mxu0 0.0
        %2063 = vmatprep.subr.mxu0 0.0
        %2064 = vmatpush1.xpose.msra.mxu0 0.0
        %2065 = vmatprep.subr.mxu0 0.0
        %2066 = vmatpush1.xpose.msra.mxu0 0.0
        %2067 = vmatprep.subr.mxu0 0.0
        %2068 = vmatpush1.xpose.msra.mxu0 0.0
        %2069 = vmatprep.subr.mxu0 0.0
        %2070 = vmatpush1.xpose.msra.mxu0 0.0
        %2071 = vmatprep.subr.mxu0 0.0
        %2072 = vmatpush1.xpose.msra.mxu0 0.0
        %2073 = vmatprep.subr.mxu0 0.0
        %2074 = vmatpush1.xpose.msra.mxu0 0.0
        %2075 = vmatprep.subr.mxu0 0.0
        %2076 = vmatpush1.xpose.msra.mxu0 0.0
        %2077 = vmatprep.subr.mxu0 0.0
        %2078 = vmatpush1.xpose.msra.mxu0 0.0
        %2079 = vmatprep.subr.mxu0 0.0
        %2080 = vmatpush1.xpose.msra.mxu0 0.0
        %2081 = vmatprep.subr.mxu0 0.0
        %2082 = vmatpush1.xpose.msra.mxu0 0.0
        %2083 = vmatprep.mubr.f32.mxu0 0.0
        %2084 = vmatmul.mubr.f32.gmra.mrb[0].mxu0 %v2013
        %v2085 = vpop.f32.mrb[0].mxu0
        %v2086 = vadd.f32 %v549, %v2085
        %v2087 = vpop.f32.mrb[0].mxu0
        %2088 = vdwg.mxu0
        %v2089 = vsel %vm1913, %v2086, -inf
        %2090 = vmax.xlane.f32.xlu0 %v2089
        %v2091 = vpop.xlane.xlu0 %2090
        %v2092 = vsub.f32 %v2086, %v2091
        %v2093 = vmul.f32 %v2092, 1.442695
        %v2094 = vpow.pop %v2093
        %v2095 = vsel %vm1913, %v2094, 0.0
        %2096 = vadd.xlane.f32.xlu0 %v2095
        %v2097 = vpop.xlane.xlu0 %2096
        %v2098 = vrcp.pop %v2097
        %v2099 = vmul.f32 %v2094, %v2098
        %2100 = vrot.lane.b32.xlu0 %v1832, 88
        %v2101 = vpop.permute.xlu0 %2100
        %2102 = vrot.lane.b32.xlu0 %v1833, 88
        %v2103 = vpop.permute.xlu0 %2102
        %v2107 = vsel %vm1913, %v2099, 0
        %2109 = vmatprep.subr.mxu0 0.0
        %2110 = vmatpush1.msra.mxu0 %v2101
        %2111 = vmatprep.subr.mxu0 0.0
        %2112 = vmatpush1.msra.mxu0 %v2103
        %2113 = vmatprep.subr.mxu0 0.0
        %2114 = vmatpush1.msra.mxu0 0.0
        %2115 = vmatprep.subr.mxu0 0.0
        %2116 = vmatpush1.msra.mxu0 0.0
        %2117 = vmatprep.subr.mxu0 0.0
        %2118 = vmatpush1.msra.mxu0 0.0
        %2119 = vmatprep.subr.mxu0 0.0
        %2120 = vmatpush1.msra.mxu0 0.0
        %2121 = vmatprep.subr.mxu0 0.0
        %2122 = vmatpush1.msra.mxu0 0.0
        %2123 = vmatprep.subr.mxu0 0.0
        %2124 = vmatpush1.msra.mxu0 0.0
        %2125 = vmatprep.subr.mxu0 0.0
        %2126 = vmatpush1.msra.mxu0 0.0
        %2127 = vmatprep.subr.mxu0 0.0
        %2128 = vmatpush1.msra.mxu0 0.0
        %2129 = vmatprep.subr.mxu0 0.0
        %2130 = vmatpush1.msra.mxu0 0.0
        %2131 = vmatprep.subr.mxu0 0.0
        %2132 = vmatpush1.msra.mxu0 0.0
        %2133 = vmatprep.subr.mxu0 0.0
        %2134 = vmatpush1.msra.mxu0 0.0
        %2135 = vmatprep.subr.mxu0 0.0
        %2136 = vmatpush1.msra.mxu0 0.0
        %2137 = vmatprep.subr.mxu0 0.0
        %2138 = vmatpush1.msra.mxu0 0.0
        %2139 = vmatprep.subr.mxu0 0.0
        %2140 = vmatpush1.msra.mxu0 0.0
        %2141 = vmatprep.subr.mxu0 0.0
        %2142 = vmatpush1.msra.mxu0 0.0
        %2143 = vmatprep.subr.mxu0 0.0
        %2144 = vmatpush1.msra.mxu0 0.0
        %2145 = vmatprep.subr.mxu0 0.0
        %2146 = vmatpush1.msra.mxu0 0.0
        %2147 = vmatprep.subr.mxu0 0.0
        %2148 = vmatpush1.msra.mxu0 0.0
        %2149 = vmatprep.subr.mxu0 0.0
        %2150 = vmatpush1.msra.mxu0 0.0
        %2151 = vmatprep.subr.mxu0 0.0
        %2152 = vmatpush1.msra.mxu0 0.0
        %2153 = vmatprep.subr.mxu0 0.0
        %2154 = vmatpush1.msra.mxu0 0.0
        %2155 = vmatprep.subr.mxu0 0.0
        %2156 = vmatpush1.msra.mxu0 0.0
        %2157 = vmatprep.subr.mxu0 0.0
        %2158 = vmatpush1.msra.mxu0 0.0
        %2159 = vmatprep.subr.mxu0 0.0
        %2160 = vmatpush1.msra.mxu0 0.0
        %2161 = vmatprep.subr.mxu0 0.0
        %2162 = vmatpush1.msra.mxu0 0.0
        %2163 = vmatprep.subr.mxu0 0.0
        %2164 = vmatpush1.msra.mxu0 0.0
        %2165 = vmatprep.subr.mxu0 0.0
        %2166 = vmatpush1.msra.mxu0 0.0
        %2167 = vmatprep.subr.mxu0 0.0
        %2168 = vmatpush1.msra.mxu0 0.0
        %2169 = vmatprep.subr.mxu0 0.0
        %2170 = vmatpush1.msra.mxu0 0.0
        %2171 = vmatprep.subr.mxu0 0.0
        %2172 = vmatpush1.msra.mxu0 0.0
        %2173 = vmatprep.mubr.f32.mxu0 0.0
        %2174 = vmatmul.mubr.f32.gmra.mrb[0].mxu0 %v2107
        %v2175 = vpop.f32.mrb[0].mxu0
        %v2176 = vadd.f32 0.0, %v2175
        %v2177 = vpop.f32.mrb[0].mxu0
        %2178 = vdwg.mxu0
        %v2179 = vld [vmem:[#allocation10 + $0x8] sm:$0xff]
        %v2181 = vsel %vm658, %v2176, 0
        %2183 = vmatprep.subr.mxu0 0.0
        %2184 = vmatpush1.msra.mxu0 %v2179
        %2185 = vmatprep.subr.mxu0 0.0
        %2186 = vmatpush1.msra.mxu0 0.0
        %2187 = vmatprep.subr.mxu0 0.0
        %2188 = vmatpush1.msra.mxu0 0.0
        %2189 = vmatprep.subr.mxu0 0.0
        %2190 = vmatpush1.msra.mxu0 0.0
        %2191 = vmatprep.subr.mxu0 0.0
        %2192 = vmatpush1.msra.mxu0 0.0
        %2193 = vmatprep.subr.mxu0 0.0
        %2194 = vmatpush1.msra.mxu0 0.0
        %2195 = vmatprep.subr.mxu0 0.0
        %2196 = vmatpush1.msra.mxu0 0.0
        %2197 = vmatprep.subr.mxu0 0.0
        %2198 = vmatpush1.msra.mxu0 0.0
        %2199 = vmatprep.subr.mxu0 0.0
        %2200 = vmatpush1.msra.mxu0 0.0
        %2201 = vmatprep.subr.mxu0 0.0
        %2202 = vmatpush1.msra.mxu0 0.0
        %2203 = vmatprep.subr.mxu0 0.0
        %2204 = vmatpush1.msra.mxu0 0.0
        %2205 = vmatprep.subr.mxu0 0.0
        %2206 = vmatpush1.msra.mxu0 0.0
        %2207 = vmatprep.subr.mxu0 0.0
        %2208 = vmatpush1.msra.mxu0 0.0
        %2209 = vmatprep.subr.mxu0 0.0
        %2210 = vmatpush1.msra.mxu0 0.0
        %2211 = vmatprep.subr.mxu0 0.0
        %2212 = vmatpush1.msra.mxu0 0.0
        %2213 = vmatprep.subr.mxu0 0.0
        %2214 = vmatpush1.msra.mxu0 0.0
        %2215 = vmatprep.subr.mxu0 0.0
        %2216 = vmatpush1.msra.mxu0 0.0
        %2217 = vmatprep.subr.mxu0 0.0
        %2218 = vmatpush1.msra.mxu0 0.0
        %2219 = vmatprep.subr.mxu0 0.0
        %2220 = vmatpush1.msra.mxu0 0.0
        %2221 = vmatprep.subr.mxu0 0.0
        %2222 = vmatpush1.msra.mxu0 0.0
        %2223 = vmatprep.subr.mxu0 0.0
        %2224 = vmatpush1.msra.mxu0 0.0
        %2225 = vmatprep.subr.mxu0 0.0
        %2226 = vmatpush1.msra.mxu0 0.0
        %2227 = vmatprep.subr.mxu0 0.0
        %2228 = vmatpush1.msra.mxu0 0.0
        %2229 = vmatprep.subr.mxu0 0.0
        %2230 = vmatpush1.msra.mxu0 0.0
        %2231 = vmatprep.subr.mxu0 0.0
        %2232 = vmatpush1.msra.mxu0 0.0
        %2233 = vmatprep.subr.mxu0 0.0
        %2234 = vmatpush1.msra.mxu0 0.0
        %2235 = vmatprep.subr.mxu0 0.0
        %2236 = vmatpush1.msra.mxu0 0.0
        %2237 = vmatprep.subr.mxu0 0.0
        %2238 = vmatpush1.msra.mxu0 0.0
        %2239 = vmatprep.subr.mxu0 0.0
        %2240 = vmatpush1.msra.mxu0 0.0
        %2241 = vmatprep.subr.mxu0 0.0
        %2242 = vmatpush1.msra.mxu0 0.0
        %2243 = vmatprep.subr.mxu0 0.0
        %2244 = vmatpush1.msra.mxu0 0.0
        %2245 = vmatprep.subr.mxu0 0.0
        %2246 = vmatpush1.msra.mxu0 0.0
        %2247 = vmatprep.mubr.f32.mxu0 0.0
        %2248 = vmatmul.mubr.f32.gmra.mrb[0].mxu0 %v2181
        %v2249 = vpop.f32.mrb[0].mxu0
        %v2250 = vadd.f32 0.0, %v2249
        %v2251 = vpop.f32.mrb[0].mxu0
        %2252 = vdwg.mxu0
        %v2254 = vsel %vm658, %v2003, 0
        %2256 = vmatprep.subr.mxu0 0.0
        %2257 = vmatpush1.msra.mxu0 %v2006
        %2258 = vmatprep.subr.mxu0 0.0
        %2259 = vmatpush1.msra.mxu0 0.0
        %2260 = vmatprep.subr.mxu0 0.0
        %2261 = vmatpush1.msra.mxu0 0.0
        %2262 = vmatprep.subr.mxu0 0.0
        %2263 = vmatpush1.msra.mxu0 0.0
        %2264 = vmatprep.subr.mxu0 0.0
        %2265 = vmatpush1.msra.mxu0 0.0
        %2266 = vmatprep.subr.mxu0 0.0
        %2267 = vmatpush1.msra.mxu0 0.0
        %2268 = vmatprep.subr.mxu0 0.0
        %2269 = vmatpush1.msra.mxu0 0.0
        %2270 = vmatprep.subr.mxu0 0.0
        %2271 = vmatpush1.msra.mxu0 0.0
        %2272 = vmatprep.subr.mxu0 0.0
        %2273 = vmatpush1.msra.mxu0 0.0
        %2274 = vmatprep.subr.mxu0 0.0
        %2275 = vmatpush1.msra.mxu0 0.0
        %2276 = vmatprep.subr.mxu0 0.0
        %2277 = vmatpush1.msra.mxu0 0.0
        %2278 = vmatprep.subr.mxu0 0.0
        %2279 = vmatpush1.msra.mxu0 0.0
        %2280 = vmatprep.subr.mxu0 0.0
        %2281 = vmatpush1.msra.mxu0 0.0
        %2282 = vmatprep.subr.mxu0 0.0
        %2283 = vmatpush1.msra.mxu0 0.0
        %2284 = vmatprep.subr.mxu0 0.0
        %2285 = vmatpush1.msra.mxu0 0.0
        %2286 = vmatprep.subr.mxu0 0.0
        %2287 = vmatpush1.msra.mxu0 0.0
        %2288 = vmatprep.subr.mxu0 0.0
        %2289 = vmatpush1.msra.mxu0 0.0
        %2290 = vmatprep.subr.mxu0 0.0
        %2291 = vmatpush1.msra.mxu0 0.0
        %2292 = vmatprep.subr.mxu0 0.0
        %2293 = vmatpush1.msra.mxu0 0.0
        %2294 = vmatprep.subr.mxu0 0.0
        %2295 = vmatpush1.msra.mxu0 0.0
        %2296 = vmatprep.subr.mxu0 0.0
        %2297 = vmatpush1.msra.mxu0 0.0
        %2298 = vmatprep.subr.mxu0 0.0
        %2299 = vmatpush1.msra.mxu0 0.0
        %2300 = vmatprep.subr.mxu0 0.0
        %2301 = vmatpush1.msra.mxu0 0.0
        %2302 = vmatprep.subr.mxu0 0.0
        %2303 = vmatpush1.msra.mxu0 0.0
        %2304 = vmatprep.subr.mxu0 0.0
        %2305 = vmatpush1.msra.mxu0 0.0
        %2306 = vmatprep.subr.mxu0 0.0
        %2307 = vmatpush1.msra.mxu0 0.0
        %2308 = vmatprep.subr.mxu0 0.0
        %2309 = vmatpush1.msra.mxu0 0.0
        %2310 = vmatprep.subr.mxu0 0.0
        %2311 = vmatpush1.msra.mxu0 0.0
        %2312 = vmatprep.subr.mxu0 0.0
        %2313 = vmatpush1.msra.mxu0 0.0
        %2314 = vmatprep.subr.mxu0 0.0
        %2315 = vmatpush1.msra.mxu0 0.0
        %2316 = vmatprep.subr.mxu0 0.0
        %2317 = vmatpush1.msra.mxu0 0.0
        %2318 = vmatprep.subr.mxu0 0.0
        %2319 = vmatpush1.msra.mxu0 0.0
        %2320 = vmatprep.mubr.f32.mxu0 0.0
        %2321 = vmatmul.mubr.f32.gmra.mrb[0].mxu0 %v2254
        %v2322 = vpop.f32.mrb[0].mxu0
        %v2323 = vadd.f32 %v2250, %v2322
        %v2324 = vpop.f32.mrb[0].mxu0
        %2325 = vdwg.mxu0
        %2326 = vrot.lane.b32.xlu0 %v1730, 112
        %v2327 = vpop.permute.xlu0 %2326
        %2328 = vrot.lane.b32.xlu0 %v1821, 112
        %v2329 = vpop.permute.xlu0 %2328
        %2330 = vrot.lane.b32.xlu0 %v1822, 112
        %v2331 = vpop.permute.xlu0 %2330
        %v2332 = vsel %vm658, %v2327, 0
        %v2334 = vsel %vm658, %v2329, 0
        %v2336 = vsel %vm658, %v2331, 0
        %2338 = vmatprep.subr.mxu0 0.0
        %2339 = vmatpush1.xpose.msra.mxu0 %v2334
        %2340 = vmatprep.subr.mxu0 0.0
        %2341 = vmatpush1.xpose.msra.mxu0 %v2336
        %2342 = vmatprep.subr.mxu0 0.0
        %2343 = vmatpush1.xpose.msra.mxu0 0.0
        %2344 = vmatprep.subr.mxu0 0.0
        %2345 = vmatpush1.xpose.msra.mxu0 0.0
        %2346 = vmatprep.subr.mxu0 0.0
        %2347 = vmatpush1.xpose.msra.mxu0 0.0
        %2348 = vmatprep.subr.mxu0 0.0
        %2349 = vmatpush1.xpose.msra.mxu0 0.0
        %2350 = vmatprep.subr.mxu0 0.0
        %2351 = vmatpush1.xpose.msra.mxu0 0.0
        %2352 = vmatprep.subr.mxu0 0.0
        %2353 = vmatpush1.xpose.msra.mxu0 0.0
        %2354 = vmatprep.subr.mxu0 0.0
        %2355 = vmatpush1.xpose.msra.mxu0 0.0
        %2356 = vmatprep.subr.mxu0 0.0
        %2357 = vmatpush1.xpose.msra.mxu0 0.0
        %2358 = vmatprep.subr.mxu0 0.0
        %2359 = vmatpush1.xpose.msra.mxu0 0.0
        %2360 = vmatprep.subr.mxu0 0.0
        %2361 = vmatpush1.xpose.msra.mxu0 0.0
        %2362 = vmatprep.subr.mxu0 0.0
        %2363 = vmatpush1.xpose.msra.mxu0 0.0
        %2364 = vmatprep.subr.mxu0 0.0
        %2365 = vmatpush1.xpose.msra.mxu0 0.0
        %2366 = vmatprep.subr.mxu0 0.0
        %2367 = vmatpush1.xpose.msra.mxu0 0.0
        %2368 = vmatprep.subr.mxu0 0.0
        %2369 = vmatpush1.xpose.msra.mxu0 0.0
        %2370 = vmatprep.subr.mxu0 0.0
        %2371 = vmatpush1.xpose.msra.mxu0 0.0
        %2372 = vmatprep.subr.mxu0 0.0
        %2373 = vmatpush1.xpose.msra.mxu0 0.0
        %2374 = vmatprep.subr.mxu0 0.0
        %2375 = vmatpush1.xpose.msra.mxu0 0.0
        %2376 = vmatprep.subr.mxu0 0.0
        %2377 = vmatpush1.xpose.msra.mxu0 0.0
        %2378 = vmatprep.subr.mxu0 0.0
        %2379 = vmatpush1.xpose.msra.mxu0 0.0
        %2380 = vmatprep.subr.mxu0 0.0
        %2381 = vmatpush1.xpose.msra.mxu0 0.0
        %2382 = vmatprep.subr.mxu0 0.0
        %2383 = vmatpush1.xpose.msra.mxu0 0.0
        %2384 = vmatprep.subr.mxu0 0.0
        %2385 = vmatpush1.xpose.msra.mxu0 0.0
        %2386 = vmatprep.subr.mxu0 0.0
        %2387 = vmatpush1.xpose.msra.mxu0 0.0
        %2388 = vmatprep.subr.mxu0 0.0
        %2389 = vmatpush1.xpose.msra.mxu0 0.0
        %2390 = vmatprep.subr.mxu0 0.0
        %2391 = vmatpush1.xpose.msra.mxu0 0.0
        %2392 = vmatprep.subr.mxu0 0.0
        %2393 = vmatpush1.xpose.msra.mxu0 0.0
        %2394 = vmatprep.subr.mxu0 0.0
        %2395 = vmatpush1.xpose.msra.mxu0 0.0
        %2396 = vmatprep.subr.mxu0 0.0
        %2397 = vmatpush1.xpose.msra.mxu0 0.0
        %2398 = vmatprep.subr.mxu0 0.0
        %2399 = vmatpush1.xpose.msra.mxu0 0.0
        %2400 = vmatprep.subr.mxu0 0.0
        %2401 = vmatpush1.xpose.msra.mxu0 0.0
        %2402 = vmatprep.mubr.f32.mxu0 0.0
        %2403 = vmatmul.mubr.f32.gmra.mrb[0].mxu0 %v2332
        %v2404 = vpop.f32.mrb[0].mxu0
        %v2405 = vadd.f32 %v549, %v2404
        %v2406 = vpop.f32.mrb[0].mxu0
        %2407 = vdwg.mxu0
        %v2408 = vsel %vm1913, %v2405, -inf
        %2409 = vmax.xlane.f32.xlu0 %v2408
        %v2410 = vpop.xlane.xlu0 %2409
        %v2411 = vsub.f32 %v2405, %v2410
        %v2412 = vmul.f32 %v2411, 1.442695
        %v2413 = vpow.pop %v2412
        %v2414 = vsel %vm1913, %v2413, 0.0
        %2415 = vadd.xlane.f32.xlu0 %v2414
        %v2416 = vpop.xlane.xlu0 %2415
        %v2417 = vrcp.pop %v2416
        %v2418 = vmul.f32 %v2413, %v2417
        %2419 = vrot.lane.b32.xlu0 %v1832, 80
        %v2420 = vpop.permute.xlu0 %2419
        %2421 = vrot.lane.b32.xlu0 %v1833, 80
        %v2422 = vpop.permute.xlu0 %2421
        %v2426 = vsel %vm1913, %v2418, 0
        %2428 = vmatprep.subr.mxu0 0.0
        %2429 = vmatpush1.msra.mxu0 %v2420
        %2430 = vmatprep.subr.mxu0 0.0
        %2431 = vmatpush1.msra.mxu0 %v2422
        %2432 = vmatprep.subr.mxu0 0.0
        %2433 = vmatpush1.msra.mxu0 0.0
        %2434 = vmatprep.subr.mxu0 0.0
        %2435 = vmatpush1.msra.mxu0 0.0
        %2436 = vmatprep.subr.mxu0 0.0
        %2437 = vmatpush1.msra.mxu0 0.0
        %2438 = vmatprep.subr.mxu0 0.0
        %2439 = vmatpush1.msra.mxu0 0.0
        %2440 = vmatprep.subr.mxu0 0.0
        %2441 = vmatpush1.msra.mxu0 0.0
        %2442 = vmatprep.subr.mxu0 0.0
        %2443 = vmatpush1.msra.mxu0 0.0
        %2444 = vmatprep.subr.mxu0 0.0
        %2445 = vmatpush1.msra.mxu0 0.0
        %2446 = vmatprep.subr.mxu0 0.0
        %2447 = vmatpush1.msra.mxu0 0.0
        %2448 = vmatprep.subr.mxu0 0.0
        %2449 = vmatpush1.msra.mxu0 0.0
        %2450 = vmatprep.subr.mxu0 0.0
        %2451 = vmatpush1.msra.mxu0 0.0
        %2452 = vmatprep.subr.mxu0 0.0
        %2453 = vmatpush1.msra.mxu0 0.0
        %2454 = vmatprep.subr.mxu0 0.0
        %2455 = vmatpush1.msra.mxu0 0.0
        %2456 = vmatprep.subr.mxu0 0.0
        %2457 = vmatpush1.msra.mxu0 0.0
        %2458 = vmatprep.subr.mxu0 0.0
        %2459 = vmatpush1.msra.mxu0 0.0
        %2460 = vmatprep.subr.mxu0 0.0
        %2461 = vmatpush1.msra.mxu0 0.0
        %2462 = vmatprep.subr.mxu0 0.0
        %2463 = vmatpush1.msra.mxu0 0.0
        %2464 = vmatprep.subr.mxu0 0.0
        %2465 = vmatpush1.msra.mxu0 0.0
        %2466 = vmatprep.subr.mxu0 0.0
        %2467 = vmatpush1.msra.mxu0 0.0
        %2468 = vmatprep.subr.mxu0 0.0
        %2469 = vmatpush1.msra.mxu0 0.0
        %2470 = vmatprep.subr.mxu0 0.0
        %2471 = vmatpush1.msra.mxu0 0.0
        %2472 = vmatprep.subr.mxu0 0.0
        %2473 = vmatpush1.msra.mxu0 0.0
        %2474 = vmatprep.subr.mxu0 0.0
        %2475 = vmatpush1.msra.mxu0 0.0
        %2476 = vmatprep.subr.mxu0 0.0
        %2477 = vmatpush1.msra.mxu0 0.0
        %2478 = vmatprep.subr.mxu0 0.0
        %2479 = vmatpush1.msra.mxu0 0.0
        %2480 = vmatprep.subr.mxu0 0.0
        %2481 = vmatpush1.msra.mxu0 0.0
        %2482 = vmatprep.subr.mxu0 0.0
        %2483 = vmatpush1.msra.mxu0 0.0
        %2484 = vmatprep.subr.mxu0 0.0
        %2485 = vmatpush1.msra.mxu0 0.0
        %2486 = vmatprep.subr.mxu0 0.0
        %2487 = vmatpush1.msra.mxu0 0.0
        %2488 = vmatprep.subr.mxu0 0.0
        %2489 = vmatpush1.msra.mxu0 0.0
        %2490 = vmatprep.subr.mxu0 0.0
        %2491 = vmatpush1.msra.mxu0 0.0
        %2492 = vmatprep.mubr.f32.mxu0 0.0
        %2493 = vmatmul.mubr.f32.gmra.mrb[0].mxu0 %v2426
        %v2494 = vpop.f32.mrb[0].mxu0
        %v2495 = vadd.f32 0.0, %v2494
        %v2496 = vpop.f32.mrb[0].mxu0
        %2497 = vdwg.mxu0
        %v2498 = vld [vmem:[#allocation10 + $0x10] sm:$0xff]
        %v2500 = vsel %vm658, %v2495, 0
        %2502 = vmatprep.subr.mxu0 0.0
        %2503 = vmatpush1.msra.mxu0 %v2498
        %2504 = vmatprep.subr.mxu0 0.0
        %2505 = vmatpush1.msra.mxu0 0.0
        %2506 = vmatprep.subr.mxu0 0.0
        %2507 = vmatpush1.msra.mxu0 0.0
        %2508 = vmatprep.subr.mxu0 0.0
        %2509 = vmatpush1.msra.mxu0 0.0
        %2510 = vmatprep.subr.mxu0 0.0
        %2511 = vmatpush1.msra.mxu0 0.0
        %2512 = vmatprep.subr.mxu0 0.0
        %2513 = vmatpush1.msra.mxu0 0.0
        %2514 = vmatprep.subr.mxu0 0.0
        %2515 = vmatpush1.msra.mxu0 0.0
        %2516 = vmatprep.subr.mxu0 0.0
        %2517 = vmatpush1.msra.mxu0 0.0
        %2518 = vmatprep.subr.mxu0 0.0
        %2519 = vmatpush1.msra.mxu0 0.0
        %2520 = vmatprep.subr.mxu0 0.0
        %2521 = vmatpush1.msra.mxu0 0.0
        %2522 = vmatprep.subr.mxu0 0.0
        %2523 = vmatpush1.msra.mxu0 0.0
        %2524 = vmatprep.subr.mxu0 0.0
        %2525 = vmatpush1.msra.mxu0 0.0
        %2526 = vmatprep.subr.mxu0 0.0
        %2527 = vmatpush1.msra.mxu0 0.0
        %2528 = vmatprep.subr.mxu0 0.0
        %2529 = vmatpush1.msra.mxu0 0.0
        %2530 = vmatprep.subr.mxu0 0.0
        %2531 = vmatpush1.msra.mxu0 0.0
        %2532 = vmatprep.subr.mxu0 0.0
        %2533 = vmatpush1.msra.mxu0 0.0
        %2534 = vmatprep.subr.mxu0 0.0
        %2535 = vmatpush1.msra.mxu0 0.0
        %2536 = vmatprep.subr.mxu0 0.0
        %2537 = vmatpush1.msra.mxu0 0.0
        %2538 = vmatprep.subr.mxu0 0.0
        %2539 = vmatpush1.msra.mxu0 0.0
        %2540 = vmatprep.subr.mxu0 0.0
        %2541 = vmatpush1.msra.mxu0 0.0
        %2542 = vmatprep.subr.mxu0 0.0
        %2543 = vmatpush1.msra.mxu0 0.0
        %2544 = vmatprep.subr.mxu0 0.0
        %2545 = vmatpush1.msra.mxu0 0.0
        %2546 = vmatprep.subr.mxu0 0.0
        %2547 = vmatpush1.msra.mxu0 0.0
        %2548 = vmatprep.subr.mxu0 0.0
        %2549 = vmatpush1.msra.mxu0 0.0
        %2550 = vmatprep.subr.mxu0 0.0
        %2551 = vmatpush1.msra.mxu0 0.0
        %2552 = vmatprep.subr.mxu0 0.0
        %2553 = vmatpush1.msra.mxu0 0.0
        %2554 = vmatprep.subr.mxu0 0.0
        %2555 = vmatpush1.msra.mxu0 0.0
        %2556 = vmatprep.subr.mxu0 0.0
        %2557 = vmatpush1.msra.mxu0 0.0
        %2558 = vmatprep.subr.mxu0 0.0
        %2559 = vmatpush1.msra.mxu0 0.0
        %2560 = vmatprep.subr.mxu0 0.0
        %2561 = vmatpush1.msra.mxu0 0.0
        %2562 = vmatprep.subr.mxu0 0.0
        %2563 = vmatpush1.msra.mxu0 0.0
        %2564 = vmatprep.subr.mxu0 0.0
        %2565 = vmatpush1.msra.mxu0 0.0
        %2566 = vmatprep.mubr.f32.mxu0 0.0
        %2567 = vmatmul.mubr.f32.gmra.mrb[0].mxu0 %v2500
        %v2568 = vpop.f32.mrb[0].mxu0
        %v2569 = vadd.f32 0.0, %v2568
        %v2570 = vpop.f32.mrb[0].mxu0
        %2571 = vdwg.mxu0
        %v2572 = vadd.f32 %v2323, %v2569
        %2573 = vrot.lane.b32.xlu0 %v1730, 104
        %v2574 = vpop.permute.xlu0 %2573
        %2575 = vrot.lane.b32.xlu0 %v1821, 104
        %v2576 = vpop.permute.xlu0 %2575
        %2577 = vrot.lane.b32.xlu0 %v1822, 104
        %v2578 = vpop.permute.xlu0 %2577
        %v2579 = vsel %vm658, %v2574, 0
        %v2581 = vsel %vm658, %v2576, 0
        %v2583 = vsel %vm658, %v2578, 0
        %2585 = vmatprep.subr.mxu0 0.0
        %2586 = vmatpush1.xpose.msra.mxu0 %v2581
        %2587 = vmatprep.subr.mxu0 0.0
        %2588 = vmatpush1.xpose.msra.mxu0 %v2583
        %2589 = vmatprep.subr.mxu0 0.0
        %2590 = vmatpush1.xpose.msra.mxu0 0.0
        %2591 = vmatprep.subr.mxu0 0.0
        %2592 = vmatpush1.xpose.msra.mxu0 0.0
        %2593 = vmatprep.subr.mxu0 0.0
        %2594 = vmatpush1.xpose.msra.mxu0 0.0
        %2595 = vmatprep.subr.mxu0 0.0
        %2596 = vmatpush1.xpose.msra.mxu0 0.0
        %2597 = vmatprep.subr.mxu0 0.0
        %2598 = vmatpush1.xpose.msra.mxu0 0.0
        %2599 = vmatprep.subr.mxu0 0.0
        %2600 = vmatpush1.xpose.msra.mxu0 0.0
        %2601 = vmatprep.subr.mxu0 0.0
        %2602 = vmatpush1.xpose.msra.mxu0 0.0
        %2603 = vmatprep.subr.mxu0 0.0
        %2604 = vmatpush1.xpose.msra.mxu0 0.0
        %2605 = vmatprep.subr.mxu0 0.0
        %2606 = vmatpush1.xpose.msra.mxu0 0.0
        %2607 = vmatprep.subr.mxu0 0.0
        %2608 = vmatpush1.xpose.msra.mxu0 0.0
        %2609 = vmatprep.subr.mxu0 0.0
        %2610 = vmatpush1.xpose.msra.mxu0 0.0
        %2611 = vmatprep.subr.mxu0 0.0
        %2612 = vmatpush1.xpose.msra.mxu0 0.0
        %2613 = vmatprep.subr.mxu0 0.0
        %2614 = vmatpush1.xpose.msra.mxu0 0.0
        %2615 = vmatprep.subr.mxu0 0.0
        %2616 = vmatpush1.xpose.msra.mxu0 0.0
        %2617 = vmatprep.subr.mxu0 0.0
        %2618 = vmatpush1.xpose.msra.mxu0 0.0
        %2619 = vmatprep.subr.mxu0 0.0
        %2620 = vmatpush1.xpose.msra.mxu0 0.0
        %2621 = vmatprep.subr.mxu0 0.0
        %2622 = vmatpush1.xpose.msra.mxu0 0.0
        %2623 = vmatprep.subr.mxu0 0.0
        %2624 = vmatpush1.xpose.msra.mxu0 0.0
        %2625 = vmatprep.subr.mxu0 0.0
        %2626 = vmatpush1.xpose.msra.mxu0 0.0
        %2627 = vmatprep.subr.mxu0 0.0
        %2628 = vmatpush1.xpose.msra.mxu0 0.0
        %2629 = vmatprep.subr.mxu0 0.0
        %2630 = vmatpush1.xpose.msra.mxu0 0.0
        %2631 = vmatprep.subr.mxu0 0.0
        %2632 = vmatpush1.xpose.msra.mxu0 0.0
        %2633 = vmatprep.subr.mxu0 0.0
        %2634 = vmatpush1.xpose.msra.mxu0 0.0
        %2635 = vmatprep.subr.mxu0 0.0
        %2636 = vmatpush1.xpose.msra.mxu0 0.0
        %2637 = vmatprep.subr.mxu0 0.0
        %2638 = vmatpush1.xpose.msra.mxu0 0.0
        %2639 = vmatprep.subr.mxu0 0.0
        %2640 = vmatpush1.xpose.msra.mxu0 0.0
        %2641 = vmatprep.subr.mxu0 0.0
        %2642 = vmatpush1.xpose.msra.mxu0 0.0
        %2643 = vmatprep.subr.mxu0 0.0
        %2644 = vmatpush1.xpose.msra.mxu0 0.0
        %2645 = vmatprep.subr.mxu0 0.0
        %2646 = vmatpush1.xpose.msra.mxu0 0.0
        %2647 = vmatprep.subr.mxu0 0.0
        %2648 = vmatpush1.xpose.msra.mxu0 0.0
        %2649 = vmatprep.mubr.f32.mxu0 0.0
        %2650 = vmatmul.mubr.f32.gmra.mrb[0].mxu0 %v2579
        %v2651 = vpop.f32.mrb[0].mxu0
        %v2652 = vadd.f32 %v549, %v2651
        %v2653 = vpop.f32.mrb[0].mxu0
        %2654 = vdwg.mxu0
        %v2655 = vsel %vm1913, %v2652, -inf
        %2656 = vmax.xlane.f32.xlu0 %v2655
        %v2657 = vpop.xlane.xlu0 %2656
        %v2658 = vsub.f32 %v2652, %v2657
        %v2659 = vmul.f32 %v2658, 1.442695
        %v2660 = vpow.pop %v2659
        %v2661 = vsel %vm1913, %v2660, 0.0
        %2662 = vadd.xlane.f32.xlu0 %v2661
        %v2663 = vpop.xlane.xlu0 %2662
        %v2664 = vrcp.pop %v2663
        %v2665 = vmul.f32 %v2660, %v2664
        %2666 = vrot.lane.b32.xlu0 %v1832, 72
        %v2667 = vpop.permute.xlu0 %2666
        %2668 = vrot.lane.b32.xlu0 %v1833, 72
        %v2669 = vpop.permute.xlu0 %2668
        %v2673 = vsel %vm1913, %v2665, 0
        %2675 = vmatprep.subr.mxu0 0.0
        %2676 = vmatpush1.msra.mxu0 %v2667
        %2677 = vmatprep.subr.mxu0 0.0
        %2678 = vmatpush1.msra.mxu0 %v2669
        %2679 = vmatprep.subr.mxu0 0.0
        %2680 = vmatpush1.msra.mxu0 0.0
        %2681 = vmatprep.subr.mxu0 0.0
        %2682 = vmatpush1.msra.mxu0 0.0
        %2683 = vmatprep.subr.mxu0 0.0
        %2684 = vmatpush1.msra.mxu0 0.0
        %2685 = vmatprep.subr.mxu0 0.0
        %2686 = vmatpush1.msra.mxu0 0.0
        %2687 = vmatprep.subr.mxu0 0.0
        %2688 = vmatpush1.msra.mxu0 0.0
        %2689 = vmatprep.subr.mxu0 0.0
        %2690 = vmatpush1.msra.mxu0 0.0
        %2691 = vmatprep.subr.mxu0 0.0
        %2692 = vmatpush1.msra.mxu0 0.0
        %2693 = vmatprep.subr.mxu0 0.0
        %2694 = vmatpush1.msra.mxu0 0.0
        %2695 = vmatprep.subr.mxu0 0.0
        %2696 = vmatpush1.msra.mxu0 0.0
        %2697 = vmatprep.subr.mxu0 0.0
        %2698 = vmatpush1.msra.mxu0 0.0
        %2699 = vmatprep.subr.mxu0 0.0
        %2700 = vmatpush1.msra.mxu0 0.0
        %2701 = vmatprep.subr.mxu0 0.0
        %2702 = vmatpush1.msra.mxu0 0.0
        %2703 = vmatprep.subr.mxu0 0.0
        %2704 = vmatpush1.msra.mxu0 0.0
        %2705 = vmatprep.subr.mxu0 0.0
        %2706 = vmatpush1.msra.mxu0 0.0
        %2707 = vmatprep.subr.mxu0 0.0
        %2708 = vmatpush1.msra.mxu0 0.0
        %2709 = vmatprep.subr.mxu0 0.0
        %2710 = vmatpush1.msra.mxu0 0.0
        %2711 = vmatprep.subr.mxu0 0.0
        %2712 = vmatpush1.msra.mxu0 0.0
        %2713 = vmatprep.subr.mxu0 0.0
        %2714 = vmatpush1.msra.mxu0 0.0
        %2715 = vmatprep.subr.mxu0 0.0
        %2716 = vmatpush1.msra.mxu0 0.0
        %2717 = vmatprep.subr.mxu0 0.0
        %2718 = vmatpush1.msra.mxu0 0.0
        %2719 = vmatprep.subr.mxu0 0.0
        %2720 = vmatpush1.msra.mxu0 0.0
        %2721 = vmatprep.subr.mxu0 0.0
        %2722 = vmatpush1.msra.mxu0 0.0
        %2723 = vmatprep.subr.mxu0 0.0
        %2724 = vmatpush1.msra.mxu0 0.0
        %2725 = vmatprep.subr.mxu0 0.0
        %2726 = vmatpush1.msra.mxu0 0.0
        %2727 = vmatprep.subr.mxu0 0.0
        %2728 = vmatpush1.msra.mxu0 0.0
        %2729 = vmatprep.subr.mxu0 0.0
        %2730 = vmatpush1.msra.mxu0 0.0
        %2731 = vmatprep.subr.mxu0 0.0
        %2732 = vmatpush1.msra.mxu0 0.0
        %2733 = vmatprep.subr.mxu0 0.0
        %2734 = vmatpush1.msra.mxu0 0.0
        %2735 = vmatprep.subr.mxu0 0.0
        %2736 = vmatpush1.msra.mxu0 0.0
        %2737 = vmatprep.subr.mxu0 0.0
        %2738 = vmatpush1.msra.mxu0 0.0
        %2739 = vmatprep.mubr.f32.mxu0 0.0
        %2740 = vmatmul.mubr.f32.gmra.mrb[0].mxu0 %v2673
        %v2741 = vpop.f32.mrb[0].mxu0
        %v2742 = vadd.f32 0.0, %v2741
        %v2743 = vpop.f32.mrb[0].mxu0
        %2744 = vdwg.mxu0
        %v2745 = vld [vmem:[#allocation10 + $0x18] sm:$0xff]
        %v2747 = vsel %vm658, %v2742, 0
        %2749 = vmatprep.subr.mxu0 0.0
        %2750 = vmatpush1.msra.mxu0 %v2745
        %2751 = vmatprep.subr.mxu0 0.0
        %2752 = vmatpush1.msra.mxu0 0.0
        %2753 = vmatprep.subr.mxu0 0.0
        %2754 = vmatpush1.msra.mxu0 0.0
        %2755 = vmatprep.subr.mxu0 0.0
        %2756 = vmatpush1.msra.mxu0 0.0
        %2757 = vmatprep.subr.mxu0 0.0
        %2758 = vmatpush1.msra.mxu0 0.0
        %2759 = vmatprep.subr.mxu0 0.0
        %2760 = vmatpush1.msra.mxu0 0.0
        %2761 = vmatprep.subr.mxu0 0.0
        %2762 = vmatpush1.msra.mxu0 0.0
        %2763 = vmatprep.subr.mxu0 0.0
        %2764 = vmatpush1.msra.mxu0 0.0
        %2765 = vmatprep.subr.mxu0 0.0
        %2766 = vmatpush1.msra.mxu0 0.0
        %2767 = vmatprep.subr.mxu0 0.0
        %2768 = vmatpush1.msra.mxu0 0.0
        %2769 = vmatprep.subr.mxu0 0.0
        %2770 = vmatpush1.msra.mxu0 0.0
        %2771 = vmatprep.subr.mxu0 0.0
        %2772 = vmatpush1.msra.mxu0 0.0
        %2773 = vmatprep.subr.mxu0 0.0
        %2774 = vmatpush1.msra.mxu0 0.0
        %2775 = vmatprep.subr.mxu0 0.0
        %2776 = vmatpush1.msra.mxu0 0.0
        %2777 = vmatprep.subr.mxu0 0.0
        %2778 = vmatpush1.msra.mxu0 0.0
        %2779 = vmatprep.subr.mxu0 0.0
        %2780 = vmatpush1.msra.mxu0 0.0
        %2781 = vmatprep.subr.mxu0 0.0
        %2782 = vmatpush1.msra.mxu0 0.0
        %2783 = vmatprep.subr.mxu0 0.0
        %2784 = vmatpush1.msra.mxu0 0.0
        %2785 = vmatprep.subr.mxu0 0.0
        %2786 = vmatpush1.msra.mxu0 0.0
        %2787 = vmatprep.subr.mxu0 0.0
        %2788 = vmatpush1.msra.mxu0 0.0
        %2789 = vmatprep.subr.mxu0 0.0
        %2790 = vmatpush1.msra.mxu0 0.0
        %2791 = vmatprep.subr.mxu0 0.0
        %2792 = vmatpush1.msra.mxu0 0.0
        %2793 = vmatprep.subr.mxu0 0.0
        %2794 = vmatpush1.msra.mxu0 0.0
        %2795 = vmatprep.subr.mxu0 0.0
        %2796 = vmatpush1.msra.mxu0 0.0
        %2797 = vmatprep.subr.mxu0 0.0
        %2798 = vmatpush1.msra.mxu0 0.0
        %2799 = vmatprep.subr.mxu0 0.0
        %2800 = vmatpush1.msra.mxu0 0.0
        %2801 = vmatprep.subr.mxu0 0.0
        %2802 = vmatpush1.msra.mxu0 0.0
        %2803 = vmatprep.subr.mxu0 0.0
        %2804 = vmatpush1.msra.mxu0 0.0
        %2805 = vmatprep.subr.mxu0 0.0
        %2806 = vmatpush1.msra.mxu0 0.0
        %2807 = vmatprep.subr.mxu0 0.0
        %2808 = vmatpush1.msra.mxu0 0.0
        %2809 = vmatprep.subr.mxu0 0.0
        %2810 = vmatpush1.msra.mxu0 0.0
        %2811 = vmatprep.subr.mxu0 0.0
        %2812 = vmatpush1.msra.mxu0 0.0
        %2813 = vmatprep.mubr.f32.mxu0 0.0
        %2814 = vmatmul.mubr.f32.gmra.mrb[0].mxu0 %v2747
        %v2815 = vpop.f32.mrb[0].mxu0
        %v2816 = vadd.f32 0.0, %v2815
        %v2817 = vpop.f32.mrb[0].mxu0
        %2818 = vdwg.mxu0
        %v2819 = vadd.f32 %v2572, %v2816
        %v2820 = vadd.f32 %v1647, %v2819
        %v2821 = vld [vmem:[%s11 + $0x7] sm:$0x1]
        %v2822 = vlaneseq
        %v2823 = vshrl.u32 %v2822, 7
        %v2824 = vsub.s32 0, %v2823
        %v2825 = vrot.slane %v2821, %v2824
        %v2826 = vadd.f32 %v2820, %v2825
        %v2827 = vld [vmem:[%s11 + $0xa] sm:$0x1]
        %v2828 = vld [vmem:[%s11 + $0xb] sm:$0x1]
        %v2829 = vsel %vm554, %v2826, 0.0
        %2830 = vadd.xlane.f32.xlu0 %v2829
        %v2831 = vpop.xlane.xlu0 %2830
        %v2832 = vmul.f32 %v2831, %v1627
        %v2833 = vsub.f32 %v2826, %v2832
        %v2834 = vmul.f32 %v2833, %v2833
        %v2835 = vsel %vm554, %v2834, 0.0
        %2836 = vadd.xlane.f32.xlu0 %v2835
        %v2837 = vpop.xlane.xlu0 %2836
        %v2838 = vmul.f32 %v2837, %v1627
        %v2839 = vadd.f32 %v2838, 1e-05
        %v2840 = vrsqrt.pop %v2839
        %v2841 = vmul.f32 %v2833, %v2840
        %v2842 = vlaneseq
        %v2843 = vshrl.u32 %v2842, 7
        %v2844 = vsub.s32 0, %v2843
        %v2845 = vrot.slane %v2827, %v2844
        %v2846 = vmul.f32 %v2841, %v2845
        %v2847 = vlaneseq
        %v2848 = vshrl.u32 %v2847, 7
        %v2849 = vsub.s32 0, %v2848
        %v2850 = vrot.slane %v2828, %v2849
        %v2851 = vadd.f32 %v2846, %v2850
        %v2852 = vld [vmem:[#allocation11] sm:$0xff]
        %v2853 = vld [vmem:[#allocation11 + $0x8] sm:$0xff]
        %v2854 = vld [vmem:[#allocation11 + $0x10] sm:$0xff]
        %v2855 = vld [vmem:[#allocation11 + $0x18] sm:$0xff]
        %v2856 = vld [vmem:[%s12] sm:$0x1]
        %v2858 = vlaneseq
        %v2859 = vshrl.u32 %v2858, 7
        %v2860 = vsub.s32 0, %v2859
        %v2861 = vrot.slane %v2856, %v2860
        %v2864 = vsel %vm554, %v2851, 0
        %2866 = vmatprep.subr.mxu0 0.0
        %2867 = vmatpush1.msra.mxu0 %v2852
        %2868 = vmatprep.subr.mxu0 0.0
        %2869 = vmatpush1.msra.mxu0 %v2853
        %2870 = vmatprep.subr.mxu0 0.0
        %2871 = vmatpush1.msra.mxu0 %v2854
        %2872 = vmatprep.subr.mxu0 0.0
        %2873 = vmatpush1.msra.mxu0 %v2855
        %2874 = vmatprep.subr.mxu0 0.0
        %2875 = vmatpush1.msra.mxu0 0.0
        %2876 = vmatprep.subr.mxu0 0.0
        %2877 = vmatpush1.msra.mxu0 0.0
        %2878 = vmatprep.subr.mxu0 0.0
        %2879 = vmatpush1.msra.mxu0 0.0
        %2880 = vmatprep.subr.mxu0 0.0
        %2881 = vmatpush1.msra.mxu0 0.0
        %2882 = vmatprep.subr.mxu0 0.0
        %2883 = vmatpush1.msra.mxu0 0.0
        %2884 = vmatprep.subr.mxu0 0.0
        %2885 = vmatpush1.msra.mxu0 0.0
        %2886 = vmatprep.subr.mxu0 0.0
        %2887 = vmatpush1.msra.mxu0 0.0
        %2888 = vmatprep.subr.mxu0 0.0
        %2889 = vmatpush1.msra.mxu0 0.0
        %2890 = vmatprep.subr.mxu0 0.0
        %2891 = vmatpush1.msra.mxu0 0.0
        %2892 = vmatprep.subr.mxu0 0.0
        %2893 = vmatpush1.msra.mxu0 0.0
        %2894 = vmatprep.subr.mxu0 0.0
        %2895 = vmatpush1.msra.mxu0 0.0
        %2896 = vmatprep.subr.mxu0 0.0
        %2897 = vmatpush1.msra.mxu0 0.0
        %2898 = vmatprep.subr.mxu0 0.0
        %2899 = vmatpush1.msra.mxu0 0.0
        %2900 = vmatprep.subr.mxu0 0.0
        %2901 = vmatpush1.msra.mxu0 0.0
        %2902 = vmatprep.subr.mxu0 0.0
        %2903 = vmatpush1.msra.mxu0 0.0
        %2904 = vmatprep.subr.mxu0 0.0
        %2905 = vmatpush1.msra.mxu0 0.0
        %2906 = vmatprep.subr.mxu0 0.0
        %2907 = vmatpush1.msra.mxu0 0.0
        %2908 = vmatprep.subr.mxu0 0.0
        %2909 = vmatpush1.msra.mxu0 0.0
        %2910 = vmatprep.subr.mxu0 0.0
        %2911 = vmatpush1.msra.mxu0 0.0
        %2912 = vmatprep.subr.mxu0 0.0
        %2913 = vmatpush1.msra.mxu0 0.0
        %2914 = vmatprep.subr.mxu0 0.0
        %2915 = vmatpush1.msra.mxu0 0.0
        %2916 = vmatprep.subr.mxu0 0.0
        %2917 = vmatpush1.msra.mxu0 0.0
        %2918 = vmatprep.subr.mxu0 0.0
        %2919 = vmatpush1.msra.mxu0 0.0
        %2920 = vmatprep.subr.mxu0 0.0
        %2921 = vmatpush1.msra.mxu0 0.0
        %2922 = vmatprep.subr.mxu0 0.0
        %2923 = vmatpush1.msra.mxu0 0.0
        %2924 = vmatprep.subr.mxu0 0.0
        %2925 = vmatpush1.msra.mxu0 0.0
        %2926 = vmatprep.subr.mxu0 0.0
        %2927 = vmatpush1.msra.mxu0 0.0
        %2928 = vmatprep.subr.mxu0 0.0
        %2929 = vmatpush1.msra.mxu0 0.0
        %2930 = vmatprep.mubr.f32.mxu0 0.0
        %2931 = vmatmul.mubr.f32.gmra.mrb[0].mxu0 %v2864
        %v2932 = vpop.f32.mrb[0].mxu0
        %v2933 = vadd.f32 %v2861, %v2932
        %v2934 = vpop.f32.mrb[0].mxu0
        %2935 = vdwg.mxu0
        %v2936 = vmax.f32 %v2933, 0.0
        %v2937 = vld [vmem:[%s10] sm:$0xff]
        %v2938 = vld [vmem:[%s10 + $0x8] sm:$0xff]
        %v2939 = vld [vmem:[%s10 + $0x10] sm:$0xff]
        %v2940 = vld [vmem:[%s10 + $0x18] sm:$0xff]
        %v2941 = vld [vmem:[%s10 + $0x20] sm:$0xff]
        %v2942 = vld [vmem:[%s10 + $0x28] sm:$0xff]
        %v2943 = vld [vmem:[%s10 + $0x30] sm:$0xff]
        %v2944 = vld [vmem:[%s10 + $0x38] sm:$0xff]
        %v2945 = vld [vmem:[%s11 + $0xe] sm:$0x1]
        %v2946 = vlaneseq
        %v2947 = vshrl.u32 %v2946, 7
        %v2948 = vsub.s32 0, %v2947
        %v2949 = vrot.slane %v2945, %v2948
        %vm2950 = vcmask 523264
        %v2952 = vsel %vm2950, %v2936, 0
        %2954 = vmatprep.subr.mxu0 0.0
        %2955 = vmatpush1.msra.mxu0 %v2937
        %2956 = vmatprep.subr.mxu0 0.0
        %2957 = vmatpush1.msra.mxu0 %v2938
        %2958 = vmatprep.subr.mxu0 0.0
        %2959 = vmatpush1.msra.mxu0 %v2939
        %2960 = vmatprep.subr.mxu0 0.0
        %2961 = vmatpush1.msra.mxu0 %v2940
        %2962 = vmatprep.subr.mxu0 0.0
        %2963 = vmatpush1.msra.mxu0 %v2941
        %2964 = vmatprep.subr.mxu0 0.0
        %2965 = vmatpush1.msra.mxu0 %v2942
        %2966 = vmatprep.subr.mxu0 0.0
        %2967 = vmatpush1.msra.mxu0 %v2943
        %2968 = vmatprep.subr.mxu0 0.0
        %2969 = vmatpush1.msra.mxu0 %v2944
        %2970 = vmatprep.subr.mxu0 0.0
        %2971 = vmatpush1.msra.mxu0 0.0
        %2972 = vmatprep.subr.mxu0 0.0
        %2973 = vmatpush1.msra.mxu0 0.0
        %2974 = vmatprep.subr.mxu0 0.0
        %2975 = vmatpush1.msra.mxu0 0.0
        %2976 = vmatprep.subr.mxu0 0.0
        %2977 = vmatpush1.msra.mxu0 0.0
        %2978 = vmatprep.subr.mxu0 0.0
        %2979 = vmatpush1.msra.mxu0 0.0
        %2980 = vmatprep.subr.mxu0 0.0
        %2981 = vmatpush1.msra.mxu0 0.0
        %2982 = vmatprep.subr.mxu0 0.0
        %2983 = vmatpush1.msra.mxu0 0.0
        %2984 = vmatprep.subr.mxu0 0.0
        %2985 = vmatpush1.msra.mxu0 0.0
        %2986 = vmatprep.subr.mxu0 0.0
        %2987 = vmatpush1.msra.mxu0 0.0
        %2988 = vmatprep.subr.mxu0 0.0
        %2989 = vmatpush1.msra.mxu0 0.0
        %2990 = vmatprep.subr.mxu0 0.0
        %2991 = vmatpush1.msra.mxu0 0.0
        %2992 = vmatprep.subr.mxu0 0.0
        %2993 = vmatpush1.msra.mxu0 0.0
        %2994 = vmatprep.subr.mxu0 0.0
        %2995 = vmatpush1.msra.mxu0 0.0
        %2996 = vmatprep.subr.mxu0 0.0
        %2997 = vmatpush1.msra.mxu0 0.0
        %2998 = vmatprep.subr.mxu0 0.0
        %2999 = vmatpush1.msra.mxu0 0.0
        %3000 = vmatprep.subr.mxu0 0.0
        %3001 = vmatpush1.msra.mxu0 0.0
        %3002 = vmatprep.subr.mxu0 0.0
        %3003 = vmatpush1.msra.mxu0 0.0
        %3004 = vmatprep.subr.mxu0 0.0
        %3005 = vmatpush1.msra.mxu0 0.0
        %3006 = vmatprep.subr.mxu0 0.0
        %3007 = vmatpush1.msra.mxu0 0.0
        %3008 = vmatprep.subr.mxu0 0.0
        %3009 = vmatpush1.msra.mxu0 0.0
        %3010 = vmatprep.subr.mxu0 0.0
        %3011 = vmatpush1.msra.mxu0 0.0
        %3012 = vmatprep.subr.mxu0 0.0
        %3013 = vmatpush1.msra.mxu0 0.0
        %3014 = vmatprep.subr.mxu0 0.0
        %3015 = vmatpush1.msra.mxu0 0.0
        %3016 = vmatprep.subr.mxu0 0.0
        %3017 = vmatpush1.msra.mxu0 0.0
        %3018 = vmatprep.mubr.f32.mxu0 0.0
        %3019 = vmatmul.mubr.f32.gmra.mrb[0].mxu0 %v2952
        %v3020 = vpop.f32.mrb[0].mxu0
        %v3021 = vadd.f32 %v2949, %v3020
        %v3022 = vpop.f32.mrb[0].mxu0
        %3023 = vdwg.mxu0
        %v3024 = vadd.f32 %v2851, %v3021
        %v3025 = vld [vmem:[%s11 + $0xc] sm:$0x1]
        %v3026 = vld [vmem:[%s11 + $0xd] sm:$0x1]
        %v3027 = vsel %vm554, %v3024, 0.0
        %3028 = vadd.xlane.f32.xlu0 %v3027
        %v3029 = vpop.xlane.xlu0 %3028
        %v3030 = vmul.f32 %v3029, %v1627
        %v3031 = vsub.f32 %v3024, %v3030
        %v3032 = vmul.f32 %v3031, %v3031
        %v3033 = vsel %vm554, %v3032, 0.0
        %3034 = vadd.xlane.f32.xlu0 %v3033
        %v3035 = vpop.xlane.xlu0 %3034
        %v3036 = vmul.f32 %v3035, %v1627
        %v3037 = vadd.f32 %v3036, 1e-05
        %v3038 = vrsqrt.pop %v3037
        %v3039 = vmul.f32 %v3031, %v3038
        %v3040 = vlaneseq
        %v3041 = vshrl.u32 %v3040, 7
        %v3042 = vsub.s32 0, %v3041
        %v3043 = vrot.slane %v3025, %v3042
        %v3044 = vmul.f32 %v3039, %v3043
        %v3045 = vlaneseq
        %v3046 = vshrl.u32 %v3045, 7
        %v3047 = vsub.s32 0, %v3046
        %v3048 = vrot.slane %v3026, %v3047
        %v3049 = vadd.f32 %v3044, %v3048
        %s3050 = scalar_lea.vmem %s4, 32
        %v3051 = vld [vmem:[%s3050] sm:$0xff]
        %v3052 = vld [vmem:[%s3050 + $0x8] sm:$0xff]
        %v3053 = vld [vmem:[%s3050 + $0x10] sm:$0xff]
        %v3054 = vld [vmem:[%s3050 + $0x18] sm:$0xff]
        %v3056 = vsel %vm554, %v3049, 0
        %3058 = vmatprep.subr.mxu0 0.0
        %3059 = vmatpush1.msra.mxu0 %v3051
        %3060 = vmatprep.subr.mxu0 0.0
        %3061 = vmatpush1.msra.mxu0 %v3052
        %3062 = vmatprep.subr.mxu0 0.0
        %3063 = vmatpush1.msra.mxu0 %v3053
        %3064 = vmatprep.subr.mxu0 0.0
        %3065 = vmatpush1.msra.mxu0 %v3054
        %3066 = vmatprep.subr.mxu0 0.0
        %3067 = vmatpush1.msra.mxu0 0.0
        %3068 = vmatprep.subr.mxu0 0.0
        %3069 = vmatpush1.msra.mxu0 0.0
        %3070 = vmatprep.subr.mxu0 0.0
        %3071 = vmatpush1.msra.mxu0 0.0
        %3072 = vmatprep.subr.mxu0 0.0
        %3073 = vmatpush1.msra.mxu0 0.0
        %3074 = vmatprep.subr.mxu0 0.0
        %3075 = vmatpush1.msra.mxu0 0.0
        %3076 = vmatprep.subr.mxu0 0.0
        %3077 = vmatpush1.msra.mxu0 0.0
        %3078 = vmatprep.subr.mxu0 0.0
        %3079 = vmatpush1.msra.mxu0 0.0
        %3080 = vmatprep.subr.mxu0 0.0
        %3081 = vmatpush1.msra.mxu0 0.0
        %3082 = vmatprep.subr.mxu0 0.0
        %3083 = vmatpush1.msra.mxu0 0.0
        %3084 = vmatprep.subr.mxu0 0.0
        %3085 = vmatpush1.msra.mxu0 0.0
        %3086 = vmatprep.subr.mxu0 0.0
        %3087 = vmatpush1.msra.mxu0 0.0
        %3088 = vmatprep.subr.mxu0 0.0
        %3089 = vmatpush1.msra.mxu0 0.0
        %3090 = vmatprep.subr.mxu0 0.0
        %3091 = vmatpush1.msra.mxu0 0.0
        %3092 = vmatprep.subr.mxu0 0.0
        %3093 = vmatpush1.msra.mxu0 0.0
        %3094 = vmatprep.subr.mxu0 0.0
        %3095 = vmatpush1.msra.mxu0 0.0
        %3096 = vmatprep.subr.mxu0 0.0
        %3097 = vmatpush1.msra.mxu0 0.0
        %3098 = vmatprep.subr.mxu0 0.0
        %3099 = vmatpush1.msra.mxu0 0.0
        %3100 = vmatprep.subr.mxu0 0.0
        %3101 = vmatpush1.msra.mxu0 0.0
        %3102 = vmatprep.subr.mxu0 0.0
        %3103 = vmatpush1.msra.mxu0 0.0
        %3104 = vmatprep.subr.mxu0 0.0
        %3105 = vmatpush1.msra.mxu0 0.0
        %3106 = vmatprep.subr.mxu0 0.0
        %3107 = vmatpush1.msra.mxu0 0.0
        %3108 = vmatprep.subr.mxu0 0.0
        %3109 = vmatpush1.msra.mxu0 0.0
        %3110 = vmatprep.subr.mxu0 0.0
        %3111 = vmatpush1.msra.mxu0 0.0
        %3112 = vmatprep.subr.mxu0 0.0
        %3113 = vmatpush1.msra.mxu0 0.0
        %3114 = vmatprep.subr.mxu0 0.0
        %3115 = vmatpush1.msra.mxu0 0.0
        %3116 = vmatprep.subr.mxu0 0.0
        %3117 = vmatpush1.msra.mxu0 0.0
        %3118 = vmatprep.subr.mxu0 0.0
        %3119 = vmatpush1.msra.mxu0 0.0
        %3120 = vmatprep.subr.mxu0 0.0
        %3121 = vmatpush1.msra.mxu0 0.0
        %3122 = vmatprep.mubr.f32.mxu0 0.0
        %3123 = vmatmul.mubr.f32.gmra.mrb[0].mxu0 %v3056
        %v3124 = vpop.f32.mrb[0].mxu0
        %v3125 = vadd.f32 0.0, %v3124
        %v3126 = vpop.f32.mrb[0].mxu0
        %3127 = vdwg.mxu0
        %s3128 = scalar_lea.vmem %s11, 16
        %v3129 = vld [vmem:[%s3128] sm:$0x1]
        %v3130 = vlaneseq
        %v3131 = vshrl.u32 %v3130, 7
        %v3132 = vsub.s32 0, %v3131
        %v3133 = vrot.slane %v3129, %v3132
        %v3134 = vadd.f32 %v3125, %v3133
        %v3135 = vmul.f32 %v3134, 0.35355338
        %v3136 = vld [vmem:[%s3128 + $0x1] sm:$0x1]
        %v3137 = vlaneseq
        %v3138 = vshrl.u32 %v3137, 7
        %v3139 = vsub.s32 0, %v3138
        %v3140 = vrot.slane %v3136, %v3139
        %3142 = vrot.lane.b32.xlu0 %v3140, 32
        %v3143 = vpop.permute.xlu0 %3142
        %v3145 = vadd.f32 %v3125, %v3143
        %v3146 = vld [vmem:[%s3128 + $0x2] sm:$0x1]
        %v3147 = vlaneseq
        %v3148 = vshrl.u32 %v3147, 7
        %v3149 = vsub.s32 0, %v3148
        %v3150 = vrot.slane %v3146, %v3149
        %3152 = vrot.lane.b32.xlu0 %v3150, 64
        %v3153 = vpop.permute.xlu0 %3152
        %v3155 = vadd.f32 %v3125, %v3153
        %3157 = vrot.lane.b32.xlu0 %v3145, 96
        %v3158 = vpop.permute.xlu0 %3157
        %v3160 = vsel %vm658, %v3135, 0
        %v3162 = vsel %vm658, %v3158, 0
        %3164 = vmatprep.subr.mxu0 0.0
        %3165 = vmatpush1.xpose.msra.mxu0 %v3162
        %3166 = vmatprep.subr.mxu0 0.0
        %3167 = vmatpush1.xpose.msra.mxu0 0.0
        %3168 = vmatprep.subr.mxu0 0.0
        %3169 = vmatpush1.xpose.msra.mxu0 0.0
        %3170 = vmatprep.subr.mxu0 0.0
        %3171 = vmatpush1.xpose.msra.mxu0 0.0
        %3172 = vmatprep.subr.mxu0 0.0
        %3173 = vmatpush1.xpose.msra.mxu0 0.0
        %3174 = vmatprep.subr.mxu0 0.0
        %3175 = vmatpush1.xpose.msra.mxu0 0.0
        %3176 = vmatprep.subr.mxu0 0.0
        %3177 = vmatpush1.xpose.msra.mxu0 0.0
        %3178 = vmatprep.subr.mxu0 0.0
        %3179 = vmatpush1.xpose.msra.mxu0 0.0
        %3180 = vmatprep.subr.mxu0 0.0
        %3181 = vmatpush1.xpose.msra.mxu0 0.0
        %3182 = vmatprep.subr.mxu0 0.0
        %3183 = vmatpush1.xpose.msra.mxu0 0.0
        %3184 = vmatprep.subr.mxu0 0.0
        %3185 = vmatpush1.xpose.msra.mxu0 0.0
        %3186 = vmatprep.subr.mxu0 0.0
        %3187 = vmatpush1.xpose.msra.mxu0 0.0
        %3188 = vmatprep.subr.mxu0 0.0
        %3189 = vmatpush1.xpose.msra.mxu0 0.0
        %3190 = vmatprep.subr.mxu0 0.0
        %3191 = vmatpush1.xpose.msra.mxu0 0.0
        %3192 = vmatprep.subr.mxu0 0.0
        %3193 = vmatpush1.xpose.msra.mxu0 0.0
        %3194 = vmatprep.subr.mxu0 0.0
        %3195 = vmatpush1.xpose.msra.mxu0 0.0
        %3196 = vmatprep.subr.mxu0 0.0
        %3197 = vmatpush1.xpose.msra.mxu0 0.0
        %3198 = vmatprep.subr.mxu0 0.0
        %3199 = vmatpush1.xpose.msra.mxu0 0.0
        %3200 = vmatprep.subr.mxu0 0.0
        %3201 = vmatpush1.xpose.msra.mxu0 0.0
        %3202 = vmatprep.subr.mxu0 0.0
        %3203 = vmatpush1.xpose.msra.mxu0 0.0
        %3204 = vmatprep.subr.mxu0 0.0
        %3205 = vmatpush1.xpose.msra.mxu0 0.0
        %3206 = vmatprep.subr.mxu0 0.0
        %3207 = vmatpush1.xpose.msra.mxu0 0.0
        %3208 = vmatprep.subr.mxu0 0.0
        %3209 = vmatpush1.xpose.msra.mxu0 0.0
        %3210 = vmatprep.subr.mxu0 0.0
        %3211 = vmatpush1.xpose.msra.mxu0 0.0
        %3212 = vmatprep.subr.mxu0 0.0
        %3213 = vmatpush1.xpose.msra.mxu0 0.0
        %3214 = vmatprep.subr.mxu0 0.0
        %3215 = vmatpush1.xpose.msra.mxu0 0.0
        %3216 = vmatprep.subr.mxu0 0.0
        %3217 = vmatpush1.xpose.msra.mxu0 0.0
        %3218 = vmatprep.subr.mxu0 0.0
        %3219 = vmatpush1.xpose.msra.mxu0 0.0
        %3220 = vmatprep.subr.mxu0 0.0
        %3221 = vmatpush1.xpose.msra.mxu0 0.0
        %3222 = vmatprep.subr.mxu0 0.0
        %3223 = vmatpush1.xpose.msra.mxu0 0.0
        %3224 = vmatprep.subr.mxu0 0.0
        %3225 = vmatpush1.xpose.msra.mxu0 0.0
        %3226 = vmatprep.subr.mxu0 0.0
        %3227 = vmatpush1.xpose.msra.mxu0 0.0
        %3228 = vmatprep.mubr.f32.mxu0 0.0
        %3229 = vmatmul.mubr.f32.gmra.mrb[0].mxu0 %v3160
        %v3230 = vpop.f32.mrb[0].mxu0
        %v3231 = vadd.f32 %v548, %v3230
        %v3232 = vpop.f32.mrb[0].mxu0
        %3233 = vdwg.mxu0
        %v3234 = vsel %vm658, %v3231, -inf
        %3235 = vmax.xlane.f32.xlu0 %v3234
        %v3236 = vpop.xlane.xlu0 %3235
        %v3237 = vsub.f32 %v3231, %v3236
        %v3238 = vmul.f32 %v3237, 1.442695
        %v3239 = vpow.pop %v3238
        %v3240 = vsel %vm658, %v3239, 0.0
        %3241 = vadd.xlane.f32.xlu0 %v3240
        %v3242 = vpop.xlane.xlu0 %3241
        %v3243 = vrcp.pop %v3242
        %v3244 = vmul.f32 %v3239, %v3243
        %3246 = vrot.lane.b32.xlu0 %v3155, 64
        %v3247 = vpop.permute.xlu0 %3246
        %v3250 = vsel %vm658, %v3244, 0
        %3252 = vmatprep.subr.mxu0 0.0
        %3253 = vmatpush1.msra.mxu0 %v3247
        %3254 = vmatprep.subr.mxu0 0.0
        %3255 = vmatpush1.msra.mxu0 0.0
        %3256 = vmatprep.subr.mxu0 0.0
        %3257 = vmatpush1.msra.mxu0 0.0
        %3258 = vmatprep.subr.mxu0 0.0
        %3259 = vmatpush1.msra.mxu0 0.0
        %3260 = vmatprep.subr.mxu0 0.0
        %3261 = vmatpush1.msra.mxu0 0.0
        %3262 = vmatprep.subr.mxu0 0.0
        %3263 = vmatpush1.msra.mxu0 0.0
        %3264 = vmatprep.subr.mxu0 0.0
        %3265 = vmatpush1.msra.mxu0 0.0
        %3266 = vmatprep.subr.mxu0 0.0
        %3267 = vmatpush1.msra.mxu0 0.0
        %3268 = vmatprep.subr.mxu0 0.0
        %3269 = vmatpush1.msra.mxu0 0.0
        %3270 = vmatprep.subr.mxu0 0.0
        %3271 = vmatpush1.msra.mxu0 0.0
        %3272 = vmatprep.subr.mxu0 0.0
        %3273 = vmatpush1.msra.mxu0 0.0
        %3274 = vmatprep.subr.mxu0 0.0
        %3275 = vmatpush1.msra.mxu0 0.0
        %3276 = vmatprep.subr.mxu0 0.0
        %3277 = vmatpush1.msra.mxu0 0.0
        %3278 = vmatprep.subr.mxu0 0.0
        %3279 = vmatpush1.msra.mxu0 0.0
        %3280 = vmatprep.subr.mxu0 0.0
        %3281 = vmatpush1.msra.mxu0 0.0
        %3282 = vmatprep.subr.mxu0 0.0
        %3283 = vmatpush1.msra.mxu0 0.0
        %3284 = vmatprep.subr.mxu0 0.0
        %3285 = vmatpush1.msra.mxu0 0.0
        %3286 = vmatprep.subr.mxu0 0.0
        %3287 = vmatpush1.msra.mxu0 0.0
        %3288 = vmatprep.subr.mxu0 0.0
        %3289 = vmatpush1.msra.mxu0 0.0
        %3290 = vmatprep.subr.mxu0 0.0
        %3291 = vmatpush1.msra.mxu0 0.0
        %3292 = vmatprep.subr.mxu0 0.0
        %3293 = vmatpush1.msra.mxu0 0.0
        %3294 = vmatprep.subr.mxu0 0.0
        %3295 = vmatpush1.msra.mxu0 0.0
        %3296 = vmatprep.subr.mxu0 0.0
        %3297 = vmatpush1.msra.mxu0 0.0
        %3298 = vmatprep.subr.mxu0 0.0
        %3299 = vmatpush1.msra.mxu0 0.0
        %3300 = vmatprep.subr.mxu0 0.0
        %3301 = vmatpush1.msra.mxu0 0.0
        %3302 = vmatprep.subr.mxu0 0.0
        %3303 = vmatpush1.msra.mxu0 0.0
        %3304 = vmatprep.subr.mxu0 0.0
        %3305 = vmatpush1.msra.mxu0 0.0
        %3306 = vmatprep.subr.mxu0 0.0
        %3307 = vmatpush1.msra.mxu0 0.0
        %3308 = vmatprep.subr.mxu0 0.0
        %3309 = vmatpush1.msra.mxu0 0.0
        %3310 = vmatprep.subr.mxu0 0.0
        %3311 = vmatpush1.msra.mxu0 0.0
        %3312 = vmatprep.subr.mxu0 0.0
        %3313 = vmatpush1.msra.mxu0 0.0
        %3314 = vmatprep.subr.mxu0 0.0
        %3315 = vmatpush1.msra.mxu0 0.0
        %3316 = vmatprep.mubr.f32.mxu0 0.0
        %3317 = vmatmul.mubr.f32.gmra.mrb[0].mxu0 %v3250
        %v3318 = vpop.f32.mrb[0].mxu0
        %v3319 = vadd.f32 0.0, %v3318
        %v3320 = vpop.f32.mrb[0].mxu0
        %3321 = vdwg.mxu0
        %s3322 = scalar_lea.vmem %s5, 32
        %v3323 = vld [vmem:[%s3322] sm:$0xff]
        %3324 = vrot.lane.b32.xlu0 %v3135, 120
        %v3325 = vpop.permute.xlu0 %3324
        %3326 = vrot.lane.b32.xlu0 %v3145, 88
        %v3327 = vpop.permute.xlu0 %3326
        %v3328 = vsel %vm658, %v3325, 0
        %v3330 = vsel %vm658, %v3327, 0
        %3332 = vmatprep.subr.mxu0 0.0
        %3333 = vmatpush1.xpose.msra.mxu0 %v3330
        %3334 = vmatprep.subr.mxu0 0.0
        %3335 = vmatpush1.xpose.msra.mxu0 0.0
        %3336 = vmatprep.subr.mxu0 0.0
        %3337 = vmatpush1.xpose.msra.mxu0 0.0
        %3338 = vmatprep.subr.mxu0 0.0
        %3339 = vmatpush1.xpose.msra.mxu0 0.0
        %3340 = vmatprep.subr.mxu0 0.0
        %3341 = vmatpush1.xpose.msra.mxu0 0.0
        %3342 = vmatprep.subr.mxu0 0.0
        %3343 = vmatpush1.xpose.msra.mxu0 0.0
        %3344 = vmatprep.subr.mxu0 0.0
        %3345 = vmatpush1.xpose.msra.mxu0 0.0
        %3346 = vmatprep.subr.mxu0 0.0
        %3347 = vmatpush1.xpose.msra.mxu0 0.0
        %3348 = vmatprep.subr.mxu0 0.0
        %3349 = vmatpush1.xpose.msra.mxu0 0.0
        %3350 = vmatprep.subr.mxu0 0.0
        %3351 = vmatpush1.xpose.msra.mxu0 0.0
        %3352 = vmatprep.subr.mxu0 0.0
        %3353 = vmatpush1.xpose.msra.mxu0 0.0
        %3354 = vmatprep.subr.mxu0 0.0
        %3355 = vmatpush1.xpose.msra.mxu0 0.0
        %3356 = vmatprep.subr.mxu0 0.0
        %3357 = vmatpush1.xpose.msra.mxu0 0.0
        %3358 = vmatprep.subr.mxu0 0.0
        %3359 = vmatpush1.xpose.msra.mxu0 0.0
        %3360 = vmatprep.subr.mxu0 0.0
        %3361 = vmatpush1.xpose.msra.mxu0 0.0
        %3362 = vmatprep.subr.mxu0 0.0
        %3363 = vmatpush1.xpose.msra.mxu0 0.0
        %3364 = vmatprep.subr.mxu0 0.0
        %3365 = vmatpush1.xpose.msra.mxu0 0.0
        %3366 = vmatprep.subr.mxu0 0.0
        %3367 = vmatpush1.xpose.msra.mxu0 0.0
        %3368 = vmatprep.subr.mxu0 0.0
        %3369 = vmatpush1.xpose.msra.mxu0 0.0
        %3370 = vmatprep.subr.mxu0 0.0
        %3371 = vmatpush1.xpose.msra.mxu0 0.0
        %3372 = vmatprep.subr.mxu0 0.0
        %3373 = vmatpush1.xpose.msra.mxu0 0.0
        %3374 = vmatprep.subr.mxu0 0.0
        %3375 = vmatpush1.xpose.msra.mxu0 0.0
        %3376 = vmatprep.subr.mxu0 0.0
        %3377 = vmatpush1.xpose.msra.mxu0 0.0
        %3378 = vmatprep.subr.mxu0 0.0
        %3379 = vmatpush1.xpose.msra.mxu0 0.0
        %3380 = vmatprep.subr.mxu0 0.0
        %3381 = vmatpush1.xpose.msra.mxu0 0.0
        %3382 = vmatprep.subr.mxu0 0.0
        %3383 = vmatpush1.xpose.msra.mxu0 0.0
        %3384 = vmatprep.subr.mxu0 0.0
        %3385 = vmatpush1.xpose.msra.mxu0 0.0
        %3386 = vmatprep.subr.mxu0 0.0
        %3387 = vmatpush1.xpose.msra.mxu0 0.0
        %3388 = vmatprep.subr.mxu0 0.0
        %3389 = vmatpush1.xpose.msra.mxu0 0.0
        %3390 = vmatprep.subr.mxu0 0.0
        %3391 = vmatpush1.xpose.msra.mxu0 0.0
        %3392 = vmatprep.subr.mxu0 0.0
        %3393 = vmatpush1.xpose.msra.mxu0 0.0
        %3394 = vmatprep.subr.mxu0 0.0
        %3395 = vmatpush1.xpose.msra.mxu0 0.0
        %3396 = vmatprep.mubr.f32.mxu0 0.0
        %3397 = vmatmul.mubr.f32.gmra.mrb[0].mxu0 %v3328
        %v3398 = vpop.f32.mrb[0].mxu0
        %v3399 = vadd.f32 %v548, %v3398
        %v3400 = vpop.f32.mrb[0].mxu0
        %3401 = vdwg.mxu0
        %v3402 = vsel %vm658, %v3399, -inf
        %3403 = vmax.xlane.f32.xlu0 %v3402
        %v3404 = vpop.xlane.xlu0 %3403
        %v3405 = vsub.f32 %v3399, %v3404
        %v3406 = vmul.f32 %v3405, 1.442695
        %v3407 = vpow.pop %v3406
        %v3408 = vsel %vm658, %v3407, 0.0
        %3409 = vadd.xlane.f32.xlu0 %v3408
        %v3410 = vpop.xlane.xlu0 %3409
        %v3411 = vrcp.pop %v3410
        %v3412 = vmul.f32 %v3407, %v3411
        %3413 = vrot.lane.b32.xlu0 %v3155, 56
        %v3414 = vpop.permute.xlu0 %3413
        %v3417 = vsel %vm658, %v3412, 0
        %3419 = vmatprep.subr.mxu0 0.0
        %3420 = vmatpush1.msra.mxu0 %v3414
        %3421 = vmatprep.subr.mxu0 0.0
        %3422 = vmatpush1.msra.mxu0 0.0
        %3423 = vmatprep.subr.mxu0 0.0
        %3424 = vmatpush1.msra.mxu0 0.0
        %3425 = vmatprep.subr.mxu0 0.0
        %3426 = vmatpush1.msra.mxu0 0.0
        %3427 = vmatprep.subr.mxu0 0.0
        %3428 = vmatpush1.msra.mxu0 0.0
        %3429 = vmatprep.subr.mxu0 0.0
        %3430 = vmatpush1.msra.mxu0 0.0
        %3431 = vmatprep.subr.mxu0 0.0
        %3432 = vmatpush1.msra.mxu0 0.0
        %3433 = vmatprep.subr.mxu0 0.0
        %3434 = vmatpush1.msra.mxu0 0.0
        %3435 = vmatprep.subr.mxu0 0.0
        %3436 = vmatpush1.msra.mxu0 0.0
        %3437 = vmatprep.subr.mxu0 0.0
        %3438 = vmatpush1.msra.mxu0 0.0
        %3439 = vmatprep.subr.mxu0 0.0
        %3440 = vmatpush1.msra.mxu0 0.0
        %3441 = vmatprep.subr.mxu0 0.0
        %3442 = vmatpush1.msra.mxu0 0.0
        %3443 = vmatprep.subr.mxu0 0.0
        %3444 = vmatpush1.msra.mxu0 0.0
        %3445 = vmatprep.subr.mxu0 0.0
        %3446 = vmatpush1.msra.mxu0 0.0
        %3447 = vmatprep.subr.mxu0 0.0
        %3448 = vmatpush1.msra.mxu0 0.0
        %3449 = vmatprep.subr.mxu0 0.0
        %3450 = vmatpush1.msra.mxu0 0.0
        %3451 = vmatprep.subr.mxu0 0.0
        %3452 = vmatpush1.msra.mxu0 0.0
        %3453 = vmatprep.subr.mxu0 0.0
        %3454 = vmatpush1.msra.mxu0 0.0
        %3455 = vmatprep.subr.mxu0 0.0
        %3456 = vmatpush1.msra.mxu0 0.0
        %3457 = vmatprep.subr.mxu0 0.0
        %3458 = vmatpush1.msra.mxu0 0.0
        %3459 = vmatprep.subr.mxu0 0.0
        %3460 = vmatpush1.msra.mxu0 0.0
        %3461 = vmatprep.subr.mxu0 0.0
        %3462 = vmatpush1.msra.mxu0 0.0
        %3463 = vmatprep.subr.mxu0 0.0
        %3464 = vmatpush1.msra.mxu0 0.0
        %3465 = vmatprep.subr.mxu0 0.0
        %3466 = vmatpush1.msra.mxu0 0.0
        %3467 = vmatprep.subr.mxu0 0.0
        %3468 = vmatpush1.msra.mxu0 0.0
        %3469 = vmatprep.subr.mxu0 0.0
        %3470 = vmatpush1.msra.mxu0 0.0
        %3471 = vmatprep.subr.mxu0 0.0
        %3472 = vmatpush1.msra.mxu0 0.0
        %3473 = vmatprep.subr.mxu0 0.0
        %3474 = vmatpush1.msra.mxu0 0.0
        %3475 = vmatprep.subr.mxu0 0.0
        %3476 = vmatpush1.msra.mxu0 0.0
        %3477 = vmatprep.subr.mxu0 0.0
        %3478 = vmatpush1.msra.mxu0 0.0
        %3479 = vmatprep.subr.mxu0 0.0
        %3480 = vmatpush1.msra.mxu0 0.0
        %3481 = vmatprep.subr.mxu0 0.0
        %3482 = vmatpush1.msra.mxu0 0.0
        %3483 = vmatprep.mubr.f32.mxu0 0.0
        %3484 = vmatmul.mubr.f32.gmra.mrb[0].mxu0 %v3417
        %v3485 = vpop.f32.mrb[0].mxu0
        %v3486 = vadd.f32 0.0, %v3485
        %v3487 = vpop.f32.mrb[0].mxu0
        %3488 = vdwg.mxu0
        %v3489 = vld [vmem:[%s3322 + $0x8] sm:$0xff]
        %v3491 = vsel %vm658, %v3486, 0
        %3493 = vmatprep.subr.mxu0 0.0
        %3494 = vmatpush1.msra.mxu0 %v3489
        %3495 = vmatprep.subr.mxu0 0.0
        %3496 = vmatpush1.msra.mxu0 0.0
        %3497 = vmatprep.subr.mxu0 0.0
        %3498 = vmatpush1.msra.mxu0 0.0
        %3499 = vmatprep.subr.mxu0 0.0
        %3500 = vmatpush1.msra.mxu0 0.0
        %3501 = vmatprep.subr.mxu0 0.0
        %3502 = vmatpush1.msra.mxu0 0.0
        %3503 = vmatprep.subr.mxu0 0.0
        %3504 = vmatpush1.msra.mxu0 0.0
        %3505 = vmatprep.subr.mxu0 0.0
        %3506 = vmatpush1.msra.mxu0 0.0
        %3507 = vmatprep.subr.mxu0 0.0
        %3508 = vmatpush1.msra.mxu0 0.0
        %3509 = vmatprep.subr.mxu0 0.0
        %3510 = vmatpush1.msra.mxu0 0.0
        %3511 = vmatprep.subr.mxu0 0.0
        %3512 = vmatpush1.msra.mxu0 0.0
        %3513 = vmatprep.subr.mxu0 0.0
        %3514 = vmatpush1.msra.mxu0 0.0
        %3515 = vmatprep.subr.mxu0 0.0
        %3516 = vmatpush1.msra.mxu0 0.0
        %3517 = vmatprep.subr.mxu0 0.0
        %3518 = vmatpush1.msra.mxu0 0.0
        %3519 = vmatprep.subr.mxu0 0.0
        %3520 = vmatpush1.msra.mxu0 0.0
        %3521 = vmatprep.subr.mxu0 0.0
        %3522 = vmatpush1.msra.mxu0 0.0
        %3523 = vmatprep.subr.mxu0 0.0
        %3524 = vmatpush1.msra.mxu0 0.0
        %3525 = vmatprep.subr.mxu0 0.0
        %3526 = vmatpush1.msra.mxu0 0.0
        %3527 = vmatprep.subr.mxu0 0.0
        %3528 = vmatpush1.msra.mxu0 0.0
        %3529 = vmatprep.subr.mxu0 0.0
        %3530 = vmatpush1.msra.mxu0 0.0
        %3531 = vmatprep.subr.mxu0 0.0
        %3532 = vmatpush1.msra.mxu0 0.0
        %3533 = vmatprep.subr.mxu0 0.0
        %3534 = vmatpush1.msra.mxu0 0.0
        %3535 = vmatprep.subr.mxu0 0.0
        %3536 = vmatpush1.msra.mxu0 0.0
        %3537 = vmatprep.subr.mxu0 0.0
        %3538 = vmatpush1.msra.mxu0 0.0
        %3539 = vmatprep.subr.mxu0 0.0
        %3540 = vmatpush1.msra.mxu0 0.0
        %3541 = vmatprep.subr.mxu0 0.0
        %3542 = vmatpush1.msra.mxu0 0.0
        %3543 = vmatprep.subr.mxu0 0.0
        %3544 = vmatpush1.msra.mxu0 0.0
        %3545 = vmatprep.subr.mxu0 0.0
        %3546 = vmatpush1.msra.mxu0 0.0
        %3547 = vmatprep.subr.mxu0 0.0
        %3548 = vmatpush1.msra.mxu0 0.0
        %3549 = vmatprep.subr.mxu0 0.0
        %3550 = vmatpush1.msra.mxu0 0.0
        %3551 = vmatprep.subr.mxu0 0.0
        %3552 = vmatpush1.msra.mxu0 0.0
        %3553 = vmatprep.subr.mxu0 0.0
        %3554 = vmatpush1.msra.mxu0 0.0
        %3555 = vmatprep.subr.mxu0 0.0
        %3556 = vmatpush1.msra.mxu0 0.0
        %3557 = vmatprep.mubr.f32.mxu0 0.0
        %3558 = vmatmul.mubr.f32.gmra.mrb[0].mxu0 %v3491
        %v3559 = vpop.f32.mrb[0].mxu0
        %v3560 = vadd.f32 0.0, %v3559
        %v3561 = vpop.f32.mrb[0].mxu0
        %3562 = vdwg.mxu0
        %v3564 = vsel %vm658, %v3319, 0
        %3566 = vmatprep.subr.mxu0 0.0
        %3567 = vmatpush1.msra.mxu0 %v3323
        %3568 = vmatprep.subr.mxu0 0.0
        %3569 = vmatpush1.msra.mxu0 0.0
        %3570 = vmatprep.subr.mxu0 0.0
        %3571 = vmatpush1.msra.mxu0 0.0
        %3572 = vmatprep.subr.mxu0 0.0
        %3573 = vmatpush1.msra.mxu0 0.0
        %3574 = vmatprep.subr.mxu0 0.0
        %3575 = vmatpush1.msra.mxu0 0.0
        %3576 = vmatprep.subr.mxu0 0.0
        %3577 = vmatpush1.msra.mxu0 0.0
        %3578 = vmatprep.subr.mxu0 0.0
        %3579 = vmatpush1.msra.mxu0 0.0
        %3580 = vmatprep.subr.mxu0 0.0
        %3581 = vmatpush1.msra.mxu0 0.0
        %3582 = vmatprep.subr.mxu0 0.0
        %3583 = vmatpush1.msra.mxu0 0.0
        %3584 = vmatprep.subr.mxu0 0.0
        %3585 = vmatpush1.msra.mxu0 0.0
        %3586 = vmatprep.subr.mxu0 0.0
        %3587 = vmatpush1.msra.mxu0 0.0
        %3588 = vmatprep.subr.mxu0 0.0
        %3589 = vmatpush1.msra.mxu0 0.0
        %3590 = vmatprep.subr.mxu0 0.0
        %3591 = vmatpush1.msra.mxu0 0.0
        %3592 = vmatprep.subr.mxu0 0.0
        %3593 = vmatpush1.msra.mxu0 0.0
        %3594 = vmatprep.subr.mxu0 0.0
        %3595 = vmatpush1.msra.mxu0 0.0
        %3596 = vmatprep.subr.mxu0 0.0
        %3597 = vmatpush1.msra.mxu0 0.0
        %3598 = vmatprep.subr.mxu0 0.0
        %3599 = vmatpush1.msra.mxu0 0.0
        %3600 = vmatprep.subr.mxu0 0.0
        %3601 = vmatpush1.msra.mxu0 0.0
        %3602 = vmatprep.subr.mxu0 0.0
        %3603 = vmatpush1.msra.mxu0 0.0
        %3604 = vmatprep.subr.mxu0 0.0
        %3605 = vmatpush1.msra.mxu0 0.0
        %3606 = vmatprep.subr.mxu0 0.0
        %3607 = vmatpush1.msra.mxu0 0.0
        %3608 = vmatprep.subr.mxu0 0.0
        %3609 = vmatpush1.msra.mxu0 0.0
        %3610 = vmatprep.subr.mxu0 0.0
        %3611 = vmatpush1.msra.mxu0 0.0
        %3612 = vmatprep.subr.mxu0 0.0
        %3613 = vmatpush1.msra.mxu0 0.0
        %3614 = vmatprep.subr.mxu0 0.0
        %3615 = vmatpush1.msra.mxu0 0.0
        %3616 = vmatprep.subr.mxu0 0.0
        %3617 = vmatpush1.msra.mxu0 0.0
        %3618 = vmatprep.subr.mxu0 0.0
        %3619 = vmatpush1.msra.mxu0 0.0
        %3620 = vmatprep.subr.mxu0 0.0
        %3621 = vmatpush1.msra.mxu0 0.0
        %3622 = vmatprep.subr.mxu0 0.0
        %3623 = vmatpush1.msra.mxu0 0.0
        %3624 = vmatprep.subr.mxu0 0.0
        %3625 = vmatpush1.msra.mxu0 0.0
        %3626 = vmatprep.subr.mxu0 0.0
        %3627 = vmatpush1.msra.mxu0 0.0
        %3628 = vmatprep.subr.mxu0 0.0
        %3629 = vmatpush1.msra.mxu0 0.0
        %3630 = vmatprep.mubr.f32.mxu0 0.0
        %3631 = vmatmul.mubr.f32.gmra.mrb[0].mxu0 %v3564
        %v3632 = vpop.f32.mrb[0].mxu0
        %v3633 = vadd.f32 %v3560, %v3632
        %v3634 = vpop.f32.mrb[0].mxu0
        %3635 = vdwg.mxu0
        %3636 = vrot.lane.b32.xlu0 %v3135, 112
        %v3637 = vpop.permute.xlu0 %3636
        %3638 = vrot.lane.b32.xlu0 %v3145, 80
        %v3639 = vpop.permute.xlu0 %3638
        %v3640 = vsel %vm658, %v3637, 0
        %v3642 = vsel %vm658, %v3639, 0
        %3644 = vmatprep.subr.mxu0 0.0
        %3645 = vmatpush1.xpose.msra.mxu0 %v3642
        %3646 = vmatprep.subr.mxu0 0.0
        %3647 = vmatpush1.xpose.msra.mxu0 0.0
        %3648 = vmatprep.subr.mxu0 0.0
        %3649 = vmatpush1.xpose.msra.mxu0 0.0
        %3650 = vmatprep.subr.mxu0 0.0
        %3651 = vmatpush1.xpose.msra.mxu0 0.0
        %3652 = vmatprep.subr.mxu0 0.0
        %3653 = vmatpush1.xpose.msra.mxu0 0.0
        %3654 = vmatprep.subr.mxu0 0.0
        %3655 = vmatpush1.xpose.msra.mxu0 0.0
        %3656 = vmatprep.subr.mxu0 0.0
        %3657 = vmatpush1.xpose.msra.mxu0 0.0
        %3658 = vmatprep.subr.mxu0 0.0
        %3659 = vmatpush1.xpose.msra.mxu0 0.0
        %3660 = vmatprep.subr.mxu0 0.0
        %3661 = vmatpush1.xpose.msra.mxu0 0.0
        %3662 = vmatprep.subr.mxu0 0.0
        %3663 = vmatpush1.xpose.msra.mxu0 0.0
        %3664 = vmatprep.subr.mxu0 0.0
        %3665 = vmatpush1.xpose.msra.mxu0 0.0
        %3666 = vmatprep.subr.mxu0 0.0
        %3667 = vmatpush1.xpose.msra.mxu0 0.0
        %3668 = vmatprep.subr.mxu0 0.0
        %3669 = vmatpush1.xpose.msra.mxu0 0.0
        %3670 = vmatprep.subr.mxu0 0.0
        %3671 = vmatpush1.xpose.msra.mxu0 0.0
        %3672 = vmatprep.subr.mxu0 0.0
        %3673 = vmatpush1.xpose.msra.mxu0 0.0
        %3674 = vmatprep.subr.mxu0 0.0
        %3675 = vmatpush1.xpose.msra.mxu0 0.0
        %3676 = vmatprep.subr.mxu0 0.0
        %3677 = vmatpush1.xpose.msra.mxu0 0.0
        %3678 = vmatprep.subr.mxu0 0.0
        %3679 = vmatpush1.xpose.msra.mxu0 0.0
        %3680 = vmatprep.subr.mxu0 0.0
        %3681 = vmatpush1.xpose.msra.mxu0 0.0
        %3682 = vmatprep.subr.mxu0 0.0
        %3683 = vmatpush1.xpose.msra.mxu0 0.0
        %3684 = vmatprep.subr.mxu0 0.0
        %3685 = vmatpush1.xpose.msra.mxu0 0.0
        %3686 = vmatprep.subr.mxu0 0.0
        %3687 = vmatpush1.xpose.msra.mxu0 0.0
        %3688 = vmatprep.subr.mxu0 0.0
        %3689 = vmatpush1.xpose.msra.mxu0 0.0
        %3690 = vmatprep.subr.mxu0 0.0
        %3691 = vmatpush1.xpose.msra.mxu0 0.0
        %3692 = vmatprep.subr.mxu0 0.0
        %3693 = vmatpush1.xpose.msra.mxu0 0.0
        %3694 = vmatprep.subr.mxu0 0.0
        %3695 = vmatpush1.xpose.msra.mxu0 0.0
        %3696 = vmatprep.subr.mxu0 0.0
        %3697 = vmatpush1.xpose.msra.mxu0 0.0
        %3698 = vmatprep.subr.mxu0 0.0
        %3699 = vmatpush1.xpose.msra.mxu0 0.0
        %3700 = vmatprep.subr.mxu0 0.0
        %3701 = vmatpush1.xpose.msra.mxu0 0.0
        %3702 = vmatprep.subr.mxu0 0.0
        %3703 = vmatpush1.xpose.msra.mxu0 0.0
        %3704 = vmatprep.subr.mxu0 0.0
        %3705 = vmatpush1.xpose.msra.mxu0 0.0
        %3706 = vmatprep.subr.mxu0 0.0
        %3707 = vmatpush1.xpose.msra.mxu0 0.0
        %3708 = vmatprep.mubr.f32.mxu0 0.0
        %3709 = vmatmul.mubr.f32.gmra.mrb[0].mxu0 %v3640
        %v3710 = vpop.f32.mrb[0].mxu0
        %v3711 = vadd.f32 %v548, %v3710
        %v3712 = vpop.f32.mrb[0].mxu0
        %3713 = vdwg.mxu0
        %v3714 = vsel %vm658, %v3711, -inf
        %3715 = vmax.xlane.f32.xlu0 %v3714
        %v3716 = vpop.xlane.xlu0 %3715
        %v3717 = vsub.f32 %v3711, %v3716
        %v3718 = vmul.f32 %v3717, 1.442695
        %v3719 = vpow.pop %v3718
        %v3720 = vsel %vm658, %v3719, 0.0
        %3721 = vadd.xlane.f32.xlu0 %v3720
        %v3722 = vpop.xlane.xlu0 %3721
        %v3723 = vrcp.pop %v3722
        %v3724 = vmul.f32 %v3719, %v3723
        %3725 = vrot.lane.b32.xlu0 %v3155, 48
        %v3726 = vpop.permute.xlu0 %3725
        %v3729 = vsel %vm658, %v3724, 0
        %3731 = vmatprep.subr.mxu0 0.0
        %3732 = vmatpush1.msra.mxu0 %v3726
        %3733 = vmatprep.subr.mxu0 0.0
        %3734 = vmatpush1.msra.mxu0 0.0
        %3735 = vmatprep.subr.mxu0 0.0
        %3736 = vmatpush1.msra.mxu0 0.0
        %3737 = vmatprep.subr.mxu0 0.0
        %3738 = vmatpush1.msra.mxu0 0.0
        %3739 = vmatprep.subr.mxu0 0.0
        %3740 = vmatpush1.msra.mxu0 0.0
        %3741 = vmatprep.subr.mxu0 0.0
        %3742 = vmatpush1.msra.mxu0 0.0
        %3743 = vmatprep.subr.mxu0 0.0
        %3744 = vmatpush1.msra.mxu0 0.0
        %3745 = vmatprep.subr.mxu0 0.0
        %3746 = vmatpush1.msra.mxu0 0.0
        %3747 = vmatprep.subr.mxu0 0.0
        %3748 = vmatpush1.msra.mxu0 0.0
        %3749 = vmatprep.subr.mxu0 0.0
        %3750 = vmatpush1.msra.mxu0 0.0
        %3751 = vmatprep.subr.mxu0 0.0
        %3752 = vmatpush1.msra.mxu0 0.0
        %3753 = vmatprep.subr.mxu0 0.0
        %3754 = vmatpush1.msra.mxu0 0.0
        %3755 = vmatprep.subr.mxu0 0.0
        %3756 = vmatpush1.msra.mxu0 0.0
        %3757 = vmatprep.subr.mxu0 0.0
        %3758 = vmatpush1.msra.mxu0 0.0
        %3759 = vmatprep.subr.mxu0 0.0
        %3760 = vmatpush1.msra.mxu0 0.0
        %3761 = vmatprep.subr.mxu0 0.0
        %3762 = vmatpush1.msra.mxu0 0.0
        %3763 = vmatprep.subr.mxu0 0.0
        %3764 = vmatpush1.msra.mxu0 0.0
        %3765 = vmatprep.subr.mxu0 0.0
        %3766 = vmatpush1.msra.mxu0 0.0
        %3767 = vmatprep.subr.mxu0 0.0
        %3768 = vmatpush1.msra.mxu0 0.0
        %3769 = vmatprep.subr.mxu0 0.0
        %3770 = vmatpush1.msra.mxu0 0.0
        %3771 = vmatprep.subr.mxu0 0.0
        %3772 = vmatpush1.msra.mxu0 0.0
        %3773 = vmatprep.subr.mxu0 0.0
        %3774 = vmatpush1.msra.mxu0 0.0
        %3775 = vmatprep.subr.mxu0 0.0
        %3776 = vmatpush1.msra.mxu0 0.0
        %3777 = vmatprep.subr.mxu0 0.0
        %3778 = vmatpush1.msra.mxu0 0.0
        %3779 = vmatprep.subr.mxu0 0.0
        %3780 = vmatpush1.msra.mxu0 0.0
        %3781 = vmatprep.subr.mxu0 0.0
        %3782 = vmatpush1.msra.mxu0 0.0
        %3783 = vmatprep.subr.mxu0 0.0
        %3784 = vmatpush1.msra.mxu0 0.0
        %3785 = vmatprep.subr.mxu0 0.0
        %3786 = vmatpush1.msra.mxu0 0.0
        %3787 = vmatprep.subr.mxu0 0.0
        %3788 = vmatpush1.msra.mxu0 0.0
        %3789 = vmatprep.subr.mxu0 0.0
        %3790 = vmatpush1.msra.mxu0 0.0
        %3791 = vmatprep.subr.mxu0 0.0
        %3792 = vmatpush1.msra.mxu0 0.0
        %3793 = vmatprep.subr.mxu0 0.0
        %3794 = vmatpush1.msra.mxu0 0.0
        %3795 = vmatprep.mubr.f32.mxu0 0.0
        %3796 = vmatmul.mubr.f32.gmra.mrb[0].mxu0 %v3729
        %v3797 = vpop.f32.mrb[0].mxu0
        %v3798 = vadd.f32 0.0, %v3797
        %v3799 = vpop.f32.mrb[0].mxu0
        %3800 = vdwg.mxu0
        %v3801 = vld [vmem:[%s3322 + $0x10] sm:$0xff]
        %v3803 = vsel %vm658, %v3798, 0
        %3805 = vmatprep.subr.mxu0 0.0
        %3806 = vmatpush1.msra.mxu0 %v3801
        %3807 = vmatprep.subr.mxu0 0.0
        %3808 = vmatpush1.msra.mxu0 0.0
        %3809 = vmatprep.subr.mxu0 0.0
        %3810 = vmatpush1.msra.mxu0 0.0
        %3811 = vmatprep.subr.mxu0 0.0
        %3812 = vmatpush1.msra.mxu0 0.0
        %3813 = vmatprep.subr.mxu0 0.0
        %3814 = vmatpush1.msra.mxu0 0.0
        %3815 = vmatprep.subr.mxu0 0.0
        %3816 = vmatpush1.msra.mxu0 0.0
        %3817 = vmatprep.subr.mxu0 0.0
        %3818 = vmatpush1.msra.mxu0 0.0
        %3819 = vmatprep.subr.mxu0 0.0
        %3820 = vmatpush1.msra.mxu0 0.0
        %3821 = vmatprep.subr.mxu0 0.0
        %3822 = vmatpush1.msra.mxu0 0.0
        %3823 = vmatprep.subr.mxu0 0.0
        %3824 = vmatpush1.msra.mxu0 0.0
        %3825 = vmatprep.subr.mxu0 0.0
        %3826 = vmatpush1.msra.mxu0 0.0
        %3827 = vmatprep.subr.mxu0 0.0
        %3828 = vmatpush1.msra.mxu0 0.0
        %3829 = vmatprep.subr.mxu0 0.0
        %3830 = vmatpush1.msra.mxu0 0.0
        %3831 = vmatprep.subr.mxu0 0.0
        %3832 = vmatpush1.msra.mxu0 0.0
        %3833 = vmatprep.subr.mxu0 0.0
        %3834 = vmatpush1.msra.mxu0 0.0
        %3835 = vmatprep.subr.mxu0 0.0
        %3836 = vmatpush1.msra.mxu0 0.0
        %3837 = vmatprep.subr.mxu0 0.0
        %3838 = vmatpush1.msra.mxu0 0.0
        %3839 = vmatprep.subr.mxu0 0.0
        %3840 = vmatpush1.msra.mxu0 0.0
        %3841 = vmatprep.subr.mxu0 0.0
        %3842 = vmatpush1.msra.mxu0 0.0
        %3843 = vmatprep.subr.mxu0 0.0
        %3844 = vmatpush1.msra.mxu0 0.0
        %3845 = vmatprep.subr.mxu0 0.0
        %3846 = vmatpush1.msra.mxu0 0.0
        %3847 = vmatprep.subr.mxu0 0.0
        %3848 = vmatpush1.msra.mxu0 0.0
        %3849 = vmatprep.subr.mxu0 0.0
        %3850 = vmatpush1.msra.mxu0 0.0
        %3851 = vmatprep.subr.mxu0 0.0
        %3852 = vmatpush1.msra.mxu0 0.0
        %3853 = vmatprep.subr.mxu0 0.0
        %3854 = vmatpush1.msra.mxu0 0.0
        %3855 = vmatprep.subr.mxu0 0.0
        %3856 = vmatpush1.msra.mxu0 0.0
        %3857 = vmatprep.subr.mxu0 0.0
        %3858 = vmatpush1.msra.mxu0 0.0
        %3859 = vmatprep.subr.mxu0 0.0
        %3860 = vmatpush1.msra.mxu0 0.0
        %3861 = vmatprep.subr.mxu0 0.0
        %3862 = vmatpush1.msra.mxu0 0.0
        %3863 = vmatprep.subr.mxu0 0.0
        %3864 = vmatpush1.msra.mxu0 0.0
        %3865 = vmatprep.subr.mxu0 0.0
        %3866 = vmatpush1.msra.mxu0 0.0
        %3867 = vmatprep.subr.mxu0 0.0
        %3868 = vmatpush1.msra.mxu0 0.0
        %3869 = vmatprep.mubr.f32.mxu0 0.0
        %3870 = vmatmul.mubr.f32.gmra.mrb[0].mxu0 %v3803
        %v3871 = vpop.f32.mrb[0].mxu0
        %v3872 = vadd.f32 0.0, %v3871
        %v3873 = vpop.f32.mrb[0].mxu0
        %3874 = vdwg.mxu0
        %v3875 = vadd.f32 %v3633, %v3872
        %3876 = vrot.lane.b32.xlu0 %v3135, 104
        %v3877 = vpop.permute.xlu0 %3876
        %3878 = vrot.lane.b32.xlu0 %v3145, 72
        %v3879 = vpop.permute.xlu0 %3878
        %v3880 = vsel %vm658, %v3877, 0
        %v3882 = vsel %vm658, %v3879, 0
        %3884 = vmatprep.subr.mxu0 0.0
        %3885 = vmatpush1.xpose.msra.mxu0 %v3882
        %3886 = vmatprep.subr.mxu0 0.0
        %3887 = vmatpush1.xpose.msra.mxu0 0.0
        %3888 = vmatprep.subr.mxu0 0.0
        %3889 = vmatpush1.xpose.msra.mxu0 0.0
        %3890 = vmatprep.subr.mxu0 0.0
        %3891 = vmatpush1.xpose.msra.mxu0 0.0
        %3892 = vmatprep.subr.mxu0 0.0
        %3893 = vmatpush1.xpose.msra.mxu0 0.0
        %3894 = vmatprep.subr.mxu0 0.0
        %3895 = vmatpush1.xpose.msra.mxu0 0.0
        %3896 = vmatprep.subr.mxu0 0.0
        %3897 = vmatpush1.xpose.msra.mxu0 0.0
        %3898 = vmatprep.subr.mxu0 0.0
        %3899 = vmatpush1.xpose.msra.mxu0 0.0
        %3900 = vmatprep.subr.mxu0 0.0
        %3901 = vmatpush1.xpose.msra.mxu0 0.0
        %3902 = vmatprep.subr.mxu0 0.0
        %3903 = vmatpush1.xpose.msra.mxu0 0.0
        %3904 = vmatprep.subr.mxu0 0.0
        %3905 = vmatpush1.xpose.msra.mxu0 0.0
        %3906 = vmatprep.subr.mxu0 0.0
        %3907 = vmatpush1.xpose.msra.mxu0 0.0
        %3908 = vmatprep.subr.mxu0 0.0
        %3909 = vmatpush1.xpose.msra.mxu0 0.0
        %3910 = vmatprep.subr.mxu0 0.0
        %3911 = vmatpush1.xpose.msra.mxu0 0.0
        %3912 = vmatprep.subr.mxu0 0.0
        %3913 = vmatpush1.xpose.msra.mxu0 0.0
        %3914 = vmatprep.subr.mxu0 0.0
        %3915 = vmatpush1.xpose.msra.mxu0 0.0
        %3916 = vmatprep.subr.mxu0 0.0
        %3917 = vmatpush1.xpose.msra.mxu0 0.0
        %3918 = vmatprep.subr.mxu0 0.0
        %3919 = vmatpush1.xpose.msra.mxu0 0.0
        %3920 = vmatprep.subr.mxu0 0.0
        %3921 = vmatpush1.xpose.msra.mxu0 0.0
        %3922 = vmatprep.subr.mxu0 0.0
        %3923 = vmatpush1.xpose.msra.mxu0 0.0
        %3924 = vmatprep.subr.mxu0 0.0
        %3925 = vmatpush1.xpose.msra.mxu0 0.0
        %3926 = vmatprep.subr.mxu0 0.0
        %3927 = vmatpush1.xpose.msra.mxu0 0.0
        %3928 = vmatprep.subr.mxu0 0.0
        %3929 = vmatpush1.xpose.msra.mxu0 0.0
        %3930 = vmatprep.subr.mxu0 0.0
        %3931 = vmatpush1.xpose.msra.mxu0 0.0
        %3932 = vmatprep.subr.mxu0 0.0
        %3933 = vmatpush1.xpose.msra.mxu0 0.0
        %3934 = vmatprep.subr.mxu0 0.0
        %3935 = vmatpush1.xpose.msra.mxu0 0.0
        %3936 = vmatprep.subr.mxu0 0.0
        %3937 = vmatpush1.xpose.msra.mxu0 0.0
        %3938 = vmatprep.subr.mxu0 0.0
        %3939 = vmatpush1.xpose.msra.mxu0 0.0
        %3940 = vmatprep.subr.mxu0 0.0
        %3941 = vmatpush1.xpose.msra.mxu0 0.0
        %3942 = vmatprep.subr.mxu0 0.0
        %3943 = vmatpush1.xpose.msra.mxu0 0.0
        %3944 = vmatprep.subr.mxu0 0.0
        %3945 = vmatpush1.xpose.msra.mxu0 0.0
        %3946 = vmatprep.subr.mxu0 0.0
        %3947 = vmatpush1.xpose.msra.mxu0 0.0
        %3948 = vmatprep.mubr.f32.mxu0 0.0
        %3949 = vmatmul.mubr.f32.gmra.mrb[0].mxu0 %v3880
        %v3950 = vpop.f32.mrb[0].mxu0
        %v3951 = vadd.f32 %v548, %v3950
        %v3952 = vpop.f32.mrb[0].mxu0
        %3953 = vdwg.mxu0
        %v3954 = vsel %vm658, %v3951, -inf
        %3955 = vmax.xlane.f32.xlu0 %v3954
        %v3956 = vpop.xlane.xlu0 %3955
        %v3957 = vsub.f32 %v3951, %v3956
        %v3958 = vmul.f32 %v3957, 1.442695
        %v3959 = vpow.pop %v3958
        %v3960 = vsel %vm658, %v3959, 0.0
        %3961 = vadd.xlane.f32.xlu0 %v3960
        %v3962 = vpop.xlane.xlu0 %3961
        %v3963 = vrcp.pop %v3962
        %v3964 = vmul.f32 %v3959, %v3963
        %3965 = vrot.lane.b32.xlu0 %v3155, 40
        %v3966 = vpop.permute.xlu0 %3965
        %v3969 = vsel %vm658, %v3964, 0
        %3971 = vmatprep.subr.mxu0 0.0
        %3972 = vmatpush1.msra.mxu0 %v3966
        %3973 = vmatprep.subr.mxu0 0.0
        %3974 = vmatpush1.msra.mxu0 0.0
        %3975 = vmatprep.subr.mxu0 0.0
        %3976 = vmatpush1.msra.mxu0 0.0
        %3977 = vmatprep.subr.mxu0 0.0
        %3978 = vmatpush1.msra.mxu0 0.0
        %3979 = vmatprep.subr.mxu0 0.0
        %3980 = vmatpush1.msra.mxu0 0.0
        %3981 = vmatprep.subr.mxu0 0.0
        %3982 = vmatpush1.msra.mxu0 0.0
        %3983 = vmatprep.subr.mxu0 0.0
        %3984 = vmatpush1.msra.mxu0 0.0
        %3985 = vmatprep.subr.mxu0 0.0
        %3986 = vmatpush1.msra.mxu0 0.0
        %3987 = vmatprep.subr.mxu0 0.0
        %3988 = vmatpush1.msra.mxu0 0.0
        %3989 = vmatprep.subr.mxu0 0.0
        %3990 = vmatpush1.msra.mxu0 0.0
        %3991 = vmatprep.subr.mxu0 0.0
        %3992 = vmatpush1.msra.mxu0 0.0
        %3993 = vmatprep.subr.mxu0 0.0
        %3994 = vmatpush1.msra.mxu0 0.0
        %3995 = vmatprep.subr.mxu0 0.0
        %3996 = vmatpush1.msra.mxu0 0.0
        %3997 = vmatprep.subr.mxu0 0.0
        %3998 = vmatpush1.msra.mxu0 0.0
        %3999 = vmatprep.subr.mxu0 0.0
        %4000 = vmatpush1.msra.mxu0 0.0
        %4001 = vmatprep.subr.mxu0 0.0
        %4002 = vmatpush1.msra.mxu0 0.0
        %4003 = vmatprep.subr.mxu0 0.0
        %4004 = vmatpush1.msra.mxu0 0.0
        %4005 = vmatprep.subr.mxu0 0.0
        %4006 = vmatpush1.msra.mxu0 0.0
        %4007 = vmatprep.subr.mxu0 0.0
        %4008 = vmatpush1.msra.mxu0 0.0
        %4009 = vmatprep.subr.mxu0 0.0
        %4010 = vmatpush1.msra.mxu0 0.0
        %4011 = vmatprep.subr.mxu0 0.0
        %4012 = vmatpush1.msra.mxu0 0.0
        %4013 = vmatprep.subr.mxu0 0.0
        %4014 = vmatpush1.msra.mxu0 0.0
        %4015 = vmatprep.subr.mxu0 0.0
        %4016 = vmatpush1.msra.mxu0 0.0
        %4017 = vmatprep.subr.mxu0 0.0
        %4018 = vmatpush1.msra.mxu0 0.0
        %4019 = vmatprep.subr.mxu0 0.0
        %4020 = vmatpush1.msra.mxu0 0.0
        %4021 = vmatprep.subr.mxu0 0.0
        %4022 = vmatpush1.msra.mxu0 0.0
        %4023 = vmatprep.subr.mxu0 0.0
        %4024 = vmatpush1.msra.mxu0 0.0
        %4025 = vmatprep.subr.mxu0 0.0
        %4026 = vmatpush1.msra.mxu0 0.0
        %4027 = vmatprep.subr.mxu0 0.0
        %4028 = vmatpush1.msra.mxu0 0.0
        %4029 = vmatprep.subr.mxu0 0.0
        %4030 = vmatpush1.msra.mxu0 0.0
        %4031 = vmatprep.subr.mxu0 0.0
        %4032 = vmatpush1.msra.mxu0 0.0
        %4033 = vmatprep.subr.mxu0 0.0
        %4034 = vmatpush1.msra.mxu0 0.0
        %4035 = vmatprep.mubr.f32.mxu0 0.0
        %4036 = vmatmul.mubr.f32.gmra.mrb[0].mxu0 %v3969
        %v4037 = vpop.f32.mrb[0].mxu0
        %v4038 = vadd.f32 0.0, %v4037
        %v4039 = vpop.f32.mrb[0].mxu0
        %4040 = vdwg.mxu0
        %v4041 = vld [vmem:[%s3322 + $0x18] sm:$0xff]
        %v4043 = vsel %vm658, %v4038, 0
        %4045 = vmatprep.subr.mxu0 0.0
        %4046 = vmatpush1.msra.mxu0 %v4041
        %4047 = vmatprep.subr.mxu0 0.0
        %4048 = vmatpush1.msra.mxu0 0.0
        %4049 = vmatprep.subr.mxu0 0.0
        %4050 = vmatpush1.msra.mxu0 0.0
        %4051 = vmatprep.subr.mxu0 0.0
        %4052 = vmatpush1.msra.mxu0 0.0
        %4053 = vmatprep.subr.mxu0 0.0
        %4054 = vmatpush1.msra.mxu0 0.0
        %4055 = vmatprep.subr.mxu0 0.0
        %4056 = vmatpush1.msra.mxu0 0.0
        %4057 = vmatprep.subr.mxu0 0.0
        %4058 = vmatpush1.msra.mxu0 0.0
        %4059 = vmatprep.subr.mxu0 0.0
        %4060 = vmatpush1.msra.mxu0 0.0
        %4061 = vmatprep.subr.mxu0 0.0
        %4062 = vmatpush1.msra.mxu0 0.0
        %4063 = vmatprep.subr.mxu0 0.0
        %4064 = vmatpush1.msra.mxu0 0.0
        %4065 = vmatprep.subr.mxu0 0.0
        %4066 = vmatpush1.msra.mxu0 0.0
        %4067 = vmatprep.subr.mxu0 0.0
        %4068 = vmatpush1.msra.mxu0 0.0
        %4069 = vmatprep.subr.mxu0 0.0
        %4070 = vmatpush1.msra.mxu0 0.0
        %4071 = vmatprep.subr.mxu0 0.0
        %4072 = vmatpush1.msra.mxu0 0.0
        %4073 = vmatprep.subr.mxu0 0.0
        %4074 = vmatpush1.msra.mxu0 0.0
        %4075 = vmatprep.subr.mxu0 0.0
        %4076 = vmatpush1.msra.mxu0 0.0
        %4077 = vmatprep.subr.mxu0 0.0
        %4078 = vmatpush1.msra.mxu0 0.0
        %4079 = vmatprep.subr.mxu0 0.0
        %4080 = vmatpush1.msra.mxu0 0.0
        %4081 = vmatprep.subr.mxu0 0.0
        %4082 = vmatpush1.msra.mxu0 0.0
        %4083 = vmatprep.subr.mxu0 0.0
        %4084 = vmatpush1.msra.mxu0 0.0
        %4085 = vmatprep.subr.mxu0 0.0
        %4086 = vmatpush1.msra.mxu0 0.0
        %4087 = vmatprep.subr.mxu0 0.0
        %4088 = vmatpush1.msra.mxu0 0.0
        %4089 = vmatprep.subr.mxu0 0.0
        %4090 = vmatpush1.msra.mxu0 0.0
        %4091 = vmatprep.subr.mxu0 0.0
        %4092 = vmatpush1.msra.mxu0 0.0
        %4093 = vmatprep.subr.mxu0 0.0
        %4094 = vmatpush1.msra.mxu0 0.0
        %4095 = vmatprep.subr.mxu0 0.0
        %4096 = vmatpush1.msra.mxu0 0.0
        %4097 = vmatprep.subr.mxu0 0.0
        %4098 = vmatpush1.msra.mxu0 0.0
        %4099 = vmatprep.subr.mxu0 0.0
        %4100 = vmatpush1.msra.mxu0 0.0
        %4101 = vmatprep.subr.mxu0 0.0
        %4102 = vmatpush1.msra.mxu0 0.0
        %4103 = vmatprep.subr.mxu0 0.0
        %4104 = vmatpush1.msra.mxu0 0.0
        %4105 = vmatprep.subr.mxu0 0.0
        %4106 = vmatpush1.msra.mxu0 0.0
        %4107 = vmatprep.subr.mxu0 0.0
        %4108 = vmatpush1.msra.mxu0 0.0
        %4109 = vmatprep.mubr.f32.mxu0 0.0
        %4110 = vmatmul.mubr.f32.gmra.mrb[0].mxu0 %v4043
        %v4111 = vpop.f32.mrb[0].mxu0
        %v4112 = vadd.f32 0.0, %v4111
        %v4113 = vpop.f32.mrb[0].mxu0
        %4114 = vdwg.mxu0
        %v4115 = vadd.f32 %v3875, %v4112
        %v4116 = vadd.f32 %v3049, %v4115
        %v4117 = vld [vmem:[%s3128 + $0x3] sm:$0x1]
        %v4118 = vlaneseq
        %v4119 = vshrl.u32 %v4118, 7
        %v4120 = vsub.s32 0, %v4119
        %v4121 = vrot.slane %v4117, %v4120
        %v4122 = vadd.f32 %v4116, %v4121
        %v4123 = vld [vmem:[%s3128 + $0x8] sm:$0x1]
        %v4124 = vld [vmem:[%s3128 + $0x9] sm:$0x1]
        %v4125 = vsel %vm554, %v4122, 0.0
        %4126 = vadd.xlane.f32.xlu0 %v4125
        %v4127 = vpop.xlane.xlu0 %4126
        %v4128 = vmul.f32 %v4127, %v1627
        %v4129 = vsub.f32 %v4122, %v4128
        %v4130 = vmul.f32 %v4129, %v4129
        %v4131 = vsel %vm554, %v4130, 0.0
        %4132 = vadd.xlane.f32.xlu0 %v4131
        %v4133 = vpop.xlane.xlu0 %4132
        %v4134 = vmul.f32 %v4133, %v1627
        %v4135 = vadd.f32 %v4134, 1e-05
        %v4136 = vrsqrt.pop %v4135
        %v4137 = vmul.f32 %v4129, %v4136
        %v4138 = vlaneseq
        %v4139 = vshrl.u32 %v4138, 7
        %v4140 = vsub.s32 0, %v4139
        %v4141 = vrot.slane %v4123, %v4140
        %v4142 = vmul.f32 %v4137, %v4141
        %v4143 = vlaneseq
        %v4144 = vshrl.u32 %v4143, 7
        %v4145 = vsub.s32 0, %v4144
        %v4146 = vrot.slane %v4124, %v4145
        %v4147 = vadd.f32 %v4142, %v4146
        %s4148 = scalar_lea.vmem %s6, 32
        %v4149 = vld [vmem:[%s4148] sm:$0xff]
        %v4150 = vld [vmem:[%s4148 + $0x8] sm:$0xff]
        %v4151 = vld [vmem:[%s4148 + $0x10] sm:$0xff]
        %v4152 = vld [vmem:[%s4148 + $0x18] sm:$0xff]
        %v4153 = vld [vmem:[%s3128 + $0x4] sm:$0x1]
        %v4154 = vlaneseq
        %v4155 = vshrl.u32 %v4154, 7
        %v4156 = vsub.s32 0, %v4155
        %v4157 = vrot.slane %v4153, %v4156
        %v4159 = vsel %vm554, %v4147, 0
        %4161 = vmatprep.subr.mxu0 0.0
        %4162 = vmatpush1.msra.mxu0 %v4149
        %4163 = vmatprep.subr.mxu0 0.0
        %4164 = vmatpush1.msra.mxu0 %v4150
        %4165 = vmatprep.subr.mxu0 0.0
        %4166 = vmatpush1.msra.mxu0 %v4151
        %4167 = vmatprep.subr.mxu0 0.0
        %4168 = vmatpush1.msra.mxu0 %v4152
        %4169 = vmatprep.subr.mxu0 0.0
        %4170 = vmatpush1.msra.mxu0 0.0
        %4171 = vmatprep.subr.mxu0 0.0
        %4172 = vmatpush1.msra.mxu0 0.0
        %4173 = vmatprep.subr.mxu0 0.0
        %4174 = vmatpush1.msra.mxu0 0.0
        %4175 = vmatprep.subr.mxu0 0.0
        %4176 = vmatpush1.msra.mxu0 0.0
        %4177 = vmatprep.subr.mxu0 0.0
        %4178 = vmatpush1.msra.mxu0 0.0
        %4179 = vmatprep.subr.mxu0 0.0
        %4180 = vmatpush1.msra.mxu0 0.0
        %4181 = vmatprep.subr.mxu0 0.0
        %4182 = vmatpush1.msra.mxu0 0.0
        %4183 = vmatprep.subr.mxu0 0.0
        %4184 = vmatpush1.msra.mxu0 0.0
        %4185 = vmatprep.subr.mxu0 0.0
        %4186 = vmatpush1.msra.mxu0 0.0
        %4187 = vmatprep.subr.mxu0 0.0
        %4188 = vmatpush1.msra.mxu0 0.0
        %4189 = vmatprep.subr.mxu0 0.0
        %4190 = vmatpush1.msra.mxu0 0.0
        %4191 = vmatprep.subr.mxu0 0.0
        %4192 = vmatpush1.msra.mxu0 0.0
        %4193 = vmatprep.subr.mxu0 0.0
        %4194 = vmatpush1.msra.mxu0 0.0
        %4195 = vmatprep.subr.mxu0 0.0
        %4196 = vmatpush1.msra.mxu0 0.0
        %4197 = vmatprep.subr.mxu0 0.0
        %4198 = vmatpush1.msra.mxu0 0.0
        %4199 = vmatprep.subr.mxu0 0.0
        %4200 = vmatpush1.msra.mxu0 0.0
        %4201 = vmatprep.subr.mxu0 0.0
        %4202 = vmatpush1.msra.mxu0 0.0
        %4203 = vmatprep.subr.mxu0 0.0
        %4204 = vmatpush1.msra.mxu0 0.0
        %4205 = vmatprep.subr.mxu0 0.0
        %4206 = vmatpush1.msra.mxu0 0.0
        %4207 = vmatprep.subr.mxu0 0.0
        %4208 = vmatpush1.msra.mxu0 0.0
        %4209 = vmatprep.subr.mxu0 0.0
        %4210 = vmatpush1.msra.mxu0 0.0
        %4211 = vmatprep.subr.mxu0 0.0
        %4212 = vmatpush1.msra.mxu0 0.0
        %4213 = vmatprep.subr.mxu0 0.0
        %4214 = vmatpush1.msra.mxu0 0.0
        %4215 = vmatprep.subr.mxu0 0.0
        %4216 = vmatpush1.msra.mxu0 0.0
        %4217 = vmatprep.subr.mxu0 0.0
        %4218 = vmatpush1.msra.mxu0 0.0
        %4219 = vmatprep.subr.mxu0 0.0
        %4220 = vmatpush1.msra.mxu0 0.0
        %4221 = vmatprep.subr.mxu0 0.0
        %4222 = vmatpush1.msra.mxu0 0.0
        %4223 = vmatprep.subr.mxu0 0.0
        %4224 = vmatpush1.msra.mxu0 0.0
        %4225 = vmatprep.mubr.f32.mxu0 0.0
        %4226 = vmatmul.mubr.f32.gmra.mrb[0].mxu0 %v4159
        %v4227 = vpop.f32.mrb[0].mxu0
        %v4228 = vadd.f32 %v4157, %v4227
        %v4229 = vpop.f32.mrb[0].mxu0
        %4230 = vdwg.mxu0
        %v4231 = vmul.f32 %v4228, 0.35355338
        %s4232 = scalar_lea.vmem [#allocation8], 32
        %v4233 = vld [vmem:[%s4232] sm:$0xff]
        %v4234 = vld [vmem:[%s4232 + $0x8] sm:$0xff]
        %v4235 = vld [vmem:[%s4232 + $0x10] sm:$0xff]
        %v4236 = vld [vmem:[%s4232 + $0x18] sm:$0xff]
        %v4237 = vld [vmem:[%s3128 + $0x5] sm:$0x1]
        %v4238 = vlaneseq
        %v4239 = vshrl.u32 %v4238, 7
        %v4240 = vsub.s32 0, %v4239
        %v4241 = vrot.slane %v4237, %v4240
        %4242 = vmatprep.subr.mxu0 0.0
        %4243 = vmatpush1.msra.mxu0 %v4233
        %4244 = vmatprep.subr.mxu0 0.0
        %4245 = vmatpush1.msra.mxu0 %v4234
        %4246 = vmatprep.subr.mxu0 0.0
        %4247 = vmatpush1.msra.mxu0 %v4235
        %4248 = vmatprep.subr.mxu0 0.0
        %4249 = vmatpush1.msra.mxu0 %v4236
        %4250 = vmatprep.subr.mxu0 0.0
        %4251 = vmatpush1.msra.mxu0 0.0
        %4252 = vmatprep.subr.mxu0 0.0
        %4253 = vmatpush1.msra.mxu0 0.0
        %4254 = vmatprep.subr.mxu0 0.0
        %4255 = vmatpush1.msra.mxu0 0.0
        %4256 = vmatprep.subr.mxu0 0.0
        %4257 = vmatpush1.msra.mxu0 0.0
        %4258 = vmatprep.subr.mxu0 0.0
        %4259 = vmatpush1.msra.mxu0 0.0
        %4260 = vmatprep.subr.mxu0 0.0
        %4261 = vmatpush1.msra.mxu0 0.0
        %4262 = vmatprep.subr.mxu0 0.0
        %4263 = vmatpush1.msra.mxu0 0.0
        %4264 = vmatprep.subr.mxu0 0.0
        %4265 = vmatpush1.msra.mxu0 0.0
        %4266 = vmatprep.subr.mxu0 0.0
        %4267 = vmatpush1.msra.mxu0 0.0
        %4268 = vmatprep.subr.mxu0 0.0
        %4269 = vmatpush1.msra.mxu0 0.0
        %4270 = vmatprep.subr.mxu0 0.0
        %4271 = vmatpush1.msra.mxu0 0.0
        %4272 = vmatprep.subr.mxu0 0.0
        %4273 = vmatpush1.msra.mxu0 0.0
        %4274 = vmatprep.subr.mxu0 0.0
        %4275 = vmatpush1.msra.mxu0 0.0
        %4276 = vmatprep.subr.mxu0 0.0
        %4277 = vmatpush1.msra.mxu0 0.0
        %4278 = vmatprep.subr.mxu0 0.0
        %4279 = vmatpush1.msra.mxu0 0.0
        %4280 = vmatprep.subr.mxu0 0.0
        %4281 = vmatpush1.msra.mxu0 0.0
        %4282 = vmatprep.subr.mxu0 0.0
        %4283 = vmatpush1.msra.mxu0 0.0
        %4284 = vmatprep.subr.mxu0 0.0
        %4285 = vmatpush1.msra.mxu0 0.0
        %4286 = vmatprep.subr.mxu0 0.0
        %4287 = vmatpush1.msra.mxu0 0.0
        %4288 = vmatprep.subr.mxu0 0.0
        %4289 = vmatpush1.msra.mxu0 0.0
        %4290 = vmatprep.subr.mxu0 0.0
        %4291 = vmatpush1.msra.mxu0 0.0
        %4292 = vmatprep.subr.mxu0 0.0
        %4293 = vmatpush1.msra.mxu0 0.0
        %4294 = vmatprep.subr.mxu0 0.0
        %4295 = vmatpush1.msra.mxu0 0.0
        %4296 = vmatprep.subr.mxu0 0.0
        %4297 = vmatpush1.msra.mxu0 0.0
        %4298 = vmatprep.subr.mxu0 0.0
        %4299 = vmatpush1.msra.mxu0 0.0
        %4300 = vmatprep.subr.mxu0 0.0
        %4301 = vmatpush1.msra.mxu0 0.0
        %4302 = vmatprep.subr.mxu0 0.0
        %4303 = vmatpush1.msra.mxu0 0.0
        %4304 = vmatprep.subr.mxu0 0.0
        %4305 = vmatpush1.msra.mxu0 0.0
        %4306 = vmatprep.mubr.f32.mxu0 0.0
        %4307 = vmatmul.mubr.f32.gmra.mrb[0].mxu0 %v1736
        %v4308 = vpop.f32.mrb[0].mxu0
        %v4309 = vadd.f32 %v4241, %v4308
        %v4310 = vpop.f32.mrb[0].mxu0
        %4311 = vmatprep.mubr.f32.mxu0 0.0
        %4312 = vmatmul.mubr.f32.gmra.mrb[0].mxu0 %v1739
        %v4313 = vpop.f32.mrb[0].mxu0
        %v4314 = vadd.f32 %v4241, %v4313
        %v4315 = vpop.f32.mrb[0].mxu0
        %4316 = vdwg.mxu0
        %v4318 = vsel %vm658, %v4231, 0
        %v4321 = vsel %vm658, %v4309, 0
        %v4324 = vsel %vm658, %v4314, 0
        %4326 = vmatprep.subr.mxu0 0.0
        %4327 = vmatpush1.xpose.msra.mxu0 %v4321
        %4328 = vmatprep.subr.mxu0 0.0
        %4329 = vmatpush1.xpose.msra.mxu0 %v4324
        %4330 = vmatprep.subr.mxu0 0.0
        %4331 = vmatpush1.xpose.msra.mxu0 0.0
        %4332 = vmatprep.subr.mxu0 0.0
        %4333 = vmatpush1.xpose.msra.mxu0 0.0
        %4334 = vmatprep.subr.mxu0 0.0
        %4335 = vmatpush1.xpose.msra.mxu0 0.0
        %4336 = vmatprep.subr.mxu0 0.0
        %4337 = vmatpush1.xpose.msra.mxu0 0.0
        %4338 = vmatprep.subr.mxu0 0.0
        %4339 = vmatpush1.xpose.msra.mxu0 0.0
        %4340 = vmatprep.subr.mxu0 0.0
        %4341 = vmatpush1.xpose.msra.mxu0 0.0
        %4342 = vmatprep.subr.mxu0 0.0
        %4343 = vmatpush1.xpose.msra.mxu0 0.0
        %4344 = vmatprep.subr.mxu0 0.0
        %4345 = vmatpush1.xpose.msra.mxu0 0.0
        %4346 = vmatprep.subr.mxu0 0.0
        %4347 = vmatpush1.xpose.msra.mxu0 0.0
        %4348 = vmatprep.subr.mxu0 0.0
        %4349 = vmatpush1.xpose.msra.mxu0 0.0
        %4350 = vmatprep.subr.mxu0 0.0
        %4351 = vmatpush1.xpose.msra.mxu0 0.0
        %4352 = vmatprep.subr.mxu0 0.0
        %4353 = vmatpush1.xpose.msra.mxu0 0.0
        %4354 = vmatprep.subr.mxu0 0.0
        %4355 = vmatpush1.xpose.msra.mxu0 0.0
        %4356 = vmatprep.subr.mxu0 0.0
        %4357 = vmatpush1.xpose.msra.mxu0 0.0
        %4358 = vmatprep.subr.mxu0 0.0
        %4359 = vmatpush1.xpose.msra.mxu0 0.0
        %4360 = vmatprep.subr.mxu0 0.0
        %4361 = vmatpush1.xpose.msra.mxu0 0.0
        %4362 = vmatprep.subr.mxu0 0.0
        %4363 = vmatpush1.xpose.msra.mxu0 0.0
        %4364 = vmatprep.subr.mxu0 0.0
        %4365 = vmatpush1.xpose.msra.mxu0 0.0
        %4366 = vmatprep.subr.mxu0 0.0
        %4367 = vmatpush1.xpose.msra.mxu0 0.0
        %4368 = vmatprep.subr.mxu0 0.0
        %4369 = vmatpush1.xpose.msra.mxu0 0.0
        %4370 = vmatprep.subr.mxu0 0.0
        %4371 = vmatpush1.xpose.msra.mxu0 0.0
        %4372 = vmatprep.subr.mxu0 0.0
        %4373 = vmatpush1.xpose.msra.mxu0 0.0
        %4374 = vmatprep.subr.mxu0 0.0
        %4375 = vmatpush1.xpose.msra.mxu0 0.0
        %4376 = vmatprep.subr.mxu0 0.0
        %4377 = vmatpush1.xpose.msra.mxu0 0.0
        %4378 = vmatprep.subr.mxu0 0.0
        %4379 = vmatpush1.xpose.msra.mxu0 0.0
        %4380 = vmatprep.subr.mxu0 0.0
        %4381 = vmatpush1.xpose.msra.mxu0 0.0
        %4382 = vmatprep.subr.mxu0 0.0
        %4383 = vmatpush1.xpose.msra.mxu0 0.0
        %4384 = vmatprep.subr.mxu0 0.0
        %4385 = vmatpush1.xpose.msra.mxu0 0.0
        %4386 = vmatprep.subr.mxu0 0.0
        %4387 = vmatpush1.xpose.msra.mxu0 0.0
        %4388 = vmatprep.subr.mxu0 0.0
        %4389 = vmatpush1.xpose.msra.mxu0 0.0
        %4390 = vmatprep.mubr.f32.mxu0 0.0
        %4391 = vmatmul.mubr.f32.gmra.mrb[0].mxu0 %v4318
        %v4392 = vpop.f32.mrb[0].mxu0
        %v4393 = vadd.f32 %v549, %v4392
        %v4394 = vpop.f32.mrb[0].mxu0
        %4395 = vdwg.mxu0
        %v4396 = vsel %vm1913, %v4393, -inf
        %4397 = vmax.xlane.f32.xlu0 %v4396
        %v4398 = vpop.xlane.xlu0 %4397
        %v4399 = vsub.f32 %v4393, %v4398
        %v4400 = vmul.f32 %v4399, 1.442695
        %v4401 = vpow.pop %v4400
        %v4402 = vsel %vm1913, %v4401, 0.0
        %4403 = vadd.xlane.f32.xlu0 %v4402
        %v4404 = vpop.xlane.xlu0 %4403
        %v4405 = vrcp.pop %v4404
        %v4406 = vmul.f32 %v4401, %v4405
        %4407 = vrot.lane.b32.xlu0 %v4231, 120
        %v4408 = vpop.permute.xlu0 %4407
        %4409 = vrot.lane.b32.xlu0 %v4309, 120
        %v4410 = vpop.permute.xlu0 %4409
        %4411 = vrot.lane.b32.xlu0 %v4314, 120
        %v4412 = vpop.permute.xlu0 %4411
        %v4413 = vsel %vm658, %v4408, 0
        %v4415 = vsel %vm658, %v4410, 0
        %v4417 = vsel %vm658, %v4412, 0
        %4419 = vmatprep.subr.mxu0 0.0
        %4420 = vmatpush1.xpose.msra.mxu0 %v4415
        %4421 = vmatprep.subr.mxu0 0.0
        %4422 = vmatpush1.xpose.msra.mxu0 %v4417
        %4423 = vmatprep.subr.mxu0 0.0
        %4424 = vmatpush1.xpose.msra.mxu0 0.0
        %4425 = vmatprep.subr.mxu0 0.0
        %4426 = vmatpush1.xpose.msra.mxu0 0.0
        %4427 = vmatprep.subr.mxu0 0.0
        %4428 = vmatpush1.xpose.msra.mxu0 0.0
        %4429 = vmatprep.subr.mxu0 0.0
        %4430 = vmatpush1.xpose.msra.mxu0 0.0
        %4431 = vmatprep.subr.mxu0 0.0
        %4432 = vmatpush1.xpose.msra.mxu0 0.0
        %4433 = vmatprep.subr.mxu0 0.0
        %4434 = vmatpush1.xpose.msra.mxu0 0.0
        %4435 = vmatprep.subr.mxu0 0.0
        %4436 = vmatpush1.xpose.msra.mxu0 0.0
        %4437 = vmatprep.subr.mxu0 0.0
        %4438 = vmatpush1.xpose.msra.mxu0 0.0
        %4439 = vmatprep.subr.mxu0 0.0
        %4440 = vmatpush1.xpose.msra.mxu0 0.0
        %4441 = vmatprep.subr.mxu0 0.0
        %4442 = vmatpush1.xpose.msra.mxu0 0.0
        %4443 = vmatprep.subr.mxu0 0.0
        %4444 = vmatpush1.xpose.msra.mxu0 0.0
        %4445 = vmatprep.subr.mxu0 0.0
        %4446 = vmatpush1.xpose.msra.mxu0 0.0
        %4447 = vmatprep.subr.mxu0 0.0
        %4448 = vmatpush1.xpose.msra.mxu0 0.0
        %4449 = vmatprep.subr.mxu0 0.0
        %4450 = vmatpush1.xpose.msra.mxu0 0.0
        %4451 = vmatprep.subr.mxu0 0.0
        %4452 = vmatpush1.xpose.msra.mxu0 0.0
        %4453 = vmatprep.subr.mxu0 0.0
        %4454 = vmatpush1.xpose.msra.mxu0 0.0
        %4455 = vmatprep.subr.mxu0 0.0
        %4456 = vmatpush1.xpose.msra.mxu0 0.0
        %4457 = vmatprep.subr.mxu0 0.0
        %4458 = vmatpush1.xpose.msra.mxu0 0.0
        %4459 = vmatprep.subr.mxu0 0.0
        %4460 = vmatpush1.xpose.msra.mxu0 0.0
        %4461 = vmatprep.subr.mxu0 0.0
        %4462 = vmatpush1.xpose.msra.mxu0 0.0
        %4463 = vmatprep.subr.mxu0 0.0
        %4464 = vmatpush1.xpose.msra.mxu0 0.0
        %4465 = vmatprep.subr.mxu0 0.0
        %4466 = vmatpush1.xpose.msra.mxu0 0.0
        %4467 = vmatprep.subr.mxu0 0.0
        %4468 = vmatpush1.xpose.msra.mxu0 0.0
        %4469 = vmatprep.subr.mxu0 0.0
        %4470 = vmatpush1.xpose.msra.mxu0 0.0
        %4471 = vmatprep.subr.mxu0 0.0
        %4472 = vmatpush1.xpose.msra.mxu0 0.0
        %4473 = vmatprep.subr.mxu0 0.0
        %4474 = vmatpush1.xpose.msra.mxu0 0.0
        %4475 = vmatprep.subr.mxu0 0.0
        %4476 = vmatpush1.xpose.msra.mxu0 0.0
        %4477 = vmatprep.subr.mxu0 0.0
        %4478 = vmatpush1.xpose.msra.mxu0 0.0
        %4479 = vmatprep.subr.mxu0 0.0
        %4480 = vmatpush1.xpose.msra.mxu0 0.0
        %4481 = vmatprep.subr.mxu0 0.0
        %4482 = vmatpush1.xpose.msra.mxu0 0.0
        %4483 = vmatprep.mubr.f32.mxu0 0.0
        %4484 = vmatmul.mubr.f32.gmra.mrb[0].mxu0 %v4413
        %v4485 = vpop.f32.mrb[0].mxu0
        %v4486 = vadd.f32 %v549, %v4485
        %v4487 = vpop.f32.mrb[0].mxu0
        %4488 = vdwg.mxu0
        %v4489 = vsel %vm1913, %v4486, -inf
        %4490 = vmax.xlane.f32.xlu0 %v4489
        %v4491 = vpop.xlane.xlu0 %4490
        %v4492 = vsub.f32 %v4486, %v4491
        %v4493 = vmul.f32 %v4492, 1.442695
        %v4494 = vpow.pop %v4493
        %v4495 = vsel %vm1913, %v4494, 0.0
        %4496 = vadd.xlane.f32.xlu0 %v4495
        %v4497 = vpop.xlane.xlu0 %4496
        %v4498 = vrcp.pop %v4497
        %v4499 = vmul.f32 %v4494, %v4498
        %v4500 = vadd.f32 %v4406, %v4499
        %4501 = vrot.lane.b32.xlu0 %v4231, 112
        %v4502 = vpop.permute.xlu0 %4501
        %4503 = vrot.lane.b32.xlu0 %v4309, 112
        %v4504 = vpop.permute.xlu0 %4503
        %4505 = vrot.lane.b32.xlu0 %v4314, 112
        %v4506 = vpop.permute.xlu0 %4505
        %v4507 = vsel %vm658, %v4502, 0
        %v4509 = vsel %vm658, %v4504, 0
        %v4511 = vsel %vm658, %v4506, 0
        %4513 = vmatprep.subr.mxu0 0.0
        %4514 = vmatpush1.xpose.msra.mxu0 %v4509
        %4515 = vmatprep.subr.mxu0 0.0
        %4516 = vmatpush1.xpose.msra.mxu0 %v4511
        %4517 = vmatprep.subr.mxu0 0.0
        %4518 = vmatpush1.xpose.msra.mxu0 0.0
        %4519 = vmatprep.subr.mxu0 0.0
        %4520 = vmatpush1.xpose.msra.mxu0 0.0
        %4521 = vmatprep.subr.mxu0 0.0
        %4522 = vmatpush1.xpose.msra.mxu0 0.0
        %4523 = vmatprep.subr.mxu0 0.0
        %4524 = vmatpush1.xpose.msra.mxu0 0.0
        %4525 = vmatprep.subr.mxu0 0.0
        %4526 = vmatpush1.xpose.msra.mxu0 0.0
        %4527 = vmatprep.subr.mxu0 0.0
        %4528 = vmatpush1.xpose.msra.mxu0 0.0
        %4529 = vmatprep.subr.mxu0 0.0
        %4530 = vmatpush1.xpose.msra.mxu0 0.0
        %4531 = vmatprep.subr.mxu0 0.0
        %4532 = vmatpush1.xpose.msra.mxu0 0.0
        %4533 = vmatprep.subr.mxu0 0.0
        %4534 = vmatpush1.xpose.msra.mxu0 0.0
        %4535 = vmatprep.subr.mxu0 0.0
        %4536 = vmatpush1.xpose.msra.mxu0 0.0
        %4537 = vmatprep.subr.mxu0 0.0
        %4538 = vmatpush1.xpose.msra.mxu0 0.0
        %4539 = vmatprep.subr.mxu0 0.0
        %4540 = vmatpush1.xpose.msra.mxu0 0.0
        %4541 = vmatprep.subr.mxu0 0.0
        %4542 = vmatpush1.xpose.msra.mxu0 0.0
        %4543 = vmatprep.subr.mxu0 0.0
        %4544 = vmatpush1.xpose.msra.mxu0 0.0
        %4545 = vmatprep.subr.mxu0 0.0
        %4546 = vmatpush1.xpose.msra.mxu0 0.0
        %4547 = vmatprep.subr.mxu0 0.0
        %4548 = vmatpush1.xpose.msra.mxu0 0.0
        %4549 = vmatprep.subr.mxu0 0.0
        %4550 = vmatpush1.xpose.msra.mxu0 0.0
        %4551 = vmatprep.subr.mxu0 0.0
        %4552 = vmatpush1.xpose.msra.mxu0 0.0
        %4553 = vmatprep.subr.mxu0 0.0
        %4554 = vmatpush1.xpose.msra.mxu0 0.0
        %4555 = vmatprep.subr.mxu0 0.0
        %4556 = vmatpush1.xpose.msra.mxu0 0.0
        %4557 = vmatprep.subr.mxu0 0.0
        %4558 = vmatpush1.xpose.msra.mxu0 0.0
        %4559 = vmatprep.subr.mxu0 0.0
        %4560 = vmatpush1.xpose.msra.mxu0 0.0
        %4561 = vmatprep.subr.mxu0 0.0
        %4562 = vmatpush1.xpose.msra.mxu0 0.0
        %4563 = vmatprep.subr.mxu0 0.0
        %4564 = vmatpush1.xpose.msra.mxu0 0.0
        %4565 = vmatprep.subr.mxu0 0.0
        %4566 = vmatpush1.xpose.msra.mxu0 0.0
        %4567 = vmatprep.subr.mxu0 0.0
        %4568 = vmatpush1.xpose.msra.mxu0 0.0
        %4569 = vmatprep.subr.mxu0 0.0
        %4570 = vmatpush1.xpose.msra.mxu0 0.0
        %4571 = vmatprep.subr.mxu0 0.0
        %4572 = vmatpush1.xpose.msra.mxu0 0.0
        %4573 = vmatprep.subr.mxu0 0.0
        %4574 = vmatpush1.xpose.msra.mxu0 0.0
        %4575 = vmatprep.subr.mxu0 0.0
        %4576 = vmatpush1.xpose.msra.mxu0 0.0
        %4577 = vmatprep.mubr.f32.mxu0 0.0
        %4578 = vmatmul.mubr.f32.gmra.mrb[0].mxu0 %v4507
        %v4579 = vpop.f32.mrb[0].mxu0
        %v4580 = vadd.f32 %v549, %v4579
        %v4581 = vpop.f32.mrb[0].mxu0
        %4582 = vdwg.mxu0
        %v4583 = vsel %vm1913, %v4580, -inf
        %4584 = vmax.xlane.f32.xlu0 %v4583
        %v4585 = vpop.xlane.xlu0 %4584
        %v4586 = vsub.f32 %v4580, %v4585
        %v4587 = vmul.f32 %v4586, 1.442695
        %v4588 = vpow.pop %v4587
        %v4589 = vsel %vm1913, %v4588, 0.0
        %4590 = vadd.xlane.f32.xlu0 %v4589
        %v4591 = vpop.xlane.xlu0 %4590
        %v4592 = vrcp.pop %v4591
        %v4593 = vmul.f32 %v4588, %v4592
        %v4594 = vadd.f32 %v4500, %v4593
        %4595 = vrot.lane.b32.xlu0 %v4231, 104
        %v4596 = vpop.permute.xlu0 %4595
        %4597 = vrot.lane.b32.xlu0 %v4309, 104
        %v4598 = vpop.permute.xlu0 %4597
        %4599 = vrot.lane.b32.xlu0 %v4314, 104
        %v4600 = vpop.permute.xlu0 %4599
        %v4601 = vsel %vm658, %v4596, 0
        %v4603 = vsel %vm658, %v4598, 0
        %v4605 = vsel %vm658, %v4600, 0
        %4607 = vmatprep.subr.mxu0 0.0
        %4608 = vmatpush1.xpose.msra.mxu0 %v4603
        %4609 = vmatprep.subr.mxu0 0.0
        %4610 = vmatpush1.xpose.msra.mxu0 %v4605
        %4611 = vmatprep.subr.mxu0 0.0
        %4612 = vmatpush1.xpose.msra.mxu0 0.0
        %4613 = vmatprep.subr.mxu0 0.0
        %4614 = vmatpush1.xpose.msra.mxu0 0.0
        %4615 = vmatprep.subr.mxu0 0.0
        %4616 = vmatpush1.xpose.msra.mxu0 0.0
        %4617 = vmatprep.subr.mxu0 0.0
        %4618 = vmatpush1.xpose.msra.mxu0 0.0
        %4619 = vmatprep.subr.mxu0 0.0
        %4620 = vmatpush1.xpose.msra.mxu0 0.0
        %4621 = vmatprep.subr.mxu0 0.0
        %4622 = vmatpush1.xpose.msra.mxu0 0.0
        %4623 = vmatprep.subr.mxu0 0.0
        %4624 = vmatpush1.xpose.msra.mxu0 0.0
        %4625 = vmatprep.subr.mxu0 0.0
        %4626 = vmatpush1.xpose.msra.mxu0 0.0
        %4627 = vmatprep.subr.mxu0 0.0
        %4628 = vmatpush1.xpose.msra.mxu0 0.0
        %4629 = vmatprep.subr.mxu0 0.0
        %4630 = vmatpush1.xpose.msra.mxu0 0.0
        %4631 = vmatprep.subr.mxu0 0.0
        %4632 = vmatpush1.xpose.msra.mxu0 0.0
        %4633 = vmatprep.subr.mxu0 0.0
        %4634 = vmatpush1.xpose.msra.mxu0 0.0
        %4635 = vmatprep.subr.mxu0 0.0
        %4636 = vmatpush1.xpose.msra.mxu0 0.0
        %4637 = vmatprep.subr.mxu0 0.0
        %4638 = vmatpush1.xpose.msra.mxu0 0.0
        %4639 = vmatprep.subr.mxu0 0.0
        %4640 = vmatpush1.xpose.msra.mxu0 0.0
        %4641 = vmatprep.subr.mxu0 0.0
        %4642 = vmatpush1.xpose.msra.mxu0 0.0
        %4643 = vmatprep.subr.mxu0 0.0
        %4644 = vmatpush1.xpose.msra.mxu0 0.0
        %4645 = vmatprep.subr.mxu0 0.0
        %4646 = vmatpush1.xpose.msra.mxu0 0.0
        %4647 = vmatprep.subr.mxu0 0.0
        %4648 = vmatpush1.xpose.msra.mxu0 0.0
        %4649 = vmatprep.subr.mxu0 0.0
        %4650 = vmatpush1.xpose.msra.mxu0 0.0
        %4651 = vmatprep.subr.mxu0 0.0
        %4652 = vmatpush1.xpose.msra.mxu0 0.0
        %4653 = vmatprep.subr.mxu0 0.0
        %4654 = vmatpush1.xpose.msra.mxu0 0.0
        %4655 = vmatprep.subr.mxu0 0.0
        %4656 = vmatpush1.xpose.msra.mxu0 0.0
        %4657 = vmatprep.subr.mxu0 0.0
        %4658 = vmatpush1.xpose.msra.mxu0 0.0
        %4659 = vmatprep.subr.mxu0 0.0
        %4660 = vmatpush1.xpose.msra.mxu0 0.0
        %4661 = vmatprep.subr.mxu0 0.0
        %4662 = vmatpush1.xpose.msra.mxu0 0.0
        %4663 = vmatprep.subr.mxu0 0.0
        %4664 = vmatpush1.xpose.msra.mxu0 0.0
        %4665 = vmatprep.subr.mxu0 0.0
        %4666 = vmatpush1.xpose.msra.mxu0 0.0
        %4667 = vmatprep.subr.mxu0 0.0
        %4668 = vmatpush1.xpose.msra.mxu0 0.0
        %4669 = vmatprep.subr.mxu0 0.0
        %4670 = vmatpush1.xpose.msra.mxu0 0.0
        %4671 = vmatprep.mubr.f32.mxu0 0.0
        %4672 = vmatmul.mubr.f32.gmra.mrb[0].mxu0 %v4601
        %v4673 = vpop.f32.mrb[0].mxu0
        %v4674 = vadd.f32 %v549, %v4673
        %v4675 = vpop.f32.mrb[0].mxu0
        %4676 = vdwg.mxu0
        %v4677 = vsel %vm1913, %v4674, -inf
        %4678 = vmax.xlane.f32.xlu0 %v4677
        %v4679 = vpop.xlane.xlu0 %4678
        %v4680 = vsub.f32 %v4674, %v4679
        %v4681 = vmul.f32 %v4680, 1.442695
        %v4682 = vpow.pop %v4681
        %v4683 = vsel %vm1913, %v4682, 0.0
        %4684 = vadd.xlane.f32.xlu0 %v4683
        %v4685 = vpop.xlane.xlu0 %4684
        %v4686 = vrcp.pop %v4685
        %v4687 = vmul.f32 %v4682, %v4686
        %v4688 = vadd.f32 %v4594, %v4687
        %v4689 = vmul.f32 %v4688, 0.25
        %v4690 = vlaneseq
        %v4691 = vshrl.u32 %v4690, 7
        %v4692 = vadd.s32 %v4691, 8
        %v4693 = vlaneseq
        %v4694 = vand.u32 %v4693, 127
        %v4695 = vadd.s32 %v4691, 2
        %v4696 = vadd.s32 %v4692, 2
        %vm4697 = vcmp.eq.s32.totalorder %v4694, %v4695
        %vm4698 = vcmp.eq.s32.totalorder %v4694, %v4696
        %v4699 = vsel %vm4697, 1, 0
        %v4700 = vsel %vm4698, 1, 0
        %v4701 = vcvt.s32.f32 %v4699
        %v4702 = vcvt.s32.f32 %v4700
        %v4704 = vsel %vm1913, %v4689, 0
        %4706 = vmatprep.subr.mxu0 0.0
        %4707 = vmatpush1.msra.mxu0 %v4701
        %4708 = vmatprep.subr.mxu0 0.0
        %4709 = vmatpush1.msra.mxu0 %v4702
        %4710 = vmatprep.subr.mxu0 0.0
        %4711 = vmatpush1.msra.mxu0 0.0
        %4712 = vmatprep.subr.mxu0 0.0
        %4713 = vmatpush1.msra.mxu0 0.0
        %4714 = vmatprep.subr.mxu0 0.0
        %4715 = vmatpush1.msra.mxu0 0.0
        %4716 = vmatprep.subr.mxu0 0.0
        %4717 = vmatpush1.msra.mxu0 0.0
        %4718 = vmatprep.subr.mxu0 0.0
        %4719 = vmatpush1.msra.mxu0 0.0
        %4720 = vmatprep.subr.mxu0 0.0
        %4721 = vmatpush1.msra.mxu0 0.0
        %4722 = vmatprep.subr.mxu0 0.0
        %4723 = vmatpush1.msra.mxu0 0.0
        %4724 = vmatprep.subr.mxu0 0.0
        %4725 = vmatpush1.msra.mxu0 0.0
        %4726 = vmatprep.subr.mxu0 0.0
        %4727 = vmatpush1.msra.mxu0 0.0
        %4728 = vmatprep.subr.mxu0 0.0
        %4729 = vmatpush1.msra.mxu0 0.0
        %4730 = vmatprep.subr.mxu0 0.0
        %4731 = vmatpush1.msra.mxu0 0.0
        %4732 = vmatprep.subr.mxu0 0.0
        %4733 = vmatpush1.msra.mxu0 0.0
        %4734 = vmatprep.subr.mxu0 0.0
        %4735 = vmatpush1.msra.mxu0 0.0
        %4736 = vmatprep.subr.mxu0 0.0
        %4737 = vmatpush1.msra.mxu0 0.0
        %4738 = vmatprep.subr.mxu0 0.0
        %4739 = vmatpush1.msra.mxu0 0.0
        %4740 = vmatprep.subr.mxu0 0.0
        %4741 = vmatpush1.msra.mxu0 0.0
        %4742 = vmatprep.subr.mxu0 0.0
        %4743 = vmatpush1.msra.mxu0 0.0
        %4744 = vmatprep.subr.mxu0 0.0
        %4745 = vmatpush1.msra.mxu0 0.0
        %4746 = vmatprep.subr.mxu0 0.0
        %4747 = vmatpush1.msra.mxu0 0.0
        %4748 = vmatprep.subr.mxu0 0.0
        %4749 = vmatpush1.msra.mxu0 0.0
        %4750 = vmatprep.subr.mxu0 0.0
        %4751 = vmatpush1.msra.mxu0 0.0
        %4752 = vmatprep.subr.mxu0 0.0
        %4753 = vmatpush1.msra.mxu0 0.0
        %4754 = vmatprep.subr.mxu0 0.0
        %4755 = vmatpush1.msra.mxu0 0.0
        %4756 = vmatprep.subr.mxu0 0.0
        %4757 = vmatpush1.msra.mxu0 0.0
        %4758 = vmatprep.subr.mxu0 0.0
        %4759 = vmatpush1.msra.mxu0 0.0
        %4760 = vmatprep.subr.mxu0 0.0
        %4761 = vmatpush1.msra.mxu0 0.0
        %4762 = vmatprep.subr.mxu0 0.0
        %4763 = vmatpush1.msra.mxu0 0.0
        %4764 = vmatprep.subr.mxu0 0.0
        %4765 = vmatpush1.msra.mxu0 0.0
        %4766 = vmatprep.subr.mxu0 0.0
        %4767 = vmatpush1.msra.mxu0 0.0
        %4768 = vmatprep.subr.mxu0 0.0
        %4769 = vmatpush1.msra.mxu0 0.0
        %4770 = vmatprep.mubr.f32.mxu0 0.0
        %4771 = vmatmul.mubr.f32.gmra.mrb[0].mxu0 %v4704
        %v4772 = vpop.f32.mrb[0].mxu0
        %v4773 = vadd.f32 0.0, %v4772
        %v4774 = vpop.f32.mrb[0].mxu0
        %4775 = vdwg.mxu0
        %vm4776 = vcmask 146432
        %4777 = vst.msk [vmem:[%s539] sm:$0xff] %vm4776, %v4773
        %s4778 = sand.u32 %s324, 1
        %s4779 = scalar_lea.sflag [#allocation4], %s4778
        %s4780 = sand.u32 %s324, 1
        %s4781 = smul.addr %s4780, 8
        %s4782 = scalar_lea.vmem [#allocation13], %s4781
        // Predicated region
        $region97: #{tpu_custom_call.1} parent=71 // pred_check
          %p4783 = pneg %p334
        $region98: #{tpu_custom_call.1} parent=71 // pred_check_branch
          %4785 = sbr.rel (%p4783) target = $region100
        $region99: #{tpu_custom_call.1} parent=71 // pred_region
          %s4787 = ssub.s32 128, 128
          %4788 = vsyncadd %s4779, %s4787
          %s4789 = smul.addr %s33, 128
          %s4790 = scalar_lea.hbm %s13, %s4789
          %s4792 = sshll.u32 %s4782, 4
          %s4793 = int_to_ptr.vmem [resolvable:$true] %s4792
          %4795 = dma.vmem_to_hbm [thread:$0]  %s4793, 128, %s4790, %s4779
        $region100: #{tpu_custom_call.1} parent=71 // pred_fallthru
          _
      $region72: #{tpu_custom_call.1} parent=5 // pred_fallthru
        _
      %p4796 = scmp.le.s32.totalorder 2, %s28
      // Predicated region
      $region101: #{tpu_custom_call.1} parent=5 // pred_check
        %p4797 = pneg %p4796
      $region102: #{tpu_custom_call.1} parent=5 // pred_check_branch
        %4799 = sbr.rel (%p4797) target = $region104
      $region103: #{tpu_custom_call.1} parent=5 // pred_region
        %s4800 = ssub.s32 %s28, 2
        // Predicated region
        $region105: #{tpu_custom_call.1} parent=103 // pred_check
          %p4801 = pneg %p340
        $region106: #{tpu_custom_call.1} parent=103 // pred_check_branch
          %4803 = sbr.rel (%p4801) target = $region108
        $region107: #{tpu_custom_call.1} parent=103 // pred_region
          %s4804 = sand.u32 %s325, 1
          %s4805 = scalar_lea.sflag [#allocation4], %s4804
          %s4806 = sand.u32 %s325, 1
          %s4807 = smul.addr %s4806, 8
          %s4808 = scalar_lea.vmem [#allocation13], %s4807
          %4809 = dma.done %s4805, 128
        $region108: #{tpu_custom_call.1} parent=103 // pred_fallthru
          _
      $region104: #{tpu_custom_call.1} parent=5 // pred_fallthru
        _
    $region6: #{tpu_custom_call.1} parent=1 // loop_footer
      %s32 = sadd.s32 1, %s28
    $region7: #{tpu_custom_call.1} parent=1 // loop_footer_branch
      %27 = sbr.rel target = $region3
    $region8: #{tpu_custom_call.1} parent=1 // loop_exit
      _
    %4810 = vsyncpa [#allocation3], 1
    %s4811 = scalar_lea.sflag [#allocation3], 1
    %4812 = vsyncpa %s4811, 1
    %4813 = vsyncpa [#allocation6], 1
    %4814 = vsyncpa [#allocation9], 1
    %4815 = vsyncpa [#allocation12], 1
    %4816 = vsyncpa [#allocation4], 1
    %s4817 = scalar_lea.sflag [#allocation4], 1
    %4818 = vsyncpa %s4817, 1

</llo_original>
